<compile_context>
chip_gen: v7x
topology: tpu7x:2x2x1
jax: 0.10.0
libtpu: 0.0.40
codegen_flags: <defaults>
</compile_context>

<pallas_src>
import functools

import jax
import jax.numpy as jnp
import numpy as np
from jax import lax
from jax.experimental import pallas as pl
from jax.experimental.pallas import tpu as pltpu


# ----------------------------------------------------------------------------
# helpers
# ----------------------------------------------------------------------------
def _round_up(x, m):
    return ((x + m - 1) // m) * m


def _pad_gate_cols(w, h, hp):
    """Pad the 4*H gate axis (last dim) so each gate block is Hp wide."""
    lead = w.shape[:-1]
    w4 = w.reshape(lead + (4, h))
    pad = [(0, 0)] * len(lead) + [(0, 0), (0, hp - h)]
    return jnp.pad(w4, pad).reshape(lead + (4 * hp,))


def _sigmoid_eup(x):
    # sigmoid(x) == 0.5 * tanh(0.5 * x) + 0.5 : exactly one EUP (tanh) op per
    # gate instead of exp + reciprocal (EUP is the binding per-step cost).
    return 0.5 * jnp.tanh(0.5 * x) + 0.5


def _pick_chunk_steps(seq_len):
    """Time-steps per projection chunk (must divide seq_len).

    Small chunks let the next chunk's input projection (MXU) be pipelined
    under the current chunk's recurrence (EUP/latency bound)."""
    if seq_len <= 2:
        return seq_len
    for cand in (8, 4, 2):
        if cand < seq_len and seq_len % cand == 0:
            return cand
    return seq_len  # no nice divisor -> single chunk (no pipelining)


def _vmem_limit_bytes(seq_len, b_pad, d_pad, h_pad, n_layers, compute_dtype):
    """Compute the VMEM cap from the actual resident buffers (+ headroom)."""
    cbytes = jnp.dtype(compute_dtype).itemsize
    rows = seq_len * b_pad
    total = rows * d_pad * cbytes                          # x2d
    total += d_pad * 4 * h_pad * cbytes                    # wih0
    if n_layers > 1:
        total += (n_layers - 1) * h_pad * 4 * h_pad * cbytes  # wihr
        total += rows * h_pad * cbytes                     # xin_sc scratch
    total += n_layers * h_pad * 4 * h_pad * cbytes         # whh
    total += n_layers * 8 * 4 * h_pad * 4                  # bias (sublane-pad)
    total += 2 * n_layers * b_pad * h_pad * 4              # h0, c0
    total += rows * h_pad * 4                              # y2d (f32)
    total += 2 * n_layers * b_pad * h_pad * 4              # hN, cN
    total += rows * 4 * h_pad * 4                          # gx_sc (f32)
    # 2x headroom for compiler temporaries; keep within what all generations
    # (incl. v7x 64 MiB physical, minus system reserve) can grant for the toy;
    # raise toward ~100 MiB only when the resident design actually needs it
    # (v5e/v6e); on v7x prefer S-chunking instead (see TODO above).
    return int(min(max(2 * total + (8 << 20), 32 << 20), 100 << 20))


# ----------------------------------------------------------------------------
# Pallas kernel: all LSTM layers + all time steps in one invocation
# ----------------------------------------------------------------------------
def core_lstm_kernel(*refs, n_layers, seq_len, chunk_steps, inner_unroll,
                     multi_layer):
    if multi_layer:
        (x_ref, wih0_ref, wihr_ref, whh_ref, b_ref, h0_ref, c0_ref,
         y_ref, hN_ref, cN_ref, gx_sc, xin_sc) = refs
    else:
        (x_ref, wih0_ref, whh_ref, b_ref, h0_ref, c0_ref,
         y_ref, hN_ref, cN_ref, gx_sc) = refs
        wihr_ref = None
        xin_sc = None

    Bp = h0_ref.shape[1]          # padded batch   (multiple of 8 sublanes)
    Hp = h0_ref.shape[2]          # padded hidden  (multiple of 128 lanes)
    cdt = x_ref.dtype             # matmul operand dtype (bf16 by default)
    CS = chunk_steps
    n_chunks = seq_len // CS
    rpc = CS * Bp                 # rows per chunk in the (S*Bp, .) layout

    # NOTE: the per-gate lane padding is only correct because the padded
    # columns of h0/c0 are exactly zero (the wrapper zero-pads them); padded
    # gate pre-activations are then 0 and padded hidden lanes stay 0 forever.

    for layer in range(n_layers):                 # static unroll (few layers)
        if layer == 0:
            inp_ref = x_ref
            w_in_ref = wih0_ref
        else:
            # Snapshot the previous layer's output into its own buffer (cast
            # to the compute dtype - intentional bf16 inter-layer activations)
            # so the pipelined projection (reads xin_sc) and the recurrence
            # (writes y_ref) touch disjoint refs.
            xin_sc[...] = y_ref[...].astype(cdt)
            inp_ref = xin_sc
            w_in_ref = wihr_ref.at[layer - 1]
        whh_l_ref = whh_ref.at[layer]
        b_l = b_ref[layer]                        # (1, 4Hp) f32

        def project(chunk_idx, inp_ref=inp_ref, w_in_ref=w_in_ref, b_l=b_l):
            # Hoisted input projection for one chunk of CS time steps:
            # one (CS*Bp, D) @ (D, 4Hp) MXU matmul (+ bias), f32 accumulation.
            r = pl.multiple_of(chunk_idx * rpc, rpc)
            gx_sc[pl.ds(r, rpc), :] = (
                jnp.dot(inp_ref[pl.ds(r, rpc), :], w_in_ref[...],
                        preferred_element_type=jnp.float32) + b_l)

        project(0)

        def chunk_body(k, carry, project=project, whh_l_ref=whh_l_ref):
            h, c = carry

            # Software pipeline: issue the NEXT chunk's input projection (MXU)
            # before this chunk's latency/EUP-bound recurrence so the two
            # overlap (disjoint rows of gx_sc; disjoint input/output refs).
            @pl.when(k + 1 < n_chunks)
            def _():
                project(k + 1)

            def step(t, carry2):
                h, c = carry2
                row = pl.multiple_of((k * CS + t) * Bp, Bp)
                gates = gx_sc[pl.ds(row, Bp), :] + jnp.dot(
                    h.astype(cdt), whh_l_ref[...],
                    preferred_element_type=jnp.float32)
                i_g = _sigmoid_eup(gates[:, 0 * Hp:1 * Hp])
                f_g = _sigmoid_eup(gates[:, 1 * Hp:2 * Hp])
                g_g = jnp.tanh(gates[:, 2 * Hp:3 * Hp])
                o_g = _sigmoid_eup(gates[:, 3 * Hp:4 * Hp])
                c_new = f_g * c + i_g * g_g
                h_new = o_g * jnp.tanh(c_new)
                # f32 (Bp, Hp) lane-dense, unmasked full-tile store; y_ref is
                # also the (pre-cast) input of the next layer.
                y_ref[pl.ds(row, Bp), :] = h_new
                return (h_new, c_new)

            return lax.fori_loop(0, CS, step, (h, c), unroll=inner_unroll)

        hN, cN = lax.fori_loop(0, n_chunks, chunk_body,
                               (h0_ref[layer], c0_ref[layer]))
        hN_ref[layer] = hN
        cN_ref[layer] = cN


def _core_lstm_pallas(x2d, wih0, wihr, whh, bias, h0p, c0p, *,
                      seq_len, b_pad, d_pad, h_pad, compute_dtype):
    n_layers = whh.shape[0]
    multi_layer = n_layers > 1
    chunk_steps = _pick_chunk_steps(seq_len)
    # Guard vreg pressure in the unrolled serial loop (review item 10).
    if h_pad <= 128 and chunk_steps <= 16:
        inner_unroll = True
    elif h_pad <= 256:
        inner_unroll = 4
    else:
        inner_unroll = 2

    kernel = functools.partial(
        core_lstm_kernel, n_layers=n_layers, seq_len=seq_len,
        chunk_steps=chunk_steps, inner_unroll=inner_unroll,
        multi_layer=multi_layer)

    operands = [x2d, wih0]
    if multi_layer:
        operands.append(wihr)
    operands += [whh, bias, h0p, c0p]

    scratch = [pltpu.VMEM((seq_len * b_pad, 4 * h_pad), jnp.float32)]
    if multi_layer:
        scratch.append(pltpu.VMEM((seq_len * b_pad, h_pad), compute_dtype))

    vmem_spec = functools.partial(pl.BlockSpec,
                                  memory_space=pltpu.MemorySpace.VMEM)
    y2d, hN, cN = pl.pallas_call(
        kernel,
        out_shape=(
            jax.ShapeDtypeStruct((seq_len * b_pad, h_pad), jnp.float32),
            jax.ShapeDtypeStruct((n_layers, b_pad, h_pad), jnp.float32),
            jax.ShapeDtypeStruct((n_layers, b_pad, h_pad), jnp.float32),
        ),
        in_specs=[vmem_spec() for _ in operands],
        out_specs=(vmem_spec(), vmem_spec(), vmem_spec()),
        scratch_shapes=scratch,
        compiler_params=pltpu.CompilerParams(
            vmem_limit_bytes=_vmem_limit_bytes(
                seq_len, b_pad, d_pad, h_pad, n_layers, compute_dtype)),
    )(*operands)
    return y2d, hN, cN


# ----------------------------------------------------------------------------
# Parameters + padding / stacking for the fused kernel
# ----------------------------------------------------------------------------
def init_core_params(key, embedding_dim, hidden_dim, n_layers):
    """PyTorch-style LSTM init: U(-1/sqrt(H), 1/sqrt(H)); deterministic."""
    params = []
    bound = 1.0 / np.sqrt(hidden_dim)
    for l in range(n_layers):
        d_in = embedding_dim if l == 0 else hidden_dim
        key, k1, k2, k3, k4 = jax.random.split(key, 5)
        w_ih = jax.random.uniform(k1, (d_in, 4 * hidden_dim),
                                  minval=-bound, maxval=bound, dtype=jnp.float32)
        w_hh = jax.random.uniform(k2, (hidden_dim, 4 * hidden_dim),
                                  minval=-bound, maxval=bound, dtype=jnp.float32)
        b_ih = jax.random.uniform(k3, (4 * hidden_dim,),
                                  minval=-bound, maxval=bound, dtype=jnp.float32)
        b_hh = jax.random.uniform(k4, (4 * hidden_dim,),
                                  minval=-bound, maxval=bound, dtype=jnp.float32)
        params.append((w_ih, w_hh, (b_ih + b_hh)[None, :]))
    return params


def prepare_core_params(params, embedding_dim, hidden_dim, compute_dtype):
    """Pad each gate block to Hp lanes, pad contraction dims to 128, stack."""
    n_layers = len(params)
    H = hidden_dim
    Hp = _round_up(H, 128)
    Dp = _round_up(embedding_dim, 128)

    w_ih0, _, _ = params[0]
    wih0 = _pad_gate_cols(w_ih0, H, Hp)                        # (D, 4Hp)
    wih0 = jnp.pad(wih0, ((0, Dp - embedding_dim), (0, 0)))    # (Dp, 4Hp)

    wihr_list, whh_list, b_list = [], [], []
    for l in range(n_layers):
        w_ih, w_hh, b = params[l]
        whh = _pad_gate_cols(w_hh, H, Hp)
        whh = jnp.pad(whh, ((0, Hp - H), (0, 0)))              # (Hp, 4Hp)
        whh_list.append(whh)
        b_list.append(_pad_gate_cols(b, H, Hp))                # (1, 4Hp)
        if l > 0:
            wr = _pad_gate_cols(w_ih, H, Hp)
            wr = jnp.pad(wr, ((0, Hp - H), (0, 0)))            # (Hp, 4Hp)
            wihr_list.append(wr)

    whh = jnp.stack(whh_list).astype(compute_dtype)            # (L, Hp, 4Hp)
    bias = jnp.stack(b_list).astype(jnp.float32)               # (L, 1, 4Hp)
    # No dummy operand for single-layer LSTMs (skips a useless HBM->VMEM DMA).
    wihr = (jnp.stack(wihr_list).astype(compute_dtype)
            if wihr_list else None)                            # (L-1, Hp, 4Hp)
    wih0 = wih0.astype(compute_dtype)
    return wih0, wihr, whh, bias, Dp, Hp


# ----------------------------------------------------------------------------
# Core forward (glue identical in semantics to the PyTorch module)
# ----------------------------------------------------------------------------
def core_forward(params, embedded_scalar, embedded_entity, embedded_spatial,
                 batch_size, sequence_length, hidden_dim, n_layers,
                 hidden_state=None, compute_dtype=jnp.bfloat16):
    input_tensor = jnp.concatenate(
        [embedded_scalar, embedded_entity, embedded_spatial], axis=-1)
    embedding_dim = input_tensor.shape[-1]
    B, S, H = batch_size, sequence_length, hidden_dim
    x = input_tensor.reshape(B, S, embedding_dim)

    wih0, wihr, whh, bias, Dp, Hp = prepare_core_params(
        params, embedding_dim, H, compute_dtype)
    Bp = _round_up(B, 8)

    if hidden_state is None:
        h0 = jnp.zeros((n_layers, B, H), jnp.float32)
        c0 = jnp.zeros((n_layers, B, H), jnp.float32)
    else:
        h0, c0 = hidden_state
    # Zero padding here is REQUIRED (padded hidden lanes must stay exactly 0).
    h0p = jnp.pad(h0.astype(jnp.float32), ((0, 0), (0, Bp - B), (0, Hp - H)))
    c0p = jnp.pad(c0.astype(jnp.float32), ((0, 0), (0, Bp - B), (0, Hp - H)))

    # time-major, padded, flattened to (S*Bp, Dp)
    x_tm = jnp.transpose(x, (1, 0, 2))
    x_tm = jnp.pad(x_tm, ((0, 0), (0, Bp - B), (0, Dp - embedding_dim)))
    x2d = x_tm.reshape(S * Bp, Dp).astype(compute_dtype)

    y2d, hN, cN = _core_lstm_pallas(
        x2d, wih0, wihr, whh, bias, h0p, c0p,
        seq_len=S, b_pad=Bp, d_pad=Dp, h_pad=Hp, compute_dtype=compute_dtype)

    y = y2d.reshape(S, Bp, Hp)[:, :B, :H]                       # (S, B, H) f32
    lstm_output = jnp.transpose(y, (1, 0, 2)).reshape(B * S, H)
    next_state = (hN[:, :B, :H], cN[:, :B, :H])
    return lstm_output, next_state


# ----------------------------------------------------------------------------
# Pure-JAX reference (lax.scan LSTM) for correctness checking
# ----------------------------------------------------------------------------
def lstm_layer_ref(x_sbd, w_ih, w_hh, bias, h0, c0):
    H = h0.shape[-1]

    def step(carry, x_t):
        h, c = carry
        gates = x_t @ w_ih + h @ w_hh + bias
        i_g = jax.nn.sigmoid(gates[:, 0 * H:1 * H])
        f_g = jax.nn.sigmoid(gates[:, 1 * H:2 * H])
        g_g = jnp.tanh(gates[:, 2 * H:3 * H])
        o_g = jax.nn.sigmoid(gates[:, 3 * H:4 * H])
        c_new = f_g * c + i_g * g_g
        h_new = o_g * jnp.tanh(c_new)
        return (h_new, c_new), h_new

    (hN, cN), y = lax.scan(step, (h0, c0), x_sbd)
    return y, hN, cN


def core_forward_ref(params, s, e, sp, B, S, H, L):
    x = jnp.concatenate([s, e, sp], axis=-1).reshape(B, S, -1)
    x_sbd = jnp.transpose(x, (1, 0, 2))
    hs, cs = [], []
    for l in range(L):
        w_ih, w_hh, bias = params[l]
        x_sbd, hN, cN = lstm_layer_ref(x_sbd, w_ih, w_hh, bias,
                                       jnp.zeros((B, H), jnp.float32),
                                       jnp.zeros((B, H), jnp.float32))
        hs.append(hN)
        cs.append(cN)
    out = jnp.transpose(x_sbd, (1, 0, 2)).reshape(B * S, H)
    return out, (jnp.stack(hs), jnp.stack(cs))


# ----------------------------------------------------------------------------
if __name__ == "__main__":
    batch_size = 2
    sequence_length = 8
    scalar_dim, entity_dim, spatial_dim = 16, 32, 16       # embedding_dim = 64
    embedding_dim = scalar_dim + entity_dim + spatial_dim
    hidden_dim = 32
    n_layers = 2

    key = jax.random.PRNGKey(0)
    kp, k1, k2, k3 = jax.random.split(key, 4)
    params = init_core_params(kp, embedding_dim, hidden_dim, n_layers)

    BS = batch_size * sequence_length
    embedded_scalar = jax.random.normal(k1, (BS, scalar_dim), jnp.float32)
    embedded_entity = jax.random.normal(k2, (BS, entity_dim), jnp.float32)
    embedded_spatial = jax.random.normal(k3, (BS, spatial_dim), jnp.float32)

    # reference (pure JAX, f32)
    ref_out, (ref_h, ref_c) = core_forward_ref(
        params, embedded_scalar, embedded_entity, embedded_spatial,
        batch_size, sequence_length, hidden_dim, n_layers)

    # --- f32 compute path: tight check ---
    lstm_output, (h_n, c_n) = core_forward(
        params, embedded_scalar, embedded_entity, embedded_spatial,
        batch_size, sequence_length, hidden_dim, n_layers,
        compute_dtype=jnp.float32)
    jax.block_until_ready((lstm_output, h_n, c_n))

    assert lstm_output.shape == (BS, hidden_dim)
    assert h_n.shape == (n_layers, batch_size, hidden_dim)
    assert c_n.shape == (n_layers, batch_size, hidden_dim)
    np.testing.assert_allclose(np.asarray(lstm_output), np.asarray(ref_out),
                               rtol=1e-4, atol=1e-4)
    np.testing.assert_allclose(np.asarray(h_n), np.asarray(ref_h),
                               rtol=1e-4, atol=1e-4)
    np.testing.assert_allclose(np.asarray(c_n), np.asarray(ref_c),
                               rtol=1e-4, atol=1e-4)

    # --- default bf16 MXU path (f32 accumulation, f32 gate math/stores):
    #     loose sanity check (intentional bf16 weights/activations) ---
    out_bf16, (h_bf16, c_bf16) = core_forward(
        params, embedded_scalar, embedded_entity, embedded_spatial,
        batch_size, sequence_length, hidden_dim, n_layers)
    jax.block_until_ready((out_bf16, h_bf16, c_bf16))
    np.testing.assert_allclose(np.asarray(out_bf16), np.asarray(ref_out),
                               rtol=1e-1, atol=1e-1)
    np.testing.assert_allclose(np.asarray(h_bf16), np.asarray(ref_h),
                               rtol=1e-1, atol=1e-1)

    print("KERNEL_OK")
</pallas_src>

<mosaic_0001>
module attributes {stable_mosaic.version = 11 : i64} {
  func.func @core_lstm_kernel(%arg0: memref<64x128xf32, #tpu.memory_space<vmem>>, %arg1: memref<128x512xf32, #tpu.memory_space<vmem>>, %arg2: memref<1x128x512xf32, #tpu.memory_space<vmem>>, %arg3: memref<2x128x512xf32, #tpu.memory_space<vmem>>, %arg4: memref<2x1x512xf32, #tpu.memory_space<vmem>>, %arg5: memref<2x8x128xf32, #tpu.memory_space<vmem>>, %arg6: memref<2x8x128xf32, #tpu.memory_space<vmem>>, %arg7: memref<64x128xf32, #tpu.memory_space<vmem>>, %arg8: memref<2x8x128xf32, #tpu.memory_space<vmem>>, %arg9: memref<2x8x128xf32, #tpu.memory_space<vmem>>, %arg10: memref<64x512xf32, #tpu.memory_space<vmem>>, %arg11: memref<64x128xf32, #tpu.memory_space<vmem>>) attributes {dimension_semantics = [], scalar_prefetch = 0 : i64, scratch_operands = 2 : i64, tpu.core_type = #tpu.core_type<tc>} {
    %c0 = arith.constant 0 : index
    %c0_0 = arith.constant 0 : index
    %c0_1 = arith.constant 0 : index
    %0 = vector.load %arg4[%c0, %c0_0, %c0_1] : memref<2x1x512xf32, #tpu.memory_space<vmem>>, vector<1x1x512xf32>
    %1 = vector.shape_cast %0 : vector<1x1x512xf32> to vector<1x512xf32>
    %c0_i32 = arith.constant 0 : i32
    %2 = tpu.assume_multiple %c0_i32, 32 : i32
    %3 = arith.index_cast %2 : i32 to index
    %c0_2 = arith.constant 0 : index
    %4 = vector.load %arg0[%3, %c0_2] : memref<64x128xf32, #tpu.memory_space<vmem>>, vector<32x128xf32>
    %c0_3 = arith.constant 0 : index
    %c0_4 = arith.constant 0 : index
    %5 = vector.load %arg1[%c0_3, %c0_4] : memref<128x512xf32, #tpu.memory_space<vmem>>, vector<128x512xf32>
    %cst = arith.constant dense<0.000000e+00> : vector<32x512xf32>
    %6 = tpu.matmul %4, %5, %cst {dimension_numbers = #tpu.dot_dimension_numbers<[1], [0], [0], [1], [0, 0, 1, 1], [], []>} : vector<32x128xf32>, vector<128x512xf32>, vector<32x512xf32> -> vector<32x512xf32>
    %7 = vector.broadcast %1 : vector<1x512xf32> to vector<32x512xf32>
    %8 = arith.addf %6, %7 : vector<32x512xf32>
    %9 = arith.index_cast %2 : i32 to index
    %c0_5 = arith.constant 0 : index
    %10 = vector.load %arg10[%9, %c0_5] : memref<64x512xf32, #tpu.memory_space<vmem>>, vector<32x512xf32>
    tpu.vector_store %arg10[%9, %c0_5], %8 {strides = array<i32>} : memref<64x512xf32, #tpu.memory_space<vmem>>, vector<32x512xf32>,
    %c0_6 = arith.constant 0 : index
    %c0_7 = arith.constant 0 : index
    %c0_8 = arith.constant 0 : index
    %11 = vector.load %arg5[%c0_6, %c0_7, %c0_8] : memref<2x8x128xf32, #tpu.memory_space<vmem>>, vector<1x8x128xf32>
    %12 = vector.shape_cast %11 : vector<1x8x128xf32> to vector<8x128xf32>
    %c0_9 = arith.constant 0 : index
    %c0_10 = arith.constant 0 : index
    %c0_11 = arith.constant 0 : index
    %13 = vector.load %arg6[%c0_9, %c0_10, %c0_11] : memref<2x8x128xf32, #tpu.memory_space<vmem>>, vector<1x8x128xf32>
    %14 = vector.shape_cast %13 : vector<1x8x128xf32> to vector<8x128xf32>
    %c0_i32_12 = arith.constant 0 : i32
    %c0_i32_13 = arith.constant 0 : i32
    %c2_i32 = arith.constant 2 : i32
    %15 = arith.addi %c0_i32_13, %c2_i32 : i32
    %c1_i32 = arith.constant 1 : i32
    %16:2 = scf.for %arg12 = %c0_i32_13 to %15 step %c1_i32 iter_args(%arg13 = %12, %arg14 = %14) -> (vector<8x128xf32>, vector<8x128xf32>)  : i32 {
      %c1_i32_52 = arith.constant 1 : i32
      %49 = arith.addi %arg12, %c1_i32_52 : i32
      %c2_i32_53 = arith.constant 2 : i32
      %50 = arith.cmpi slt, %49, %c2_i32_53 : i32
      %51 = arith.extui %50 : i1 to i32
      %c0_i32_54 = arith.constant 0 : i32
      %52 = arith.cmpi ne, %51, %c0_i32_54 : i32
      scf.if %52 {
        %c1_i32_121 = arith.constant 1 : i32
        %229 = arith.addi %arg12, %c1_i32_121 : i32
        %c32_i32 = arith.constant 32 : i32
        %230 = arith.muli %229, %c32_i32 : i32
        %231 = tpu.assume_multiple %230, 32 : i32
        %232 = arith.index_cast %231 : i32 to index
        %c0_122 = arith.constant 0 : index
        %233 = vector.load %arg0[%232, %c0_122] : memref<64x128xf32, #tpu.memory_space<vmem>>, vector<32x128xf32>
        %c0_123 = arith.constant 0 : index
        %c0_124 = arith.constant 0 : index
        %234 = vector.load %arg1[%c0_123, %c0_124] : memref<128x512xf32, #tpu.memory_space<vmem>>, vector<128x512xf32>
        %cst_125 = arith.constant dense<0.000000e+00> : vector<32x512xf32>
        %235 = tpu.matmul %233, %234, %cst_125 {dimension_numbers = #tpu.dot_dimension_numbers<[1], [0], [0], [1], [0, 0, 1, 1], [], []>} : vector<32x128xf32>, vector<128x512xf32>, vector<32x512xf32> -> vector<32x512xf32>
        %236 = vector.broadcast %1 : vector<1x512xf32> to vector<32x512xf32>
        %237 = arith.addf %235, %236 : vector<32x512xf32>
        %238 = arith.index_cast %231 : i32 to index
        %c0_126 = arith.constant 0 : index
        %239 = vector.load %arg10[%238, %c0_126] : memref<64x512xf32, #tpu.memory_space<vmem>>, vector<32x512xf32>
        tpu.vector_store %arg10[%238, %c0_126], %237 {strides = array<i32>} : memref<64x512xf32, #tpu.memory_space<vmem>>, vector<32x512xf32>,
      } else {
      }
      %c0_i32_55 = arith.constant 0 : i32
      %c4_i32 = arith.constant 4 : i32
      %53 = arith.muli %arg12, %c4_i32 : i32
      %54 = arith.addi %53, %c0_i32_55 : i32
      %c8_i32 = arith.constant 8 : i32
      %55 = arith.muli %54, %c8_i32 : i32
      %56 = tpu.assume_multiple %55, 8 : i32
      %57 = arith.index_cast %56 : i32 to index
      %c0_56 = arith.constant 0 : index
      %58 = vector.load %arg10[%57, %c0_56] : memref<64x512xf32, #tpu.memory_space<vmem>>, vector<8x512xf32>
      %59 = arith.index_cast %c0_i32_12 : i32 to index
      %c0_57 = arith.constant 0 : index
      %c0_58 = arith.constant 0 : index
      %60 = vector.load %arg3[%59, %c0_57, %c0_58] : memref<2x128x512xf32, #tpu.memory_space<vmem>>, vector<1x128x512xf32>
      %61 = vector.shape_cast %60 : vector<1x128x512xf32> to vector<128x512xf32>
      %cst_59 = arith.constant dense<0.000000e+00> : vector<8x512xf32>
      %62 = tpu.matmul %arg13, %61, %cst_59 {dimension_numbers = #tpu.dot_dimension_numbers<[1], [0], [0], [1], [0, 0, 1, 1], [], []>} : vector<8x128xf32>, vector<128x512xf32>, vector<8x512xf32> -> vector<8x512xf32>
      %63 = arith.addf %58, %62 : vector<8x512xf32>
      %64 = vector.extract_strided_slice %63 {offsets = [0, 0], sizes = [8, 128], strides = [1, 1]} : vector<8x512xf32> to vector<8x128xf32>
      %cst_60 = arith.constant 5.000000e-01 : f32
      %65 = vector.broadcast %cst_60 : f32 to vector<8x128xf32>
      %66 = arith.mulf %65, %64 : vector<8x128xf32>
      %67 = math.tanh %66 : vector<8x128xf32>
      %cst_61 = arith.constant 5.000000e-01 : f32
      %68 = vector.broadcast %cst_61 : f32 to vector<8x128xf32>
      %69 = arith.mulf %68, %67 : vector<8x128xf32>
      %cst_62 = arith.constant 5.000000e-01 : f32
      %70 = vector.broadcast %cst_62 : f32 to vector<8x128xf32>
      %71 = arith.addf %69, %70 : vector<8x128xf32>
      %72 = vector.extract_strided_slice %63 {offsets = [0, 128], sizes = [8, 128], strides = [1, 1]} : vector<8x512xf32> to vector<8x128xf32>
      %cst_63 = arith.constant 5.000000e-01 : f32
      %73 = vector.broadcast %cst_63 : f32 to vector<8x128xf32>
      %74 = arith.mulf %73, %72 : vector<8x128xf32>
      %75 = math.tanh %74 : vector<8x128xf32>
      %cst_64 = arith.constant 5.000000e-01 : f32
      %76 = vector.broadcast %cst_64 : f32 to vector<8x128xf32>
      %77 = arith.mulf %76, %75 : vector<8x128xf32>
      %cst_65 = arith.constant 5.000000e-01 : f32
      %78 = vector.broadcast %cst_65 : f32 to vector<8x128xf32>
      %79 = arith.addf %77, %78 : vector<8x128xf32>
      %80 = vector.extract_strided_slice %63 {offsets = [0, 256], sizes = [8, 128], strides = [1, 1]} : vector<8x512xf32> to vector<8x128xf32>
      %81 = math.tanh %80 : vector<8x128xf32>
      %82 = vector.extract_strided_slice %63 {offsets = [0, 384], sizes = [8, 128], strides = [1, 1]} : vector<8x512xf32> to vector<8x128xf32>
      %cst_66 = arith.constant 5.000000e-01 : f32
      %83 = vector.broadcast %cst_66 : f32 to vector<8x128xf32>
      %84 = arith.mulf %83, %82 : vector<8x128xf32>
      %85 = math.tanh %84 : vector<8x128xf32>
      %cst_67 = arith.constant 5.000000e-01 : f32
      %86 = vector.broadcast %cst_67 : f32 to vector<8x128xf32>
      %87 = arith.mulf %86, %85 : vector<8x128xf32>
      %cst_68 = arith.constant 5.000000e-01 : f32
      %88 = vector.broadcast %cst_68 : f32 to vector<8x128xf32>
      %89 = arith.addf %87, %88 : vector<8x128xf32>
      %90 = arith.mulf %79, %arg14 : vector<8x128xf32>
      %91 = arith.mulf %71, %81 : vector<8x128xf32>
      %92 = arith.addf %90, %91 : vector<8x128xf32>
      %93 = math.tanh %92 : vector<8x128xf32>
      %94 = arith.mulf %89, %93 : vector<8x128xf32>
      %95 = arith.index_cast %56 : i32 to index
      %c0_69 = arith.constant 0 : index
      %96 = vector.load %arg7[%95, %c0_69] : memref<64x128xf32, #tpu.memory_space<vmem>>, vector<8x128xf32>
      tpu.vector_store %arg7[%95, %c0_69], %94 {strides = array<i32>} : memref<64x128xf32, #tpu.memory_space<vmem>>, vector<8x128xf32>,
      %c1_i32_70 = arith.constant 1 : i32
      %c4_i32_71 = arith.constant 4 : i32
      %97 = arith.muli %arg12, %c4_i32_71 : i32
      %98 = arith.addi %97, %c1_i32_70 : i32
      %c8_i32_72 = arith.constant 8 : i32
      %99 = arith.muli %98, %c8_i32_72 : i32
      %100 = tpu.assume_multiple %99, 8 : i32
      %101 = arith.index_cast %100 : i32 to index
      %c0_73 = arith.constant 0 : index
      %102 = vector.load %arg10[%101, %c0_73] : memref<64x512xf32, #tpu.memory_space<vmem>>, vector<8x512xf32>
      %103 = arith.index_cast %c0_i32_12 : i32 to index
      %c0_74 = arith.constant 0 : index
      %c0_75 = arith.constant 0 : index
      %104 = vector.load %arg3[%103, %c0_74, %c0_75] : memref<2x128x512xf32, #tpu.memory_space<vmem>>, vector<1x128x512xf32>
      %105 = vector.shape_cast %104 : vector<1x128x512xf32> to vector<128x512xf32>
      %cst_76 = arith.constant dense<0.000000e+00> : vector<8x512xf32>
      %106 = tpu.matmul %94, %105, %cst_76 {dimension_numbers = #tpu.dot_dimension_numbers<[1], [0], [0], [1], [0, 0, 1, 1], [], []>} : vector<8x128xf32>, vector<128x512xf32>, vector<8x512xf32> -> vector<8x512xf32>
      %107 = arith.addf %102, %106 : vector<8x512xf32>
      %108 = vector.extract_strided_slice %107 {offsets = [0, 0], sizes = [8, 128], strides = [1, 1]} : vector<8x512xf32> to vector<8x128xf32>
      %cst_77 = arith.constant 5.000000e-01 : f32
      %109 = vector.broadcast %cst_77 : f32 to vector<8x128xf32>
      %110 = arith.mulf %109, %108 : vector<8x128xf32>
      %111 = math.tanh %110 : vector<8x128xf32>
      %cst_78 = arith.constant 5.000000e-01 : f32
      %112 = vector.broadcast %cst_78 : f32 to vector<8x128xf32>
      %113 = arith.mulf %112, %111 : vector<8x128xf32>
      %cst_79 = arith.constant 5.000000e-01 : f32
      %114 = vector.broadcast %cst_79 : f32 to vector<8x128xf32>
      %115 = arith.addf %113, %114 : vector<8x128xf32>
      %116 = vector.extract_strided_slice %107 {offsets = [0, 128], sizes = [8, 128], strides = [1, 1]} : vector<8x512xf32> to vector<8x128xf32>
      %cst_80 = arith.constant 5.000000e-01 : f32
      %117 = vector.broadcast %cst_80 : f32 to vector<8x128xf32>
      %118 = arith.mulf %117, %116 : vector<8x128xf32>
      %119 = math.tanh %118 : vector<8x128xf32>
      %cst_81 = arith.constant 5.000000e-01 : f32
      %120 = vector.broadcast %cst_81 : f32 to vector<8x128xf32>
      %121 = arith.mulf %120, %119 : vector<8x128xf32>
      %cst_82 = arith.constant 5.000000e-01 : f32
      %122 = vector.broadcast %cst_82 : f32 to vector<8x128xf32>
      %123 = arith.addf %121, %122 : vector<8x128xf32>
      %124 = vector.extract_strided_slice %107 {offsets = [0, 256], sizes = [8, 128], strides = [1, 1]} : vector<8x512xf32> to vector<8x128xf32>
      %125 = math.tanh %124 : vector<8x128xf32>
      %126 = vector.extract_strided_slice %107 {offsets = [0, 384], sizes = [8, 128], strides = [1, 1]} : vector<8x512xf32> to vector<8x128xf32>
      %cst_83 = arith.constant 5.000000e-01 : f32
      %127 = vector.broadcast %cst_83 : f32 to vector<8x128xf32>
      %128 = arith.mulf %127, %126 : vector<8x128xf32>
      %129 = math.tanh %128 : vector<8x128xf32>
      %cst_84 = arith.constant 5.000000e-01 : f32
      %130 = vector.broadcast %cst_84 : f32 to vector<8x128xf32>
      %131 = arith.mulf %130, %129 : vector<8x128xf32>
      %cst_85 = arith.constant 5.000000e-01 : f32
      %132 = vector.broadcast %cst_85 : f32 to vector<8x128xf32>
      %133 = arith.addf %131, %132 : vector<8x128xf32>
      %134 = arith.mulf %123, %92 : vector<8x128xf32>
      %135 = arith.mulf %115, %125 : vector<8x128xf32>
      %136 = arith.addf %134, %135 : vector<8x128xf32>
      %137 = math.tanh %136 : vector<8x128xf32>
      %138 = arith.mulf %133, %137 : vector<8x128xf32>
      %139 = arith.index_cast %100 : i32 to index
      %c0_86 = arith.constant 0 : index
      %140 = vector.load %arg7[%139, %c0_86] : memref<64x128xf32, #tpu.memory_space<vmem>>, vector<8x128xf32>
      tpu.vector_store %arg7[%139, %c0_86], %138 {strides = array<i32>} : memref<64x128xf32, #tpu.memory_space<vmem>>, vector<8x128xf32>,
      %c2_i32_87 = arith.constant 2 : i32
      %c4_i32_88 = arith.constant 4 : i32
      %141 = arith.muli %arg12, %c4_i32_88 : i32
      %142 = arith.addi %141, %c2_i32_87 : i32
      %c8_i32_89 = arith.constant 8 : i32
      %143 = arith.muli %142, %c8_i32_89 : i32
      %144 = tpu.assume_multiple %143, 8 : i32
      %145 = arith.index_cast %144 : i32 to index
      %c0_90 = arith.constant 0 : index
      %146 = vector.load %arg10[%145, %c0_90] : memref<64x512xf32, #tpu.memory_space<vmem>>, vector<8x512xf32>
      %147 = arith.index_cast %c0_i32_12 : i32 to index
      %c0_91 = arith.constant 0 : index
      %c0_92 = arith.constant 0 : index
      %148 = vector.load %arg3[%147, %c0_91, %c0_92] : memref<2x128x512xf32, #tpu.memory_space<vmem>>, vector<1x128x512xf32>
      %149 = vector.shape_cast %148 : vector<1x128x512xf32> to vector<128x512xf32>
      %cst_93 = arith.constant dense<0.000000e+00> : vector<8x512xf32>
      %150 = tpu.matmul %138, %149, %cst_93 {dimension_numbers = #tpu.dot_dimension_numbers<[1], [0], [0], [1], [0, 0, 1, 1], [], []>} : vector<8x128xf32>, vector<128x512xf32>, vector<8x512xf32> -> vector<8x512xf32>
      %151 = arith.addf %146, %150 : vector<8x512xf32>
      %152 = vector.extract_strided_slice %151 {offsets = [0, 0], sizes = [8, 128], strides = [1, 1]} : vector<8x512xf32> to vector<8x128xf32>
      %cst_94 = arith.constant 5.000000e-01 : f32
      %153 = vector.broadcast %cst_94 : f32 to vector<8x128xf32>
      %154 = arith.mulf %153, %152 : vector<8x128xf32>
      %155 = math.tanh %154 : vector<8x128xf32>
      %cst_95 = arith.constant 5.000000e-01 : f32
      %156 = vector.broadcast %cst_95 : f32 to vector<8x128xf32>
      %157 = arith.mulf %156, %155 : vector<8x128xf32>
      %cst_96 = arith.constant 5.000000e-01 : f32
      %158 = vector.broadcast %cst_96 : f32 to vector<8x128xf32>
      %159 = arith.addf %157, %158 : vector<8x128xf32>
      %160 = vector.extract_strided_slice %151 {offsets = [0, 128], sizes = [8, 128], strides = [1, 1]} : vector<8x512xf32> to vector<8x128xf32>
      %cst_97 = arith.constant 5.000000e-01 : f32
      %161 = vector.broadcast %cst_97 : f32 to vector<8x128xf32>
      %162 = arith.mulf %161, %160 : vector<8x128xf32>
      %163 = math.tanh %162 : vector<8x128xf32>
      %cst_98 = arith.constant 5.000000e-01 : f32
      %164 = vector.broadcast %cst_98 : f32 to vector<8x128xf32>
      %165 = arith.mulf %164, %163 : vector<8x128xf32>
      %cst_99 = arith.constant 5.000000e-01 : f32
      %166 = vector.broadcast %cst_99 : f32 to vector<8x128xf32>
      %167 = arith.addf %165, %166 : vector<8x128xf32>
      %168 = vector.extract_strided_slice %151 {offsets = [0, 256], sizes = [8, 128], strides = [1, 1]} : vector<8x512xf32> to vector<8x128xf32>
      %169 = math.tanh %168 : vector<8x128xf32>
      %170 = vector.extract_strided_slice %151 {offsets = [0, 384], sizes = [8, 128], strides = [1, 1]} : vector<8x512xf32> to vector<8x128xf32>
      %cst_100 = arith.constant 5.000000e-01 : f32
      %171 = vector.broadcast %cst_100 : f32 to vector<8x128xf32>
      %172 = arith.mulf %171, %170 : vector<8x128xf32>
      %173 = math.tanh %172 : vector<8x128xf32>
      %cst_101 = arith.constant 5.000000e-01 : f32
      %174 = vector.broadcast %cst_101 : f32 to vector<8x128xf32>
      %175 = arith.mulf %174, %173 : vector<8x128xf32>
      %cst_102 = arith.constant 5.000000e-01 : f32
      %176 = vector.broadcast %cst_102 : f32 to vector<8x128xf32>
      %177 = arith.addf %175, %176 : vector<8x128xf32>
      %178 = arith.mulf %167, %136 : vector<8x128xf32>
      %179 = arith.mulf %159, %169 : vector<8x128xf32>
      %180 = arith.addf %178, %179 : vector<8x128xf32>
      %181 = math.tanh %180 : vector<8x128xf32>
      %182 = arith.mulf %177, %181 : vector<8x128xf32>
      %183 = arith.index_cast %144 : i32 to index
      %c0_103 = arith.constant 0 : index
      %184 = vector.load %arg7[%183, %c0_103] : memref<64x128xf32, #tpu.memory_space<vmem>>, vector<8x128xf32>
      tpu.vector_store %arg7[%183, %c0_103], %182 {strides = array<i32>} : memref<64x128xf32, #tpu.memory_space<vmem>>, vector<8x128xf32>,
      %c3_i32 = arith.constant 3 : i32
      %c4_i32_104 = arith.constant 4 : i32
      %185 = arith.muli %arg12, %c4_i32_104 : i32
      %186 = arith.addi %185, %c3_i32 : i32
      %c8_i32_105 = arith.constant 8 : i32
      %187 = arith.muli %186, %c8_i32_105 : i32
      %188 = tpu.assume_multiple %187, 8 : i32
      %189 = arith.index_cast %188 : i32 to index
      %c0_106 = arith.constant 0 : index
      %190 = vector.load %arg10[%189, %c0_106] : memref<64x512xf32, #tpu.memory_space<vmem>>, vector<8x512xf32>
      %191 = arith.index_cast %c0_i32_12 : i32 to index
      %c0_107 = arith.constant 0 : index
      %c0_108 = arith.constant 0 : index
      %192 = vector.load %arg3[%191, %c0_107, %c0_108] : memref<2x128x512xf32, #tpu.memory_space<vmem>>, vector<1x128x512xf32>
      %193 = vector.shape_cast %192 : vector<1x128x512xf32> to vector<128x512xf32>
      %cst_109 = arith.constant dense<0.000000e+00> : vector<8x512xf32>
      %194 = tpu.matmul %182, %193, %cst_109 {dimension_numbers = #tpu.dot_dimension_numbers<[1], [0], [0], [1], [0, 0, 1, 1], [], []>} : vector<8x128xf32>, vector<128x512xf32>, vector<8x512xf32> -> vector<8x512xf32>
      %195 = arith.addf %190, %194 : vector<8x512xf32>
      %196 = vector.extract_strided_slice %195 {offsets = [0, 0], sizes = [8, 128], strides = [1, 1]} : vector<8x512xf32> to vector<8x128xf32>
      %cst_110 = arith.constant 5.000000e-01 : f32
      %197 = vector.broadcast %cst_110 : f32 to vector<8x128xf32>
      %198 = arith.mulf %197, %196 : vector<8x128xf32>
      %199 = math.tanh %198 : vector<8x128xf32>
      %cst_111 = arith.constant 5.000000e-01 : f32
      %200 = vector.broadcast %cst_111 : f32 to vector<8x128xf32>
      %201 = arith.mulf %200, %199 : vector<8x128xf32>
      %cst_112 = arith.constant 5.000000e-01 : f32
      %202 = vector.broadcast %cst_112 : f32 to vector<8x128xf32>
      %203 = arith.addf %201, %202 : vector<8x128xf32>
      %204 = vector.extract_strided_slice %195 {offsets = [0, 128], sizes = [8, 128], strides = [1, 1]} : vector<8x512xf32> to vector<8x128xf32>
      %cst_113 = arith.constant 5.000000e-01 : f32
      %205 = vector.broadcast %cst_113 : f32 to vector<8x128xf32>
      %206 = arith.mulf %205, %204 : vector<8x128xf32>
      %207 = math.tanh %206 : vector<8x128xf32>
      %cst_114 = arith.constant 5.000000e-01 : f32
      %208 = vector.broadcast %cst_114 : f32 to vector<8x128xf32>
      %209 = arith.mulf %208, %207 : vector<8x128xf32>
      %cst_115 = arith.constant 5.000000e-01 : f32
      %210 = vector.broadcast %cst_115 : f32 to vector<8x128xf32>
      %211 = arith.addf %209, %210 : vector<8x128xf32>
      %212 = vector.extract_strided_slice %195 {offsets = [0, 256], sizes = [8, 128], strides = [1, 1]} : vector<8x512xf32> to vector<8x128xf32>
      %213 = math.tanh %212 : vector<8x128xf32>
      %214 = vector.extract_strided_slice %195 {offsets = [0, 384], sizes = [8, 128], strides = [1, 1]} : vector<8x512xf32> to vector<8x128xf32>
      %cst_116 = arith.constant 5.000000e-01 : f32
      %215 = vector.broadcast %cst_116 : f32 to vector<8x128xf32>
      %216 = arith.mulf %215, %214 : vector<8x128xf32>
      %217 = math.tanh %216 : vector<8x128xf32>
      %cst_117 = arith.constant 5.000000e-01 : f32
      %218 = vector.broadcast %cst_117 : f32 to vector<8x128xf32>
      %219 = arith.mulf %218, %217 : vector<8x128xf32>
      %cst_118 = arith.constant 5.000000e-01 : f32
      %220 = vector.broadcast %cst_118 : f32 to vector<8x128xf32>
      %221 = arith.addf %219, %220 : vector<8x128xf32>
      %222 = arith.mulf %211, %180 : vector<8x128xf32>
      %223 = arith.mulf %203, %213 : vector<8x128xf32>
      %224 = arith.addf %222, %223 : vector<8x128xf32>
      %225 = math.tanh %224 : vector<8x128xf32>
      %226 = arith.mulf %221, %225 : vector<8x128xf32>
      %227 = arith.index_cast %188 : i32 to index
      %c0_119 = arith.constant 0 : index
      %228 = vector.load %arg7[%227, %c0_119] : memref<64x128xf32, #tpu.memory_space<vmem>>, vector<8x128xf32>
      tpu.vector_store %arg7[%227, %c0_119], %226 {strides = array<i32>} : memref<64x128xf32, #tpu.memory_space<vmem>>, vector<8x128xf32>,
      %c4_i32_120 = arith.constant 4 : i32
      scf.yield %226, %224 : vector<8x128xf32>, vector<8x128xf32>
    }
    %c2_i32_14 = arith.constant 2 : i32
    %c0_15 = arith.constant 0 : index
    %c0_16 = arith.constant 0 : index
    %c0_17 = arith.constant 0 : index
    %17 = vector.load %arg8[%c0_15, %c0_16, %c0_17] : memref<2x8x128xf32, #tpu.memory_space<vmem>>, vector<1x8x128xf32>
    %18 = vector.shape_cast %17 : vector<1x8x128xf32> to vector<8x128xf32>
    %19 = vector.shape_cast %16#0 : vector<8x128xf32> to vector<1x8x128xf32>
    tpu.vector_store %arg8[%c0_15, %c0_16, %c0_17], %19 {strides = array<i32>} : memref<2x8x128xf32, #tpu.memory_space<vmem>>, vector<1x8x128xf32>,
    %c0_18 = arith.constant 0 : index
    %c0_19 = arith.constant 0 : index
    %c0_20 = arith.constant 0 : index
    %20 = vector.load %arg9[%c0_18, %c0_19, %c0_20] : memref<2x8x128xf32, #tpu.memory_space<vmem>>, vector<1x8x128xf32>
    %21 = vector.shape_cast %20 : vector<1x8x128xf32> to vector<8x128xf32>
    %22 = vector.shape_cast %16#1 : vector<8x128xf32> to vector<1x8x128xf32>
    tpu.vector_store %arg9[%c0_18, %c0_19, %c0_20], %22 {strides = array<i32>} : memref<2x8x128xf32, #tpu.memory_space<vmem>>, vector<1x8x128xf32>,
    %c0_21 = arith.constant 0 : index
    %c0_22 = arith.constant 0 : index
    %23 = vector.load %arg7[%c0_21, %c0_22] : memref<64x128xf32, #tpu.memory_space<vmem>>, vector<64x128xf32>
    %c0_23 = arith.constant 0 : index
    %c0_24 = arith.constant 0 : index
    %24 = vector.load %arg11[%c0_23, %c0_24] : memref<64x128xf32, #tpu.memory_space<vmem>>, vector<64x128xf32>
    tpu.vector_store %arg11[%c0_23, %c0_24], %23 {strides = array<i32>} : memref<64x128xf32, #tpu.memory_space<vmem>>, vector<64x128xf32>,
    %c1 = arith.constant 1 : index
    %c0_25 = arith.constant 0 : index
    %c0_26 = arith.constant 0 : index
    %25 = vector.load %arg4[%c1, %c0_25, %c0_26] : memref<2x1x512xf32, #tpu.memory_space<vmem>>, vector<1x1x512xf32>
    %26 = vector.shape_cast %25 : vector<1x1x512xf32> to vector<1x512xf32>
    %c0_i32_27 = arith.constant 0 : i32
    %27 = tpu.assume_multiple %c0_i32_27, 32 : i32
    %28 = arith.index_cast %27 : i32 to index
    %c0_28 = arith.constant 0 : index
    %29 = vector.load %arg11[%28, %c0_28] : memref<64x128xf32, #tpu.memory_space<vmem>>, vector<32x128xf32>
    %c0_29 = arith.constant 0 : index
    %c0_30 = arith.constant 0 : index
    %c0_31 = arith.constant 0 : index
    %30 = vector.load %arg2[%c0_29, %c0_30, %c0_31] : memref<1x128x512xf32, #tpu.memory_space<vmem>>, vector<1x128x512xf32>
    %31 = vector.shape_cast %30 : vector<1x128x512xf32> to vector<128x512xf32>
    %cst_32 = arith.constant dense<0.000000e+00> : vector<32x512xf32>
    %32 = tpu.matmul %29, %31, %cst_32 {dimension_numbers = #tpu.dot_dimension_numbers<[1], [0], [0], [1], [0, 0, 1, 1], [], []>} : vector<32x128xf32>, vector<128x512xf32>, vector<32x512xf32> -> vector<32x512xf32>
    %33 = vector.broadcast %26 : vector<1x512xf32> to vector<32x512xf32>
    %34 = arith.addf %32, %33 : vector<32x512xf32>
    %35 = arith.index_cast %27 : i32 to index
    %c0_33 = arith.constant 0 : index
    %36 = vector.load %arg10[%35, %c0_33] : memref<64x512xf32, #tpu.memory_space<vmem>>, vector<32x512xf32>
    tpu.vector_store %arg10[%35, %c0_33], %34 {strides = array<i32>} : memref<64x512xf32, #tpu.memory_space<vmem>>, vector<32x512xf32>,
    %c1_34 = arith.constant 1 : index
    %c0_35 = arith.constant 0 : index
    %c0_36 = arith.constant 0 : index
    %37 = vector.load %arg5[%c1_34, %c0_35, %c0_36] : memref<2x8x128xf32, #tpu.memory_space<vmem>>, vector<1x8x128xf32>
    %38 = vector.shape_cast %37 : vector<1x8x128xf32> to vector<8x128xf32>
    %c1_37 = arith.constant 1 : index
    %c0_38 = arith.constant 0 : index
    %c0_39 = arith.constant 0 : index
    %39 = vector.load %arg6[%c1_37, %c0_38, %c0_39] : memref<2x8x128xf32, #tpu.memory_space<vmem>>, vector<1x8x128xf32>
    %40 = vector.shape_cast %39 : vector<1x8x128xf32> to vector<8x128xf32>
    %c0_i32_40 = arith.constant 0 : i32
    %c1_i32_41 = arith.constant 1 : i32
    %c0_i32_42 = arith.constant 0 : i32
    %c2_i32_43 = arith.constant 2 : i32
    %41 = arith.addi %c0_i32_42, %c2_i32_43 : i32
    %c1_i32_44 = arith.constant 1 : i32
    %42:2 = scf.for %arg12 = %c0_i32_42 to %41 step %c1_i32_44 iter_args(%arg13 = %38, %arg14 = %40) -> (vector<8x128xf32>, vector<8x128xf32>)  : i32 {
      %c1_i32_52 = arith.constant 1 : i32
      %49 = arith.addi %arg12, %c1_i32_52 : i32
      %c2_i32_53 = arith.constant 2 : i32
      %50 = arith.cmpi slt, %49, %c2_i32_53 : i32
      %51 = arith.extui %50 : i1 to i32
      %c0_i32_54 = arith.constant 0 : i32
      %52 = arith.cmpi ne, %51, %c0_i32_54 : i32
      scf.if %52 {
        %c1_i32_121 = arith.constant 1 : i32
        %229 = arith.addi %arg12, %c1_i32_121 : i32
        %c32_i32 = arith.constant 32 : i32
        %230 = arith.muli %229, %c32_i32 : i32
        %231 = tpu.assume_multiple %230, 32 : i32
        %232 = arith.index_cast %231 : i32 to index
        %c0_122 = arith.constant 0 : index
        %233 = vector.load %arg11[%232, %c0_122] : memref<64x128xf32, #tpu.memory_space<vmem>>, vector<32x128xf32>
        %234 = arith.index_cast %c0_i32_40 : i32 to index
        %c0_123 = arith.constant 0 : index
        %c0_124 = arith.constant 0 : index
        %235 = vector.load %arg2[%234, %c0_123, %c0_124] : memref<1x128x512xf32, #tpu.memory_space<vmem>>, vector<1x128x512xf32>
        %236 = vector.shape_cast %235 : vector<1x128x512xf32> to vector<128x512xf32>
        %cst_125 = arith.constant dense<0.000000e+00> : vector<32x512xf32>
        %237 = tpu.matmul %233, %236, %cst_125 {dimension_numbers = #tpu.dot_dimension_numbers<[1], [0], [0], [1], [0, 0, 1, 1], [], []>} : vector<32x128xf32>, vector<128x512xf32>, vector<32x512xf32> -> vector<32x512xf32>
        %238 = vector.broadcast %26 : vector<1x512xf32> to vector<32x512xf32>
        %239 = arith.addf %237, %238 : vector<32x512xf32>
        %240 = arith.index_cast %231 : i32 to index
        %c0_126 = arith.constant 0 : index
        %241 = vector.load %arg10[%240, %c0_126] : memref<64x512xf32, #tpu.memory_space<vmem>>, vector<32x512xf32>
        tpu.vector_store %arg10[%240, %c0_126], %239 {strides = array<i32>} : memref<64x512xf32, #tpu.memory_space<vmem>>, vector<32x512xf32>,
      } else {
      }
      %c0_i32_55 = arith.constant 0 : i32
      %c4_i32 = arith.constant 4 : i32
      %53 = arith.muli %arg12, %c4_i32 : i32
      %54 = arith.addi %53, %c0_i32_55 : i32
      %c8_i32 = arith.constant 8 : i32
      %55 = arith.muli %54, %c8_i32 : i32
      %56 = tpu.assume_multiple %55, 8 : i32
      %57 = arith.index_cast %56 : i32 to index
      %c0_56 = arith.constant 0 : index
      %58 = vector.load %arg10[%57, %c0_56] : memref<64x512xf32, #tpu.memory_space<vmem>>, vector<8x512xf32>
      %59 = arith.index_cast %c1_i32_41 : i32 to index
      %c0_57 = arith.constant 0 : index
      %c0_58 = arith.constant 0 : index
      %60 = vector.load %arg3[%59, %c0_57, %c0_58] : memref<2x128x512xf32, #tpu.memory_space<vmem>>, vector<1x128x512xf32>
      %61 = vector.shape_cast %60 : vector<1x128x512xf32> to vector<128x512xf32>
      %cst_59 = arith.constant dense<0.000000e+00> : vector<8x512xf32>
      %62 = tpu.matmul %arg13, %61, %cst_59 {dimension_numbers = #tpu.dot_dimension_numbers<[1], [0], [0], [1], [0, 0, 1, 1], [], []>} : vector<8x128xf32>, vector<128x512xf32>, vector<8x512xf32> -> vector<8x512xf32>
      %63 = arith.addf %58, %62 : vector<8x512xf32>
      %64 = vector.extract_strided_slice %63 {offsets = [0, 0], sizes = [8, 128], strides = [1, 1]} : vector<8x512xf32> to vector<8x128xf32>
      %cst_60 = arith.constant 5.000000e-01 : f32
      %65 = vector.broadcast %cst_60 : f32 to vector<8x128xf32>
      %66 = arith.mulf %65, %64 : vector<8x128xf32>
      %67 = math.tanh %66 : vector<8x128xf32>
      %cst_61 = arith.constant 5.000000e-01 : f32
      %68 = vector.broadcast %cst_61 : f32 to vector<8x128xf32>
      %69 = arith.mulf %68, %67 : vector<8x128xf32>
      %cst_62 = arith.constant 5.000000e-01 : f32
      %70 = vector.broadcast %cst_62 : f32 to vector<8x128xf32>
      %71 = arith.addf %69, %70 : vector<8x128xf32>
      %72 = vector.extract_strided_slice %63 {offsets = [0, 128], sizes = [8, 128], strides = [1, 1]} : vector<8x512xf32> to vector<8x128xf32>
      %cst_63 = arith.constant 5.000000e-01 : f32
      %73 = vector.broadcast %cst_63 : f32 to vector<8x128xf32>
      %74 = arith.mulf %73, %72 : vector<8x128xf32>
      %75 = math.tanh %74 : vector<8x128xf32>
      %cst_64 = arith.constant 5.000000e-01 : f32
      %76 = vector.broadcast %cst_64 : f32 to vector<8x128xf32>
      %77 = arith.mulf %76, %75 : vector<8x128xf32>
      %cst_65 = arith.constant 5.000000e-01 : f32
      %78 = vector.broadcast %cst_65 : f32 to vector<8x128xf32>
      %79 = arith.addf %77, %78 : vector<8x128xf32>
      %80 = vector.extract_strided_slice %63 {offsets = [0, 256], sizes = [8, 128], strides = [1, 1]} : vector<8x512xf32> to vector<8x128xf32>
      %81 = math.tanh %80 : vector<8x128xf32>
      %82 = vector.extract_strided_slice %63 {offsets = [0, 384], sizes = [8, 128], strides = [1, 1]} : vector<8x512xf32> to vector<8x128xf32>
      %cst_66 = arith.constant 5.000000e-01 : f32
      %83 = vector.broadcast %cst_66 : f32 to vector<8x128xf32>
      %84 = arith.mulf %83, %82 : vector<8x128xf32>
      %85 = math.tanh %84 : vector<8x128xf32>
      %cst_67 = arith.constant 5.000000e-01 : f32
      %86 = vector.broadcast %cst_67 : f32 to vector<8x128xf32>
      %87 = arith.mulf %86, %85 : vector<8x128xf32>
      %cst_68 = arith.constant 5.000000e-01 : f32
      %88 = vector.broadcast %cst_68 : f32 to vector<8x128xf32>
      %89 = arith.addf %87, %88 : vector<8x128xf32>
      %90 = arith.mulf %79, %arg14 : vector<8x128xf32>
      %91 = arith.mulf %71, %81 : vector<8x128xf32>
      %92 = arith.addf %90, %91 : vector<8x128xf32>
      %93 = math.tanh %92 : vector<8x128xf32>
      %94 = arith.mulf %89, %93 : vector<8x128xf32>
      %95 = arith.index_cast %56 : i32 to index
      %c0_69 = arith.constant 0 : index
      %96 = vector.load %arg7[%95, %c0_69] : memref<64x128xf32, #tpu.memory_space<vmem>>, vector<8x128xf32>
      tpu.vector_store %arg7[%95, %c0_69], %94 {strides = array<i32>} : memref<64x128xf32, #tpu.memory_space<vmem>>, vector<8x128xf32>,
      %c1_i32_70 = arith.constant 1 : i32
      %c4_i32_71 = arith.constant 4 : i32
      %97 = arith.muli %arg12, %c4_i32_71 : i32
      %98 = arith.addi %97, %c1_i32_70 : i32
      %c8_i32_72 = arith.constant 8 : i32
      %99 = arith.muli %98, %c8_i32_72 : i32
      %100 = tpu.assume_multiple %99, 8 : i32
      %101 = arith.index_cast %100 : i32 to index
      %c0_73 = arith.constant 0 : index
      %102 = vector.load %arg10[%101, %c0_73] : memref<64x512xf32, #tpu.memory_space<vmem>>, vector<8x512xf32>
      %103 = arith.index_cast %c1_i32_41 : i32 to index
      %c0_74 = arith.constant 0 : index
      %c0_75 = arith.constant 0 : index
      %104 = vector.load %arg3[%103, %c0_74, %c0_75] : memref<2x128x512xf32, #tpu.memory_space<vmem>>, vector<1x128x512xf32>
      %105 = vector.shape_cast %104 : vector<1x128x512xf32> to vector<128x512xf32>
      %cst_76 = arith.constant dense<0.000000e+00> : vector<8x512xf32>
      %106 = tpu.matmul %94, %105, %cst_76 {dimension_numbers = #tpu.dot_dimension_numbers<[1], [0], [0], [1], [0, 0, 1, 1], [], []>} : vector<8x128xf32>, vector<128x512xf32>, vector<8x512xf32> -> vector<8x512xf32>
      %107 = arith.addf %102, %106 : vector<8x512xf32>
      %108 = vector.extract_strided_slice %107 {offsets = [0, 0], sizes = [8, 128], strides = [1, 1]} : vector<8x512xf32> to vector<8x128xf32>
      %cst_77 = arith.constant 5.000000e-01 : f32
      %109 = vector.broadcast %cst_77 : f32 to vector<8x128xf32>
      %110 = arith.mulf %109, %108 : vector<8x128xf32>
      %111 = math.tanh %110 : vector<8x128xf32>
      %cst_78 = arith.constant 5.000000e-01 : f32
      %112 = vector.broadcast %cst_78 : f32 to vector<8x128xf32>
      %113 = arith.mulf %112, %111 : vector<8x128xf32>
      %cst_79 = arith.constant 5.000000e-01 : f32
      %114 = vector.broadcast %cst_79 : f32 to vector<8x128xf32>
      %115 = arith.addf %113, %114 : vector<8x128xf32>
      %116 = vector.extract_strided_slice %107 {offsets = [0, 128], sizes = [8, 128], strides = [1, 1]} : vector<8x512xf32> to vector<8x128xf32>
      %cst_80 = arith.constant 5.000000e-01 : f32
      %117 = vector.broadcast %cst_80 : f32 to vector<8x128xf32>
      %118 = arith.mulf %117, %116 : vector<8x128xf32>
      %119 = math.tanh %118 : vector<8x128xf32>
      %cst_81 = arith.constant 5.000000e-01 : f32
      %120 = vector.broadcast %cst_81 : f32 to vector<8x128xf32>
      %121 = arith.mulf %120, %119 : vector<8x128xf32>
      %cst_82 = arith.constant 5.000000e-01 : f32
      %122 = vector.broadcast %cst_82 : f32 to vector<8x128xf32>
      %123 = arith.addf %121, %122 : vector<8x128xf32>
      %124 = vector.extract_strided_slice %107 {offsets = [0, 256], sizes = [8, 128], strides = [1, 1]} : vector<8x512xf32> to vector<8x128xf32>
      %125 = math.tanh %124 : vector<8x128xf32>
      %126 = vector.extract_strided_slice %107 {offsets = [0, 384], sizes = [8, 128], strides = [1, 1]} : vector<8x512xf32> to vector<8x128xf32>
      %cst_83 = arith.constant 5.000000e-01 : f32
      %127 = vector.broadcast %cst_83 : f32 to vector<8x128xf32>
      %128 = arith.mulf %127, %126 : vector<8x128xf32>
      %129 = math.tanh %128 : vector<8x128xf32>
      %cst_84 = arith.constant 5.000000e-01 : f32
      %130 = vector.broadcast %cst_84 : f32 to vector<8x128xf32>
      %131 = arith.mulf %130, %129 : vector<8x128xf32>
      %cst_85 = arith.constant 5.000000e-01 : f32
      %132 = vector.broadcast %cst_85 : f32 to vector<8x128xf32>
      %133 = arith.addf %131, %132 : vector<8x128xf32>
      %134 = arith.mulf %123, %92 : vector<8x128xf32>
      %135 = arith.mulf %115, %125 : vector<8x128xf32>
      %136 = arith.addf %134, %135 : vector<8x128xf32>
      %137 = math.tanh %136 : vector<8x128xf32>
      %138 = arith.mulf %133, %137 : vector<8x128xf32>
      %139 = arith.index_cast %100 : i32 to index
      %c0_86 = arith.constant 0 : index
      %140 = vector.load %arg7[%139, %c0_86] : memref<64x128xf32, #tpu.memory_space<vmem>>, vector<8x128xf32>
      tpu.vector_store %arg7[%139, %c0_86], %138 {strides = array<i32>} : memref<64x128xf32, #tpu.memory_space<vmem>>, vector<8x128xf32>,
      %c2_i32_87 = arith.constant 2 : i32
      %c4_i32_88 = arith.constant 4 : i32
      %141 = arith.muli %arg12, %c4_i32_88 : i32
      %142 = arith.addi %141, %c2_i32_87 : i32
      %c8_i32_89 = arith.constant 8 : i32
      %143 = arith.muli %142, %c8_i32_89 : i32
      %144 = tpu.assume_multiple %143, 8 : i32
      %145 = arith.index_cast %144 : i32 to index
      %c0_90 = arith.constant 0 : index
      %146 = vector.load %arg10[%145, %c0_90] : memref<64x512xf32, #tpu.memory_space<vmem>>, vector<8x512xf32>
      %147 = arith.index_cast %c1_i32_41 : i32 to index
      %c0_91 = arith.constant 0 : index
      %c0_92 = arith.constant 0 : index
      %148 = vector.load %arg3[%147, %c0_91, %c0_92] : memref<2x128x512xf32, #tpu.memory_space<vmem>>, vector<1x128x512xf32>
      %149 = vector.shape_cast %148 : vector<1x128x512xf32> to vector<128x512xf32>
      %cst_93 = arith.constant dense<0.000000e+00> : vector<8x512xf32>
      %150 = tpu.matmul %138, %149, %cst_93 {dimension_numbers = #tpu.dot_dimension_numbers<[1], [0], [0], [1], [0, 0, 1, 1], [], []>} : vector<8x128xf32>, vector<128x512xf32>, vector<8x512xf32> -> vector<8x512xf32>
      %151 = arith.addf %146, %150 : vector<8x512xf32>
      %152 = vector.extract_strided_slice %151 {offsets = [0, 0], sizes = [8, 128], strides = [1, 1]} : vector<8x512xf32> to vector<8x128xf32>
      %cst_94 = arith.constant 5.000000e-01 : f32
      %153 = vector.broadcast %cst_94 : f32 to vector<8x128xf32>
      %154 = arith.mulf %153, %152 : vector<8x128xf32>
      %155 = math.tanh %154 : vector<8x128xf32>
      %cst_95 = arith.constant 5.000000e-01 : f32
      %156 = vector.broadcast %cst_95 : f32 to vector<8x128xf32>
      %157 = arith.mulf %156, %155 : vector<8x128xf32>
      %cst_96 = arith.constant 5.000000e-01 : f32
      %158 = vector.broadcast %cst_96 : f32 to vector<8x128xf32>
      %159 = arith.addf %157, %158 : vector<8x128xf32>
      %160 = vector.extract_strided_slice %151 {offsets = [0, 128], sizes = [8, 128], strides = [1, 1]} : vector<8x512xf32> to vector<8x128xf32>
      %cst_97 = arith.constant 5.000000e-01 : f32
      %161 = vector.broadcast %cst_97 : f32 to vector<8x128xf32>
      %162 = arith.mulf %161, %160 : vector<8x128xf32>
      %163 = math.tanh %162 : vector<8x128xf32>
      %cst_98 = arith.constant 5.000000e-01 : f32
      %164 = vector.broadcast %cst_98 : f32 to vector<8x128xf32>
      %165 = arith.mulf %164, %163 : vector<8x128xf32>
      %cst_99 = arith.constant 5.000000e-01 : f32
      %166 = vector.broadcast %cst_99 : f32 to vector<8x128xf32>
      %167 = arith.addf %165, %166 : vector<8x128xf32>
      %168 = vector.extract_strided_slice %151 {offsets = [0, 256], sizes = [8, 128], strides = [1, 1]} : vector<8x512xf32> to vector<8x128xf32>
      %169 = math.tanh %168 : vector<8x128xf32>
      %170 = vector.extract_strided_slice %151 {offsets = [0, 384], sizes = [8, 128], strides = [1, 1]} : vector<8x512xf32> to vector<8x128xf32>
      %cst_100 = arith.constant 5.000000e-01 : f32
      %171 = vector.broadcast %cst_100 : f32 to vector<8x128xf32>
      %172 = arith.mulf %171, %170 : vector<8x128xf32>
      %173 = math.tanh %172 : vector<8x128xf32>
      %cst_101 = arith.constant 5.000000e-01 : f32
      %174 = vector.broadcast %cst_101 : f32 to vector<8x128xf32>
      %175 = arith.mulf %174, %173 : vector<8x128xf32>
      %cst_102 = arith.constant 5.000000e-01 : f32
      %176 = vector.broadcast %cst_102 : f32 to vector<8x128xf32>
      %177 = arith.addf %175, %176 : vector<8x128xf32>
      %178 = arith.mulf %167, %136 : vector<8x128xf32>
      %179 = arith.mulf %159, %169 : vector<8x128xf32>
      %180 = arith.addf %178, %179 : vector<8x128xf32>
      %181 = math.tanh %180 : vector<8x128xf32>
      %182 = arith.mulf %177, %181 : vector<8x128xf32>
      %183 = arith.index_cast %144 : i32 to index
      %c0_103 = arith.constant 0 : index
      %184 = vector.load %arg7[%183, %c0_103] : memref<64x128xf32, #tpu.memory_space<vmem>>, vector<8x128xf32>
      tpu.vector_store %arg7[%183, %c0_103], %182 {strides = array<i32>} : memref<64x128xf32, #tpu.memory_space<vmem>>, vector<8x128xf32>,
      %c3_i32 = arith.constant 3 : i32
      %c4_i32_104 = arith.constant 4 : i32
      %185 = arith.muli %arg12, %c4_i32_104 : i32
      %186 = arith.addi %185, %c3_i32 : i32
      %c8_i32_105 = arith.constant 8 : i32
      %187 = arith.muli %186, %c8_i32_105 : i32
      %188 = tpu.assume_multiple %187, 8 : i32
      %189 = arith.index_cast %188 : i32 to index
      %c0_106 = arith.constant 0 : index
      %190 = vector.load %arg10[%189, %c0_106] : memref<64x512xf32, #tpu.memory_space<vmem>>, vector<8x512xf32>
      %191 = arith.index_cast %c1_i32_41 : i32 to index
      %c0_107 = arith.constant 0 : index
      %c0_108 = arith.constant 0 : index
      %192 = vector.load %arg3[%191, %c0_107, %c0_108] : memref<2x128x512xf32, #tpu.memory_space<vmem>>, vector<1x128x512xf32>
      %193 = vector.shape_cast %192 : vector<1x128x512xf32> to vector<128x512xf32>
      %cst_109 = arith.constant dense<0.000000e+00> : vector<8x512xf32>
      %194 = tpu.matmul %182, %193, %cst_109 {dimension_numbers = #tpu.dot_dimension_numbers<[1], [0], [0], [1], [0, 0, 1, 1], [], []>} : vector<8x128xf32>, vector<128x512xf32>, vector<8x512xf32> -> vector<8x512xf32>
      %195 = arith.addf %190, %194 : vector<8x512xf32>
      %196 = vector.extract_strided_slice %195 {offsets = [0, 0], sizes = [8, 128], strides = [1, 1]} : vector<8x512xf32> to vector<8x128xf32>
      %cst_110 = arith.constant 5.000000e-01 : f32
      %197 = vector.broadcast %cst_110 : f32 to vector<8x128xf32>
      %198 = arith.mulf %197, %196 : vector<8x128xf32>
      %199 = math.tanh %198 : vector<8x128xf32>
      %cst_111 = arith.constant 5.000000e-01 : f32
      %200 = vector.broadcast %cst_111 : f32 to vector<8x128xf32>
      %201 = arith.mulf %200, %199 : vector<8x128xf32>
      %cst_112 = arith.constant 5.000000e-01 : f32
      %202 = vector.broadcast %cst_112 : f32 to vector<8x128xf32>
      %203 = arith.addf %201, %202 : vector<8x128xf32>
      %204 = vector.extract_strided_slice %195 {offsets = [0, 128], sizes = [8, 128], strides = [1, 1]} : vector<8x512xf32> to vector<8x128xf32>
      %cst_113 = arith.constant 5.000000e-01 : f32
      %205 = vector.broadcast %cst_113 : f32 to vector<8x128xf32>
      %206 = arith.mulf %205, %204 : vector<8x128xf32>
      %207 = math.tanh %206 : vector<8x128xf32>
      %cst_114 = arith.constant 5.000000e-01 : f32
      %208 = vector.broadcast %cst_114 : f32 to vector<8x128xf32>
      %209 = arith.mulf %208, %207 : vector<8x128xf32>
      %cst_115 = arith.constant 5.000000e-01 : f32
      %210 = vector.broadcast %cst_115 : f32 to vector<8x128xf32>
      %211 = arith.addf %209, %210 : vector<8x128xf32>
      %212 = vector.extract_strided_slice %195 {offsets = [0, 256], sizes = [8, 128], strides = [1, 1]} : vector<8x512xf32> to vector<8x128xf32>
      %213 = math.tanh %212 : vector<8x128xf32>
      %214 = vector.extract_strided_slice %195 {offsets = [0, 384], sizes = [8, 128], strides = [1, 1]} : vector<8x512xf32> to vector<8x128xf32>
      %cst_116 = arith.constant 5.000000e-01 : f32
      %215 = vector.broadcast %cst_116 : f32 to vector<8x128xf32>
      %216 = arith.mulf %215, %214 : vector<8x128xf32>
      %217 = math.tanh %216 : vector<8x128xf32>
      %cst_117 = arith.constant 5.000000e-01 : f32
      %218 = vector.broadcast %cst_117 : f32 to vector<8x128xf32>
      %219 = arith.mulf %218, %217 : vector<8x128xf32>
      %cst_118 = arith.constant 5.000000e-01 : f32
      %220 = vector.broadcast %cst_118 : f32 to vector<8x128xf32>
      %221 = arith.addf %219, %220 : vector<8x128xf32>
      %222 = arith.mulf %211, %180 : vector<8x128xf32>
      %223 = arith.mulf %203, %213 : vector<8x128xf32>
      %224 = arith.addf %222, %223 : vector<8x128xf32>
      %225 = math.tanh %224 : vector<8x128xf32>
      %226 = arith.mulf %221, %225 : vector<8x128xf32>
      %227 = arith.index_cast %188 : i32 to index
      %c0_119 = arith.constant 0 : index
      %228 = vector.load %arg7[%227, %c0_119] : memref<64x128xf32, #tpu.memory_space<vmem>>, vector<8x128xf32>
      tpu.vector_store %arg7[%227, %c0_119], %226 {strides = array<i32>} : memref<64x128xf32, #tpu.memory_space<vmem>>, vector<8x128xf32>,
      %c4_i32_120 = arith.constant 4 : i32
      scf.yield %226, %224 : vector<8x128xf32>, vector<8x128xf32>
    }
    %c2_i32_45 = arith.constant 2 : i32
    %c1_46 = arith.constant 1 : index
    %c0_47 = arith.constant 0 : index
    %c0_48 = arith.constant 0 : index
    %43 = vector.load %arg8[%c1_46, %c0_47, %c0_48] : memref<2x8x128xf32, #tpu.memory_space<vmem>>, vector<1x8x128xf32>
    %44 = vector.shape_cast %43 : vector<1x8x128xf32> to vector<8x128xf32>
    %45 = vector.shape_cast %42#0 : vector<8x128xf32> to vector<1x8x128xf32>
    tpu.vector_store %arg8[%c1_46, %c0_47, %c0_48], %45 {strides = array<i32>} : memref<2x8x128xf32, #tpu.memory_space<vmem>>, vector<1x8x128xf32>,
    %c1_49 = arith.constant 1 : index
    %c0_50 = arith.constant 0 : index
    %c0_51 = arith.constant 0 : index
    %46 = vector.load %arg9[%c1_49, %c0_50, %c0_51] : memref<2x8x128xf32, #tpu.memory_space<vmem>>, vector<1x8x128xf32>
    %47 = vector.shape_cast %46 : vector<1x8x128xf32> to vector<8x128xf32>
    %48 = vector.shape_cast %42#1 : vector<8x128xf32> to vector<1x8x128xf32>
    tpu.vector_store %arg9[%c1_49, %c0_50, %c0_51], %48 {strides = array<i32>} : memref<2x8x128xf32, #tpu.memory_space<vmem>>, vector<1x8x128xf32>,
    return
  }
}

</mosaic_0001>

<llo_original>
// kernel: tpu_custom_call.1
$region0: #{tpu_custom_call.1}
  #allocation0 [shape = 'u32[]', space=smem, size = 0x4, offset = 0x4, fixed_abs, tag = 'smem constant byte address 0x4 - core index']
  #allocation1 [shape = 'u32[144,128]{1,0:T(1,128)}', space=vmem, size = 0x12000, scoped, tag = 'internal scratch']
  #allocation2 [shape = 'f32[64,512]{1,0:T(8,128)}', space=vmem, size = 0x20000, scoped, tag = 'scratch operand']
  #allocation3 [shape = 'f32[64,128]{1,0:T(8,128)}', space=vmem, size = 0x8000, scoped, tag = 'scratch operand']
  %s0 = inlined_call_operand.hbm [shape: f32[64,128], index: 0, kind: input, shape index: {}]
  %s1 = inlined_call_operand.hbm [shape: f32[128,512], index: 1, kind: input, shape index: {}]
  %s2 = inlined_call_operand.hbm [shape: f32[1,128,512], index: 2, kind: input, shape index: {}]
  %s3 = inlined_call_operand.hbm [shape: f32[2,128,512], index: 3, kind: input, shape index: {}]
  %s4 = inlined_call_operand.hbm [shape: f32[2,1,512], index: 4, kind: input, shape index: {}]
  %s5 = inlined_call_operand.vmem [shape: f32[2,8,128], index: 5, kind: input, shape index: {}]
  %s6 = inlined_call_operand.hbm [shape: f32[2,8,128], index: 6, kind: input, shape index: {}]
  %s7 = inlined_call_operand.hbm [shape: f32[64,128], index: 7, kind: output, shape index: {0}]
  %s8 = inlined_call_operand.hbm [shape: f32[2,8,128], index: 8, kind: output, shape index: {1}]
  %s9 = inlined_call_operand.hbm [shape: f32[2,8,128], index: 9, kind: output, shape index: {2}]
  %10 = xla_tuple %s7, %s8, %s9
  %s11 = sld [smem:[#allocation0]]
  $region100: #{tpu_custom_call.1} parent=0
    _
  %s13 = ssub.s32 1, %s11
  %s14 = scalar_select 0, %s13, %s11
  $region1: #{tpu_custom_call.1} parent=0
    #allocation4 [shape = 'u8[32768]{0}', space=vmem, size = 0x8000, scoped, tag = 'input window, operand 0, single buffered']
    #allocation5 [shape = 's32[1]{0}', space=sflag, size = 0x4, scoped, tag = 'scoped memory for tpu_custom_call.1']
    #allocation6 [shape = 's32[1]{0}', space=sflag, size = 0x4, scoped, tag = 'scoped memory for tpu_custom_call.1']
    #allocation7 [shape = 'u8[262144]{0}', space=vmem, size = 0x40000, scoped, tag = 'input window, operand 1, single buffered']
    #allocation8 [shape = 's32[1]{0}', space=sflag, size = 0x4, scoped, tag = 'scoped memory for tpu_custom_call.1']
    #allocation9 [shape = 'u8[262144]{0}', space=vmem, size = 0x40000, scoped, tag = 'input window, operand 2, single buffered']
    #allocation10 [shape = 'u8[524288]{0}', space=vmem, size = 0x80000, scoped, tag = 'input window, operand 3, single buffered']
    #allocation11 [shape = 's32[1]{0}', space=sflag, size = 0x4, scoped, tag = 'scoped memory for tpu_custom_call.1']
    #allocation12 [shape = 'u8[4096]{0}', space=vmem, size = 0x1000, scoped, tag = 'input window, operand 4, single buffered']
    #allocation13 [shape = 'u8[8192]{0}', space=vmem, size = 0x2000, scoped, tag = 'input window, operand 6, single buffered']
    #allocation14 [shape = 's32[1]{0}', space=sflag, size = 0x4, scoped, tag = 'scoped memory for tpu_custom_call.1']
    #allocation15 [shape = 'u8[32768]{0}', space=vmem, size = 0x8000, scoped, tag = 'output window, operand 0, single buffered']
    #allocation16 [shape = 'u8[8192]{0}', space=vmem, size = 0x2000, scoped, tag = 'output window, operand 1, single buffered']
    #allocation17 [shape = 's32[1]{0}', space=sflag, size = 0x4, scoped, tag = 'scoped memory for tpu_custom_call.1']
    #allocation18 [shape = 'u8[8192]{0}', space=vmem, size = 0x2000, scoped, tag = 'output window, operand 2, single buffered']
    %15 = vsyncpa [#allocation5], 0
    %16 = vsyncpa [#allocation8], 0
    %17 = vsyncpa [#allocation11], 0
    %18 = vsyncpa [#allocation14], 0
    %19 = vsyncpa [#allocation6], 0
    %20 = vsyncpa [#allocation17], 0
    // Predicated region
    $region2: #{tpu_custom_call.1} parent=1 // pred_check
      _
    $region3: #{tpu_custom_call.1} parent=1 // pred_check_branch
      %22 = sbr.rel (0) target = $region5
    $region4: #{tpu_custom_call.1} parent=1 // pred_region
      %s24 = ssub.s32 1024, 1024
      %25 = vsyncadd [#allocation5], %s24
      %s26 = sshll.u32 [#allocation4], 4
      %s27 = int_to_ptr.vmem [resolvable:$true] %s26
      %32 = dma.hbm_to_vmem [thread:$0]  %s0, 1024, %s27, [#allocation5], 128, 128, 8
    $region5: #{tpu_custom_call.1} parent=1 // pred_fallthru
      _
    // Predicated region
    $region6: #{tpu_custom_call.1} parent=1 // pred_check
      _
    $region7: #{tpu_custom_call.1} parent=1 // pred_check_branch
      %34 = sbr.rel (0) target = $region9
    $region8: #{tpu_custom_call.1} parent=1 // pred_region
      %s36 = ssub.s32 8192, 8192
      %37 = vsyncadd [#allocation8], %s36
      %s38 = sshll.u32 [#allocation7], 4
      %s39 = int_to_ptr.vmem [resolvable:$true] %s38
      %44 = dma.hbm_to_vmem [thread:$0]  %s1, 8192, %s39, [#allocation8], 512, 512, 32
    $region9: #{tpu_custom_call.1} parent=1 // pred_fallthru
      _
    // Predicated region
    $region10: #{tpu_custom_call.1} parent=1 // pred_check
      _
    $region11: #{tpu_custom_call.1} parent=1 // pred_check_branch
      %46 = sbr.rel (0) target = $region13
    $region12: #{tpu_custom_call.1} parent=1 // pred_region
      %s48 = ssub.s32 8192, 8192
      %49 = vsyncadd [#allocation8], %s48
      %s50 = sshll.u32 [#allocation9], 4
      %s51 = int_to_ptr.vmem [resolvable:$true] %s50
      %56 = dma.hbm_to_vmem [thread:$0]  %s2, 8192, %s51, [#allocation8], 512, 512, 32
    $region13: #{tpu_custom_call.1} parent=1 // pred_fallthru
      _
    // Predicated region
    $region14: #{tpu_custom_call.1} parent=1 // pred_check
      _
    $region15: #{tpu_custom_call.1} parent=1 // pred_check_branch
      %58 = sbr.rel (0) target = $region17
    $region16: #{tpu_custom_call.1} parent=1 // pred_region
      %s60 = ssub.s32 16384, 16384
      %61 = vsyncadd [#allocation11], %s60
      %s62 = sshll.u32 [#allocation10], 4
      %s63 = int_to_ptr.vmem [resolvable:$true] %s62
      %68 = dma.hbm_to_vmem [thread:$0]  %s3, 16384, %s63, [#allocation11], 512, 512, 32
    $region17: #{tpu_custom_call.1} parent=1 // pred_fallthru
      _
    // Predicated region
    $region18: #{tpu_custom_call.1} parent=1 // pred_check
      _
    $region19: #{tpu_custom_call.1} parent=1 // pred_check_branch
      %70 = sbr.rel (0) target = $region21
    $region20: #{tpu_custom_call.1} parent=1 // pred_region
      %s72 = ssub.s32 128, 128
      %73 = vsyncadd [#allocation11], %s72
      %s74 = sshll.u32 [#allocation12], 4
      %s75 = int_to_ptr.vmem [resolvable:$true] %s74
      %80 = dma.hbm_to_vmem [thread:$0]  %s4, 128, %s75, [#allocation11], 64, 64, 4
    $region21: #{tpu_custom_call.1} parent=1 // pred_fallthru
      _
    // Predicated region
    $region22: #{tpu_custom_call.1} parent=1 // pred_check
      _
    $region23: #{tpu_custom_call.1} parent=1 // pred_check_branch
      %82 = sbr.rel (0) target = $region25
    $region24: #{tpu_custom_call.1} parent=1 // pred_region
      _
    $region25: #{tpu_custom_call.1} parent=1 // pred_fallthru
      _
    // Predicated region
    $region26: #{tpu_custom_call.1} parent=1 // pred_check
      _
    $region27: #{tpu_custom_call.1} parent=1 // pred_check_branch
      %84 = sbr.rel (0) target = $region29
    $region28: #{tpu_custom_call.1} parent=1 // pred_region
      %s86 = ssub.s32 256, 256
      %87 = vsyncadd [#allocation14], %s86
      %s88 = sshll.u32 [#allocation13], 4
      %s89 = int_to_ptr.vmem [resolvable:$true] %s88
      %94 = dma.hbm_to_vmem [thread:$0]  %s6, 256, %s89, [#allocation14], 128, 128, 8
    $region29: #{tpu_custom_call.1} parent=1 // pred_fallthru
      _
    // Predicated region
    $region30: #{tpu_custom_call.1} parent=1 // pred_check
      _
    $region31: #{tpu_custom_call.1} parent=1 // pred_check_branch
      %96 = sbr.rel (0) target = $region33
    $region32: #{tpu_custom_call.1} parent=1 // pred_region
      %97 = dma.done [#allocation5], 1024
    $region33: #{tpu_custom_call.1} parent=1 // pred_fallthru
      _
    // Predicated region
    $region34: #{tpu_custom_call.1} parent=1 // pred_check
      _
    $region35: #{tpu_custom_call.1} parent=1 // pred_check_branch
      %99 = sbr.rel (0) target = $region37
    $region36: #{tpu_custom_call.1} parent=1 // pred_region
      %100 = dma.done [#allocation8], 8192
    $region37: #{tpu_custom_call.1} parent=1 // pred_fallthru
      _
    // Predicated region
    $region38: #{tpu_custom_call.1} parent=1 // pred_check
      _
    $region39: #{tpu_custom_call.1} parent=1 // pred_check_branch
      %102 = sbr.rel (0) target = $region41
    $region40: #{tpu_custom_call.1} parent=1 // pred_region
      %103 = dma.done [#allocation8], 8192
    $region41: #{tpu_custom_call.1} parent=1 // pred_fallthru
      _
    // Predicated region
    $region42: #{tpu_custom_call.1} parent=1 // pred_check
      _
    $region43: #{tpu_custom_call.1} parent=1 // pred_check_branch
      %105 = sbr.rel (0) target = $region45
    $region44: #{tpu_custom_call.1} parent=1 // pred_region
      %106 = dma.done [#allocation11], 16384
    $region45: #{tpu_custom_call.1} parent=1 // pred_fallthru
      _
    // Predicated region
    $region46: #{tpu_custom_call.1} parent=1 // pred_check
      _
    $region47: #{tpu_custom_call.1} parent=1 // pred_check_branch
      %108 = sbr.rel (0) target = $region49
    $region48: #{tpu_custom_call.1} parent=1 // pred_region
      %109 = dma.done [#allocation11], 128
    $region49: #{tpu_custom_call.1} parent=1 // pred_fallthru
      _
    // Predicated region
    $region50: #{tpu_custom_call.1} parent=1 // pred_check
      _
    $region51: #{tpu_custom_call.1} parent=1 // pred_check_branch
      %111 = sbr.rel (0) target = $region53
    $region52: #{tpu_custom_call.1} parent=1 // pred_region
      %112 = dma.done [#allocation14], 256
    $region53: #{tpu_custom_call.1} parent=1 // pred_fallthru
      _
    %v113 = vld [vmem:[#allocation12] sm:$0xf]
    %v114 = vld [vmem:[#allocation4] sm:$0xff]
    %v115 = vld [vmem:[#allocation4 + $0x8] sm:$0xff]
    %v116 = vld [vmem:[#allocation4 + $0x10] sm:$0xff]
    %v117 = vld [vmem:[#allocation4 + $0x18] sm:$0xff]
    %v118 = vld [vmem:[#allocation7] sm:$0xff]
    %v119 = vld [vmem:[#allocation7 + $0x8] sm:$0xff]
    %v120 = vld [vmem:[#allocation7 + $0x10] sm:$0xff]
    %v121 = vld [vmem:[#allocation7 + $0x18] sm:$0xff]
    %v122 = vld [vmem:[#allocation7 + $0x20] sm:$0xff]
    %v123 = vld [vmem:[#allocation7 + $0x28] sm:$0xff]
    %v124 = vld [vmem:[#allocation7 + $0x30] sm:$0xff]
    %v125 = vld [vmem:[#allocation7 + $0x38] sm:$0xff]
    %v126 = vld [vmem:[#allocation7 + $0x40] sm:$0xff]
    %v127 = vld [vmem:[#allocation7 + $0x48] sm:$0xff]
    %v128 = vld [vmem:[#allocation7 + $0x50] sm:$0xff]
    %v129 = vld [vmem:[#allocation7 + $0x58] sm:$0xff]
    %v130 = vld [vmem:[#allocation7 + $0x60] sm:$0xff]
    %v131 = vld [vmem:[#allocation7 + $0x68] sm:$0xff]
    %v132 = vld [vmem:[#allocation7 + $0x70] sm:$0xff]
    %v133 = vld [vmem:[#allocation7 + $0x78] sm:$0xff]
    %v134 = vld [vmem:[#allocation7 + $0x80] sm:$0xff]
    %v135 = vld [vmem:[#allocation7 + $0x88] sm:$0xff]
    %v136 = vld [vmem:[#allocation7 + $0x90] sm:$0xff]
    %v137 = vld [vmem:[#allocation7 + $0x98] sm:$0xff]
    %v138 = vld [vmem:[#allocation7 + $0xa0] sm:$0xff]
    %v139 = vld [vmem:[#allocation7 + $0xa8] sm:$0xff]
    %v140 = vld [vmem:[#allocation7 + $0xb0] sm:$0xff]
    %v141 = vld [vmem:[#allocation7 + $0xb8] sm:$0xff]
    %v142 = vld [vmem:[#allocation7 + $0xc0] sm:$0xff]
    %v143 = vld [vmem:[#allocation7 + $0xc8] sm:$0xff]
    %v144 = vld [vmem:[#allocation7 + $0xd0] sm:$0xff]
    %v145 = vld [vmem:[#allocation7 + $0xd8] sm:$0xff]
    %v146 = vld [vmem:[#allocation7 + $0xe0] sm:$0xff]
    %v147 = vld [vmem:[#allocation7 + $0xe8] sm:$0xff]
    %v148 = vld [vmem:[#allocation7 + $0xf0] sm:$0xff]
    %v149 = vld [vmem:[#allocation7 + $0xf8] sm:$0xff]
    %v150 = vld [vmem:[#allocation7 + $0x100] sm:$0xff]
    %v151 = vld [vmem:[#allocation7 + $0x108] sm:$0xff]
    %v152 = vld [vmem:[#allocation7 + $0x110] sm:$0xff]
    %v153 = vld [vmem:[#allocation7 + $0x118] sm:$0xff]
    %v154 = vld [vmem:[#allocation7 + $0x120] sm:$0xff]
    %v155 = vld [vmem:[#allocation7 + $0x128] sm:$0xff]
    %v156 = vld [vmem:[#allocation7 + $0x130] sm:$0xff]
    %v157 = vld [vmem:[#allocation7 + $0x138] sm:$0xff]
    %v158 = vld [vmem:[#allocation7 + $0x140] sm:$0xff]
    %v159 = vld [vmem:[#allocation7 + $0x148] sm:$0xff]
    %v160 = vld [vmem:[#allocation7 + $0x150] sm:$0xff]
    %v161 = vld [vmem:[#allocation7 + $0x158] sm:$0xff]
    %v162 = vld [vmem:[#allocation7 + $0x160] sm:$0xff]
    %v163 = vld [vmem:[#allocation7 + $0x168] sm:$0xff]
    %v164 = vld [vmem:[#allocation7 + $0x170] sm:$0xff]
    %v165 = vld [vmem:[#allocation7 + $0x178] sm:$0xff]
    %v166 = vld [vmem:[#allocation7 + $0x180] sm:$0xff]
    %v167 = vld [vmem:[#allocation7 + $0x188] sm:$0xff]
    %v168 = vld [vmem:[#allocation7 + $0x190] sm:$0xff]
    %v169 = vld [vmem:[#allocation7 + $0x198] sm:$0xff]
    %v170 = vld [vmem:[#allocation7 + $0x1a0] sm:$0xff]
    %v171 = vld [vmem:[#allocation7 + $0x1a8] sm:$0xff]
    %v172 = vld [vmem:[#allocation7 + $0x1b0] sm:$0xff]
    %v173 = vld [vmem:[#allocation7 + $0x1b8] sm:$0xff]
    %v174 = vld [vmem:[#allocation7 + $0x1c0] sm:$0xff]
    %v175 = vld [vmem:[#allocation7 + $0x1c8] sm:$0xff]
    %v176 = vld [vmem:[#allocation7 + $0x1d0] sm:$0xff]
    %v177 = vld [vmem:[#allocation7 + $0x1d8] sm:$0xff]
    %v178 = vld [vmem:[#allocation7 + $0x1e0] sm:$0xff]
    %v179 = vld [vmem:[#allocation7 + $0x1e8] sm:$0xff]
    %v180 = vld [vmem:[#allocation7 + $0x1f0] sm:$0xff]
    %v181 = vld [vmem:[#allocation7 + $0x1f8] sm:$0xff]
    %v183 = vlaneseq
    %v184 = vshrl.u32 %v183, 7
    %v185 = vsub.s32 0, %v184
    %v186 = vrot.slane %v113, %v185
    %v187 = vlaneseq
    %v188 = vshrl.u32 %v187, 7
    %v189 = vsub.s32 1, %v188
    %v190 = vrot.slane %v113, %v189
    %v191 = vlaneseq
    %v192 = vshrl.u32 %v191, 7
    %v193 = vsub.s32 2, %v192
    %v194 = vrot.slane %v113, %v193
    %v195 = vlaneseq
    %v196 = vshrl.u32 %v195, 7
    %v197 = vsub.s32 3, %v196
    %v198 = vrot.slane %v113, %v197
    %203 = vmatprep.subr.mxu0 %v119
    %204 = vmatpush1.msra.mxu0 %v118
    %205 = vmatprep.subr.mxu0 %v123
    %206 = vmatpush1.msra.mxu0 %v122
    %207 = vmatprep.subr.mxu0 %v127
    %208 = vmatpush1.msra.mxu0 %v126
    %209 = vmatprep.subr.mxu0 %v131
    %210 = vmatpush1.msra.mxu0 %v130
    %211 = vmatprep.subr.mxu0 %v135
    %212 = vmatpush1.msra.mxu0 %v134
    %213 = vmatprep.subr.mxu0 %v139
    %214 = vmatpush1.msra.mxu0 %v138
    %215 = vmatprep.subr.mxu0 %v143
    %216 = vmatpush1.msra.mxu0 %v142
    %217 = vmatprep.subr.mxu0 %v147
    %218 = vmatpush1.msra.mxu0 %v146
    %219 = vmatprep.subr.mxu0 %v151
    %220 = vmatpush1.msra.mxu0 %v150
    %221 = vmatprep.subr.mxu0 %v155
    %222 = vmatpush1.msra.mxu0 %v154
    %223 = vmatprep.subr.mxu0 %v159
    %224 = vmatpush1.msra.mxu0 %v158
    %225 = vmatprep.subr.mxu0 %v163
    %226 = vmatpush1.msra.mxu0 %v162
    %227 = vmatprep.subr.mxu0 %v167
    %228 = vmatpush1.msra.mxu0 %v166
    %229 = vmatprep.subr.mxu0 %v171
    %230 = vmatpush1.msra.mxu0 %v170
    %231 = vmatprep.subr.mxu0 %v175
    %232 = vmatpush1.msra.mxu0 %v174
    %233 = vmatprep.subr.mxu0 %v179
    %234 = vmatpush1.msra.mxu0 %v178
    %235 = vmatprep.subr.mxu0 0.0
    %236 = vmatpush1.msra.mxu0 0.0
    %237 = vmatprep.subr.mxu0 0.0
    %238 = vmatpush1.msra.mxu0 0.0
    %239 = vmatprep.subr.mxu0 0.0
    %240 = vmatpush1.msra.mxu0 0.0
    %241 = vmatprep.subr.mxu0 0.0
    %242 = vmatpush1.msra.mxu0 0.0
    %243 = vmatprep.subr.mxu0 0.0
    %244 = vmatpush1.msra.mxu0 0.0
    %245 = vmatprep.subr.mxu0 0.0
    %246 = vmatpush1.msra.mxu0 0.0
    %247 = vmatprep.subr.mxu0 0.0
    %248 = vmatpush1.msra.mxu0 0.0
    %249 = vmatprep.subr.mxu0 0.0
    %250 = vmatpush1.msra.mxu0 0.0
    %251 = vmatprep.subr.mxu0 0.0
    %252 = vmatpush1.msra.mxu0 0.0
    %253 = vmatprep.subr.mxu0 0.0
    %254 = vmatpush1.msra.mxu0 0.0
    %255 = vmatprep.subr.mxu0 0.0
    %256 = vmatpush1.msra.mxu0 0.0
    %257 = vmatprep.subr.mxu0 0.0
    %258 = vmatpush1.msra.mxu0 0.0
    %259 = vmatprep.subr.mxu0 0.0
    %260 = vmatpush1.msra.mxu0 0.0
    %261 = vmatprep.subr.mxu0 0.0
    %262 = vmatpush1.msra.mxu0 0.0
    %263 = vmatprep.subr.mxu0 0.0
    %264 = vmatpush1.msra.mxu0 0.0
    %265 = vmatprep.subr.mxu0 0.0
    %266 = vmatpush1.msra.mxu0 0.0
    %267 = vmatprep.mubr.f32.mxu0 0.0
    %268 = vmatmul.mubr.f32.gmra.mrb[0].mxu0 %v114
    %v269 = vpop.f32.mrb[0].mxu0
    %v270 = vadd.f32 %v186, %v269
    %v271 = vpop.f32.mrb[0].mxu0
    %v272 = vadd.f32 %v190, %v271
    %273 = vmatprep.mubr.f32.mxu0 0.0
    %274 = vmatmul.mubr.f32.gmra.mrb[0].mxu0 %v115
    %v275 = vpop.f32.mrb[0].mxu0
    %v276 = vadd.f32 %v186, %v275
    %v277 = vpop.f32.mrb[0].mxu0
    %v278 = vadd.f32 %v190, %v277
    %279 = vmatprep.mubr.f32.mxu0 0.0
    %280 = vmatmul.mubr.f32.gmra.mrb[0].mxu0 %v116
    %v281 = vpop.f32.mrb[0].mxu0
    %v282 = vadd.f32 %v186, %v281
    %v283 = vpop.f32.mrb[0].mxu0
    %v284 = vadd.f32 %v190, %v283
    %285 = vmatprep.mubr.f32.mxu0 0.0
    %286 = vmatmul.mubr.f32.gmra.mrb[0].mxu0 %v117
    %v287 = vpop.f32.mrb[0].mxu0
    %v288 = vadd.f32 %v186, %v287
    %v289 = vpop.f32.mrb[0].mxu0
    %v290 = vadd.f32 %v190, %v289
    %291 = vdwg.mxu0
    %292 = vmatprep.subr.mxu0 %v121
    %293 = vmatpush1.msra.mxu0 %v120
    %294 = vmatprep.subr.mxu0 %v125
    %295 = vmatpush1.msra.mxu0 %v124
    %296 = vmatprep.subr.mxu0 %v129
    %297 = vmatpush1.msra.mxu0 %v128
    %298 = vmatprep.subr.mxu0 %v133
    %299 = vmatpush1.msra.mxu0 %v132
    %300 = vmatprep.subr.mxu0 %v137
    %301 = vmatpush1.msra.mxu0 %v136
    %302 = vmatprep.subr.mxu0 %v141
    %303 = vmatpush1.msra.mxu0 %v140
    %304 = vmatprep.subr.mxu0 %v145
    %305 = vmatpush1.msra.mxu0 %v144
    %306 = vmatprep.subr.mxu0 %v149
    %307 = vmatpush1.msra.mxu0 %v148
    %308 = vmatprep.subr.mxu0 %v153
    %309 = vmatpush1.msra.mxu0 %v152
    %310 = vmatprep.subr.mxu0 %v157
    %311 = vmatpush1.msra.mxu0 %v156
    %312 = vmatprep.subr.mxu0 %v161
    %313 = vmatpush1.msra.mxu0 %v160
    %314 = vmatprep.subr.mxu0 %v165
    %315 = vmatpush1.msra.mxu0 %v164
    %316 = vmatprep.subr.mxu0 %v169
    %317 = vmatpush1.msra.mxu0 %v168
    %318 = vmatprep.subr.mxu0 %v173
    %319 = vmatpush1.msra.mxu0 %v172
    %320 = vmatprep.subr.mxu0 %v177
    %321 = vmatpush1.msra.mxu0 %v176
    %322 = vmatprep.subr.mxu0 %v181
    %323 = vmatpush1.msra.mxu0 %v180
    %324 = vmatprep.subr.mxu0 0.0
    %325 = vmatpush1.msra.mxu0 0.0
    %326 = vmatprep.subr.mxu0 0.0
    %327 = vmatpush1.msra.mxu0 0.0
    %328 = vmatprep.subr.mxu0 0.0
    %329 = vmatpush1.msra.mxu0 0.0
    %330 = vmatprep.subr.mxu0 0.0
    %331 = vmatpush1.msra.mxu0 0.0
    %332 = vmatprep.subr.mxu0 0.0
    %333 = vmatpush1.msra.mxu0 0.0
    %334 = vmatprep.subr.mxu0 0.0
    %335 = vmatpush1.msra.mxu0 0.0
    %336 = vmatprep.subr.mxu0 0.0
    %337 = vmatpush1.msra.mxu0 0.0
    %338 = vmatprep.subr.mxu0 0.0
    %339 = vmatpush1.msra.mxu0 0.0
    %340 = vmatprep.subr.mxu0 0.0
    %341 = vmatpush1.msra.mxu0 0.0
    %342 = vmatprep.subr.mxu0 0.0
    %343 = vmatpush1.msra.mxu0 0.0
    %344 = vmatprep.subr.mxu0 0.0
    %345 = vmatpush1.msra.mxu0 0.0
    %346 = vmatprep.subr.mxu0 0.0
    %347 = vmatpush1.msra.mxu0 0.0
    %348 = vmatprep.subr.mxu0 0.0
    %349 = vmatpush1.msra.mxu0 0.0
    %350 = vmatprep.subr.mxu0 0.0
    %351 = vmatpush1.msra.mxu0 0.0
    %352 = vmatprep.subr.mxu0 0.0
    %353 = vmatpush1.msra.mxu0 0.0
    %354 = vmatprep.subr.mxu0 0.0
    %355 = vmatpush1.msra.mxu0 0.0
    %356 = vmatprep.mubr.f32.mxu0 0.0
    %357 = vmatmul.mubr.f32.gmra.mrb[0].mxu0 %v114
    %v358 = vpop.f32.mrb[0].mxu0
    %v359 = vadd.f32 %v194, %v358
    %v360 = vpop.f32.mrb[0].mxu0
    %v361 = vadd.f32 %v198, %v360
    %362 = vmatprep.mubr.f32.mxu0 0.0
    %363 = vmatmul.mubr.f32.gmra.mrb[0].mxu0 %v115
    %v364 = vpop.f32.mrb[0].mxu0
    %v365 = vadd.f32 %v194, %v364
    %v366 = vpop.f32.mrb[0].mxu0
    %v367 = vadd.f32 %v198, %v366
    %368 = vmatprep.mubr.f32.mxu0 0.0
    %369 = vmatmul.mubr.f32.gmra.mrb[0].mxu0 %v116
    %v370 = vpop.f32.mrb[0].mxu0
    %v371 = vadd.f32 %v194, %v370
    %v372 = vpop.f32.mrb[0].mxu0
    %v373 = vadd.f32 %v198, %v372
    %374 = vmatprep.mubr.f32.mxu0 0.0
    %375 = vmatmul.mubr.f32.gmra.mrb[0].mxu0 %v117
    %v376 = vpop.f32.mrb[0].mxu0
    %v377 = vadd.f32 %v194, %v376
    %v378 = vpop.f32.mrb[0].mxu0
    %v379 = vadd.f32 %v198, %v378
    %380 = vdwg.mxu0
    %s381 = smul.u32 0, 4
    %s382 = smul.addr %s381, 8
    %s383 = scalar_lea.vmem [#allocation2], %s382
    %384 = vst [vmem:[%s383] sm:$0xff] %v270
    %385 = vst [vmem:[%s383 + $0x8] sm:$0xff] %v272
    %386 = vst [vmem:[%s383 + $0x10] sm:$0xff] %v359
    %387 = vst [vmem:[%s383 + $0x18] sm:$0xff] %v361
    %388 = vst [vmem:[%s383 + $0x20] sm:$0xff] %v276
    %389 = vst [vmem:[%s383 + $0x28] sm:$0xff] %v278
    %390 = vst [vmem:[%s383 + $0x30] sm:$0xff] %v365
    %391 = vst [vmem:[%s383 + $0x38] sm:$0xff] %v367
    %392 = vst [vmem:[%s383 + $0x40] sm:$0xff] %v282
    %393 = vst [vmem:[%s383 + $0x48] sm:$0xff] %v284
    %394 = vst [vmem:[%s383 + $0x50] sm:$0xff] %v371
    %395 = vst [vmem:[%s383 + $0x58] sm:$0xff] %v373
    %396 = vst [vmem:[%s383 + $0x60] sm:$0xff] %v288
    %397 = vst [vmem:[%s383 + $0x68] sm:$0xff] %v290
    %398 = vst [vmem:[%s383 + $0x70] sm:$0xff] %v377
    %399 = vst [vmem:[%s383 + $0x78] sm:$0xff] %v379
    %v400 = vld [vmem:[%s5] sm:$0xff]
    %v401 = vld [vmem:[#allocation13] sm:$0xff]
    loop: start=0, step=1, limit=2
    $region54: #{tpu_custom_call.1} parent=1 // loop_pre_header
      _
    $region55: #{tpu_custom_call.1} parent=1 // loop_header
      %s403 = sphi 0, %s407
      %p404 = scmp.ge.s32.totalorder %s403, 2
      %v408 = vphi %v400, %v1645
      %v409 = vphi %v401, %v1643
    $region56: #{tpu_custom_call.1} parent=1 // loop_header_branch
      %406 = sbr.rel (%p404) target = $region60
    $region57: #{tpu_custom_call.1} parent=1 // loop_body
      %s410 = sadd.s32 %s403, 1
      %p411 = scmp.lt.s32.totalorder %s410, 2
      // Predicated region
      $region61: #{tpu_custom_call.1} parent=57 // pred_check
        %p412 = pneg %p411
      $region62: #{tpu_custom_call.1} parent=57 // pred_check_branch
        %414 = sbr.rel (%p412) target = $region64
      $region63: #{tpu_custom_call.1} parent=57 // pred_region
        %s415 = smul.u32 %s410, 32
        %s416 = scalar_lea.vmem [#allocation4], %s415
        %v417 = vld [vmem:[%s416] sm:$0xff]
        %v418 = vld [vmem:[%s416 + $0x8] sm:$0xff]
        %v419 = vld [vmem:[%s416 + $0x10] sm:$0xff]
        %v420 = vld [vmem:[%s416 + $0x18] sm:$0xff]
        %v421 = vld [vmem:[#allocation7] sm:$0xff]
        %v422 = vld [vmem:[#allocation7 + $0x8] sm:$0xff]
        %v423 = vld [vmem:[#allocation7 + $0x10] sm:$0xff]
        %v424 = vld [vmem:[#allocation7 + $0x18] sm:$0xff]
        %v425 = vld [vmem:[#allocation7 + $0x20] sm:$0xff]
        %v426 = vld [vmem:[#allocation7 + $0x28] sm:$0xff]
        %v427 = vld [vmem:[#allocation7 + $0x30] sm:$0xff]
        %v428 = vld [vmem:[#allocation7 + $0x38] sm:$0xff]
        %v429 = vld [vmem:[#allocation7 + $0x40] sm:$0xff]
        %v430 = vld [vmem:[#allocation7 + $0x48] sm:$0xff]
        %v431 = vld [vmem:[#allocation7 + $0x50] sm:$0xff]
        %v432 = vld [vmem:[#allocation7 + $0x58] sm:$0xff]
        %v433 = vld [vmem:[#allocation7 + $0x60] sm:$0xff]
        %v434 = vld [vmem:[#allocation7 + $0x68] sm:$0xff]
        %v435 = vld [vmem:[#allocation7 + $0x70] sm:$0xff]
        %v436 = vld [vmem:[#allocation7 + $0x78] sm:$0xff]
        %v437 = vld [vmem:[#allocation7 + $0x80] sm:$0xff]
        %v438 = vld [vmem:[#allocation7 + $0x88] sm:$0xff]
        %v439 = vld [vmem:[#allocation7 + $0x90] sm:$0xff]
        %v440 = vld [vmem:[#allocation7 + $0x98] sm:$0xff]
        %v441 = vld [vmem:[#allocation7 + $0xa0] sm:$0xff]
        %v442 = vld [vmem:[#allocation7 + $0xa8] sm:$0xff]
        %v443 = vld [vmem:[#allocation7 + $0xb0] sm:$0xff]
        %v444 = vld [vmem:[#allocation7 + $0xb8] sm:$0xff]
        %v445 = vld [vmem:[#allocation7 + $0xc0] sm:$0xff]
        %v446 = vld [vmem:[#allocation7 + $0xc8] sm:$0xff]
        %v447 = vld [vmem:[#allocation7 + $0xd0] sm:$0xff]
        %v448 = vld [vmem:[#allocation7 + $0xd8] sm:$0xff]
        %v449 = vld [vmem:[#allocation7 + $0xe0] sm:$0xff]
        %v450 = vld [vmem:[#allocation7 + $0xe8] sm:$0xff]
        %v451 = vld [vmem:[#allocation7 + $0xf0] sm:$0xff]
        %v452 = vld [vmem:[#allocation7 + $0xf8] sm:$0xff]
        %v453 = vld [vmem:[#allocation7 + $0x100] sm:$0xff]
        %v454 = vld [vmem:[#allocation7 + $0x108] sm:$0xff]
        %v455 = vld [vmem:[#allocation7 + $0x110] sm:$0xff]
        %v456 = vld [vmem:[#allocation7 + $0x118] sm:$0xff]
        %v457 = vld [vmem:[#allocation7 + $0x120] sm:$0xff]
        %v458 = vld [vmem:[#allocation7 + $0x128] sm:$0xff]
        %v459 = vld [vmem:[#allocation7 + $0x130] sm:$0xff]
        %v460 = vld [vmem:[#allocation7 + $0x138] sm:$0xff]
        %v461 = vld [vmem:[#allocation7 + $0x140] sm:$0xff]
        %v462 = vld [vmem:[#allocation7 + $0x148] sm:$0xff]
        %v463 = vld [vmem:[#allocation7 + $0x150] sm:$0xff]
        %v464 = vld [vmem:[#allocation7 + $0x158] sm:$0xff]
        %v465 = vld [vmem:[#allocation7 + $0x160] sm:$0xff]
        %v466 = vld [vmem:[#allocation7 + $0x168] sm:$0xff]
        %v467 = vld [vmem:[#allocation7 + $0x170] sm:$0xff]
        %v468 = vld [vmem:[#allocation7 + $0x178] sm:$0xff]
        %v469 = vld [vmem:[#allocation7 + $0x180] sm:$0xff]
        %v470 = vld [vmem:[#allocation7 + $0x188] sm:$0xff]
        %v471 = vld [vmem:[#allocation7 + $0x190] sm:$0xff]
        %v472 = vld [vmem:[#allocation7 + $0x198] sm:$0xff]
        %v473 = vld [vmem:[#allocation7 + $0x1a0] sm:$0xff]
        %v474 = vld [vmem:[#allocation7 + $0x1a8] sm:$0xff]
        %v475 = vld [vmem:[#allocation7 + $0x1b0] sm:$0xff]
        %v476 = vld [vmem:[#allocation7 + $0x1b8] sm:$0xff]
        %v477 = vld [vmem:[#allocation7 + $0x1c0] sm:$0xff]
        %v478 = vld [vmem:[#allocation7 + $0x1c8] sm:$0xff]
        %v479 = vld [vmem:[#allocation7 + $0x1d0] sm:$0xff]
        %v480 = vld [vmem:[#allocation7 + $0x1d8] sm:$0xff]
        %v481 = vld [vmem:[#allocation7 + $0x1e0] sm:$0xff]
        %v482 = vld [vmem:[#allocation7 + $0x1e8] sm:$0xff]
        %v483 = vld [vmem:[#allocation7 + $0x1f0] sm:$0xff]
        %v484 = vld [vmem:[#allocation7 + $0x1f8] sm:$0xff]
        %485 = vmatprep.subr.mxu0 %v422
        %486 = vmatpush1.msra.mxu0 %v421
        %487 = vmatprep.subr.mxu0 %v426
        %488 = vmatpush1.msra.mxu0 %v425
        %489 = vmatprep.subr.mxu0 %v430
        %490 = vmatpush1.msra.mxu0 %v429
        %491 = vmatprep.subr.mxu0 %v434
        %492 = vmatpush1.msra.mxu0 %v433
        %493 = vmatprep.subr.mxu0 %v438
        %494 = vmatpush1.msra.mxu0 %v437
        %495 = vmatprep.subr.mxu0 %v442
        %496 = vmatpush1.msra.mxu0 %v441
        %497 = vmatprep.subr.mxu0 %v446
        %498 = vmatpush1.msra.mxu0 %v445
        %499 = vmatprep.subr.mxu0 %v450
        %500 = vmatpush1.msra.mxu0 %v449
        %501 = vmatprep.subr.mxu0 %v454
        %502 = vmatpush1.msra.mxu0 %v453
        %503 = vmatprep.subr.mxu0 %v458
        %504 = vmatpush1.msra.mxu0 %v457
        %505 = vmatprep.subr.mxu0 %v462
        %506 = vmatpush1.msra.mxu0 %v461
        %507 = vmatprep.subr.mxu0 %v466
        %508 = vmatpush1.msra.mxu0 %v465
        %509 = vmatprep.subr.mxu0 %v470
        %510 = vmatpush1.msra.mxu0 %v469
        %511 = vmatprep.subr.mxu0 %v474
        %512 = vmatpush1.msra.mxu0 %v473
        %513 = vmatprep.subr.mxu0 %v478
        %514 = vmatpush1.msra.mxu0 %v477
        %515 = vmatprep.subr.mxu0 %v482
        %516 = vmatpush1.msra.mxu0 %v481
        %517 = vmatprep.subr.mxu0 0.0
        %518 = vmatpush1.msra.mxu0 0.0
        %519 = vmatprep.subr.mxu0 0.0
        %520 = vmatpush1.msra.mxu0 0.0
        %521 = vmatprep.subr.mxu0 0.0
        %522 = vmatpush1.msra.mxu0 0.0
        %523 = vmatprep.subr.mxu0 0.0
        %524 = vmatpush1.msra.mxu0 0.0
        %525 = vmatprep.subr.mxu0 0.0
        %526 = vmatpush1.msra.mxu0 0.0
        %527 = vmatprep.subr.mxu0 0.0
        %528 = vmatpush1.msra.mxu0 0.0
        %529 = vmatprep.subr.mxu0 0.0
        %530 = vmatpush1.msra.mxu0 0.0
        %531 = vmatprep.subr.mxu0 0.0
        %532 = vmatpush1.msra.mxu0 0.0
        %533 = vmatprep.subr.mxu0 0.0
        %534 = vmatpush1.msra.mxu0 0.0
        %535 = vmatprep.subr.mxu0 0.0
        %536 = vmatpush1.msra.mxu0 0.0
        %537 = vmatprep.subr.mxu0 0.0
        %538 = vmatpush1.msra.mxu0 0.0
        %539 = vmatprep.subr.mxu0 0.0
        %540 = vmatpush1.msra.mxu0 0.0
        %541 = vmatprep.subr.mxu0 0.0
        %542 = vmatpush1.msra.mxu0 0.0
        %543 = vmatprep.subr.mxu0 0.0
        %544 = vmatpush1.msra.mxu0 0.0
        %545 = vmatprep.subr.mxu0 0.0
        %546 = vmatpush1.msra.mxu0 0.0
        %547 = vmatprep.subr.mxu0 0.0
        %548 = vmatpush1.msra.mxu0 0.0
        %549 = vmatprep.mubr.f32.mxu0 0.0
        %550 = vmatmul.mubr.f32.gmra.mrb[0].mxu0 %v417
        %v551 = vpop.f32.mrb[0].mxu0
        %v552 = vadd.f32 %v186, %v551
        %v553 = vpop.f32.mrb[0].mxu0
        %v554 = vadd.f32 %v190, %v553
        %555 = vmatprep.mubr.f32.mxu0 0.0
        %556 = vmatmul.mubr.f32.gmra.mrb[0].mxu0 %v418
        %v557 = vpop.f32.mrb[0].mxu0
        %v558 = vadd.f32 %v186, %v557
        %v559 = vpop.f32.mrb[0].mxu0
        %v560 = vadd.f32 %v190, %v559
        %561 = vmatprep.mubr.f32.mxu0 0.0
        %562 = vmatmul.mubr.f32.gmra.mrb[0].mxu0 %v419
        %v563 = vpop.f32.mrb[0].mxu0
        %v564 = vadd.f32 %v186, %v563
        %v565 = vpop.f32.mrb[0].mxu0
        %v566 = vadd.f32 %v190, %v565
        %567 = vmatprep.mubr.f32.mxu0 0.0
        %568 = vmatmul.mubr.f32.gmra.mrb[0].mxu0 %v420
        %v569 = vpop.f32.mrb[0].mxu0
        %v570 = vadd.f32 %v186, %v569
        %v571 = vpop.f32.mrb[0].mxu0
        %v572 = vadd.f32 %v190, %v571
        %573 = vdwg.mxu0
        %574 = vmatprep.subr.mxu0 %v424
        %575 = vmatpush1.msra.mxu0 %v423
        %576 = vmatprep.subr.mxu0 %v428
        %577 = vmatpush1.msra.mxu0 %v427
        %578 = vmatprep.subr.mxu0 %v432
        %579 = vmatpush1.msra.mxu0 %v431
        %580 = vmatprep.subr.mxu0 %v436
        %581 = vmatpush1.msra.mxu0 %v435
        %582 = vmatprep.subr.mxu0 %v440
        %583 = vmatpush1.msra.mxu0 %v439
        %584 = vmatprep.subr.mxu0 %v444
        %585 = vmatpush1.msra.mxu0 %v443
        %586 = vmatprep.subr.mxu0 %v448
        %587 = vmatpush1.msra.mxu0 %v447
        %588 = vmatprep.subr.mxu0 %v452
        %589 = vmatpush1.msra.mxu0 %v451
        %590 = vmatprep.subr.mxu0 %v456
        %591 = vmatpush1.msra.mxu0 %v455
        %592 = vmatprep.subr.mxu0 %v460
        %593 = vmatpush1.msra.mxu0 %v459
        %594 = vmatprep.subr.mxu0 %v464
        %595 = vmatpush1.msra.mxu0 %v463
        %596 = vmatprep.subr.mxu0 %v468
        %597 = vmatpush1.msra.mxu0 %v467
        %598 = vmatprep.subr.mxu0 %v472
        %599 = vmatpush1.msra.mxu0 %v471
        %600 = vmatprep.subr.mxu0 %v476
        %601 = vmatpush1.msra.mxu0 %v475
        %602 = vmatprep.subr.mxu0 %v480
        %603 = vmatpush1.msra.mxu0 %v479
        %604 = vmatprep.subr.mxu0 %v484
        %605 = vmatpush1.msra.mxu0 %v483
        %606 = vmatprep.subr.mxu0 0.0
        %607 = vmatpush1.msra.mxu0 0.0
        %608 = vmatprep.subr.mxu0 0.0
        %609 = vmatpush1.msra.mxu0 0.0
        %610 = vmatprep.subr.mxu0 0.0
        %611 = vmatpush1.msra.mxu0 0.0
        %612 = vmatprep.subr.mxu0 0.0
        %613 = vmatpush1.msra.mxu0 0.0
        %614 = vmatprep.subr.mxu0 0.0
        %615 = vmatpush1.msra.mxu0 0.0
        %616 = vmatprep.subr.mxu0 0.0
        %617 = vmatpush1.msra.mxu0 0.0
        %618 = vmatprep.subr.mxu0 0.0
        %619 = vmatpush1.msra.mxu0 0.0
        %620 = vmatprep.subr.mxu0 0.0
        %621 = vmatpush1.msra.mxu0 0.0
        %622 = vmatprep.subr.mxu0 0.0
        %623 = vmatpush1.msra.mxu0 0.0
        %624 = vmatprep.subr.mxu0 0.0
        %625 = vmatpush1.msra.mxu0 0.0
        %626 = vmatprep.subr.mxu0 0.0
        %627 = vmatpush1.msra.mxu0 0.0
        %628 = vmatprep.subr.mxu0 0.0
        %629 = vmatpush1.msra.mxu0 0.0
        %630 = vmatprep.subr.mxu0 0.0
        %631 = vmatpush1.msra.mxu0 0.0
        %632 = vmatprep.subr.mxu0 0.0
        %633 = vmatpush1.msra.mxu0 0.0
        %634 = vmatprep.subr.mxu0 0.0
        %635 = vmatpush1.msra.mxu0 0.0
        %636 = vmatprep.subr.mxu0 0.0
        %637 = vmatpush1.msra.mxu0 0.0
        %638 = vmatprep.mubr.f32.mxu0 0.0
        %639 = vmatmul.mubr.f32.gmra.mrb[0].mxu0 %v417
        %v640 = vpop.f32.mrb[0].mxu0
        %v641 = vadd.f32 %v194, %v640
        %v642 = vpop.f32.mrb[0].mxu0
        %v643 = vadd.f32 %v198, %v642
        %644 = vmatprep.mubr.f32.mxu0 0.0
        %645 = vmatmul.mubr.f32.gmra.mrb[0].mxu0 %v418
        %v646 = vpop.f32.mrb[0].mxu0
        %v647 = vadd.f32 %v194, %v646
        %v648 = vpop.f32.mrb[0].mxu0
        %v649 = vadd.f32 %v198, %v648
        %650 = vmatprep.mubr.f32.mxu0 0.0
        %651 = vmatmul.mubr.f32.gmra.mrb[0].mxu0 %v419
        %v652 = vpop.f32.mrb[0].mxu0
        %v653 = vadd.f32 %v194, %v652
        %v654 = vpop.f32.mrb[0].mxu0
        %v655 = vadd.f32 %v198, %v654
        %656 = vmatprep.mubr.f32.mxu0 0.0
        %657 = vmatmul.mubr.f32.gmra.mrb[0].mxu0 %v420
        %v658 = vpop.f32.mrb[0].mxu0
        %v659 = vadd.f32 %v194, %v658
        %v660 = vpop.f32.mrb[0].mxu0
        %v661 = vadd.f32 %v198, %v660
        %662 = vdwg.mxu0
        %s663 = sshra.s32 %s415, 3
        %s664 = sand.u32 %s415, 7
        %s665 = smul.u32 %s663, 4
        %s666 = smul.addr %s665, 8
        %s667 = scalar_lea.vmem [#allocation2], %s666
        %668 = vst [vmem:[%s667] sm:$0xff] %v552
        %669 = vst [vmem:[%s667 + $0x8] sm:$0xff] %v554
        %670 = vst [vmem:[%s667 + $0x10] sm:$0xff] %v641
        %671 = vst [vmem:[%s667 + $0x18] sm:$0xff] %v643
        %672 = vst [vmem:[%s667 + $0x20] sm:$0xff] %v558
        %673 = vst [vmem:[%s667 + $0x28] sm:$0xff] %v560
        %674 = vst [vmem:[%s667 + $0x30] sm:$0xff] %v647
        %675 = vst [vmem:[%s667 + $0x38] sm:$0xff] %v649
        %676 = vst [vmem:[%s667 + $0x40] sm:$0xff] %v564
        %677 = vst [vmem:[%s667 + $0x48] sm:$0xff] %v566
        %678 = vst [vmem:[%s667 + $0x50] sm:$0xff] %v653
        %679 = vst [vmem:[%s667 + $0x58] sm:$0xff] %v655
        %680 = vst [vmem:[%s667 + $0x60] sm:$0xff] %v570
        %681 = vst [vmem:[%s667 + $0x68] sm:$0xff] %v572
        %682 = vst [vmem:[%s667 + $0x70] sm:$0xff] %v659
        %683 = vst [vmem:[%s667 + $0x78] sm:$0xff] %v661
      $region64: #{tpu_custom_call.1} parent=57 // pred_fallthru
        _
      %s684 = smul.u32 %s403, 32
      %s685 = sshra.s32 %s684, 3
      %s686 = sand.u32 %s684, 7
      %s687 = smul.u32 %s685, 4
      %s688 = smul.addr %s687, 8
      %s689 = scalar_lea.vmem [#allocation2], %s688
      %v690 = vld [vmem:[%s689] sm:$0xff]
      %v691 = vld [vmem:[%s689 + $0x8] sm:$0xff]
      %v692 = vld [vmem:[%s689 + $0x10] sm:$0xff]
      %v693 = vld [vmem:[%s689 + $0x18] sm:$0xff]
      %v694 = vld [vmem:[#allocation10] sm:$0xff]
      %v695 = vld [vmem:[#allocation10 + $0x8] sm:$0xff]
      %v696 = vld [vmem:[#allocation10 + $0x10] sm:$0xff]
      %v697 = vld [vmem:[#allocation10 + $0x18] sm:$0xff]
      %v698 = vld [vmem:[#allocation10 + $0x20] sm:$0xff]
      %v699 = vld [vmem:[#allocation10 + $0x28] sm:$0xff]
      %v700 = vld [vmem:[#allocation10 + $0x30] sm:$0xff]
      %v701 = vld [vmem:[#allocation10 + $0x38] sm:$0xff]
      %v702 = vld [vmem:[#allocation10 + $0x40] sm:$0xff]
      %v703 = vld [vmem:[#allocation10 + $0x48] sm:$0xff]
      %v704 = vld [vmem:[#allocation10 + $0x50] sm:$0xff]
      %v705 = vld [vmem:[#allocation10 + $0x58] sm:$0xff]
      %v706 = vld [vmem:[#allocation10 + $0x60] sm:$0xff]
      %v707 = vld [vmem:[#allocation10 + $0x68] sm:$0xff]
      %v708 = vld [vmem:[#allocation10 + $0x70] sm:$0xff]
      %v709 = vld [vmem:[#allocation10 + $0x78] sm:$0xff]
      %v710 = vld [vmem:[#allocation10 + $0x80] sm:$0xff]
      %v711 = vld [vmem:[#allocation10 + $0x88] sm:$0xff]
      %v712 = vld [vmem:[#allocation10 + $0x90] sm:$0xff]
      %v713 = vld [vmem:[#allocation10 + $0x98] sm:$0xff]
      %v714 = vld [vmem:[#allocation10 + $0xa0] sm:$0xff]
      %v715 = vld [vmem:[#allocation10 + $0xa8] sm:$0xff]
      %v716 = vld [vmem:[#allocation10 + $0xb0] sm:$0xff]
      %v717 = vld [vmem:[#allocation10 + $0xb8] sm:$0xff]
      %v718 = vld [vmem:[#allocation10 + $0xc0] sm:$0xff]
      %v719 = vld [vmem:[#allocation10 + $0xc8] sm:$0xff]
      %v720 = vld [vmem:[#allocation10 + $0xd0] sm:$0xff]
      %v721 = vld [vmem:[#allocation10 + $0xd8] sm:$0xff]
      %v722 = vld [vmem:[#allocation10 + $0xe0] sm:$0xff]
      %v723 = vld [vmem:[#allocation10 + $0xe8] sm:$0xff]
      %v724 = vld [vmem:[#allocation10 + $0xf0] sm:$0xff]
      %v725 = vld [vmem:[#allocation10 + $0xf8] sm:$0xff]
      %v726 = vld [vmem:[#allocation10 + $0x100] sm:$0xff]
      %v727 = vld [vmem:[#allocation10 + $0x108] sm:$0xff]
      %v728 = vld [vmem:[#allocation10 + $0x110] sm:$0xff]
      %v729 = vld [vmem:[#allocation10 + $0x118] sm:$0xff]
      %v730 = vld [vmem:[#allocation10 + $0x120] sm:$0xff]
      %v731 = vld [vmem:[#allocation10 + $0x128] sm:$0xff]
      %v732 = vld [vmem:[#allocation10 + $0x130] sm:$0xff]
      %v733 = vld [vmem:[#allocation10 + $0x138] sm:$0xff]
      %v734 = vld [vmem:[#allocation10 + $0x140] sm:$0xff]
      %v735 = vld [vmem:[#allocation10 + $0x148] sm:$0xff]
      %v736 = vld [vmem:[#allocation10 + $0x150] sm:$0xff]
      %v737 = vld [vmem:[#allocation10 + $0x158] sm:$0xff]
      %v738 = vld [vmem:[#allocation10 + $0x160] sm:$0xff]
      %v739 = vld [vmem:[#allocation10 + $0x168] sm:$0xff]
      %v740 = vld [vmem:[#allocation10 + $0x170] sm:$0xff]
      %v741 = vld [vmem:[#allocation10 + $0x178] sm:$0xff]
      %v742 = vld [vmem:[#allocation10 + $0x180] sm:$0xff]
      %v743 = vld [vmem:[#allocation10 + $0x188] sm:$0xff]
      %v744 = vld [vmem:[#allocation10 + $0x190] sm:$0xff]
      %v745 = vld [vmem:[#allocation10 + $0x198] sm:$0xff]
      %v746 = vld [vmem:[#allocation10 + $0x1a0] sm:$0xff]
      %v747 = vld [vmem:[#allocation10 + $0x1a8] sm:$0xff]
      %v748 = vld [vmem:[#allocation10 + $0x1b0] sm:$0xff]
      %v749 = vld [vmem:[#allocation10 + $0x1b8] sm:$0xff]
      %v750 = vld [vmem:[#allocation10 + $0x1c0] sm:$0xff]
      %v751 = vld [vmem:[#allocation10 + $0x1c8] sm:$0xff]
      %v752 = vld [vmem:[#allocation10 + $0x1d0] sm:$0xff]
      %v753 = vld [vmem:[#allocation10 + $0x1d8] sm:$0xff]
      %v754 = vld [vmem:[#allocation10 + $0x1e0] sm:$0xff]
      %v755 = vld [vmem:[#allocation10 + $0x1e8] sm:$0xff]
      %v756 = vld [vmem:[#allocation10 + $0x1f0] sm:$0xff]
      %v757 = vld [vmem:[#allocation10 + $0x1f8] sm:$0xff]
      %758 = vmatprep.subr.mxu0 %v695
      %759 = vmatpush1.msra.mxu0 %v694
      %760 = vmatprep.subr.mxu0 %v699
      %761 = vmatpush1.msra.mxu0 %v698
      %762 = vmatprep.subr.mxu0 %v703
      %763 = vmatpush1.msra.mxu0 %v702
      %764 = vmatprep.subr.mxu0 %v707
      %765 = vmatpush1.msra.mxu0 %v706
      %766 = vmatprep.subr.mxu0 %v711
      %767 = vmatpush1.msra.mxu0 %v710
      %768 = vmatprep.subr.mxu0 %v715
      %769 = vmatpush1.msra.mxu0 %v714
      %770 = vmatprep.subr.mxu0 %v719
      %771 = vmatpush1.msra.mxu0 %v718
      %772 = vmatprep.subr.mxu0 %v723
      %773 = vmatpush1.msra.mxu0 %v722
      %774 = vmatprep.subr.mxu0 %v727
      %775 = vmatpush1.msra.mxu0 %v726
      %776 = vmatprep.subr.mxu0 %v731
      %777 = vmatpush1.msra.mxu0 %v730
      %778 = vmatprep.subr.mxu0 %v735
      %779 = vmatpush1.msra.mxu0 %v734
      %780 = vmatprep.subr.mxu0 %v739
      %781 = vmatpush1.msra.mxu0 %v738
      %782 = vmatprep.subr.mxu0 %v743
      %783 = vmatpush1.msra.mxu0 %v742
      %784 = vmatprep.subr.mxu0 %v747
      %785 = vmatpush1.msra.mxu0 %v746
      %786 = vmatprep.subr.mxu0 %v751
      %787 = vmatpush1.msra.mxu0 %v750
      %788 = vmatprep.subr.mxu0 %v755
      %789 = vmatpush1.msra.mxu0 %v754
      %790 = vmatprep.subr.mxu0 0.0
      %791 = vmatpush1.msra.mxu0 0.0
      %792 = vmatprep.subr.mxu0 0.0
      %793 = vmatpush1.msra.mxu0 0.0
      %794 = vmatprep.subr.mxu0 0.0
      %795 = vmatpush1.msra.mxu0 0.0
      %796 = vmatprep.subr.mxu0 0.0
      %797 = vmatpush1.msra.mxu0 0.0
      %798 = vmatprep.subr.mxu0 0.0
      %799 = vmatpush1.msra.mxu0 0.0
      %800 = vmatprep.subr.mxu0 0.0
      %801 = vmatpush1.msra.mxu0 0.0
      %802 = vmatprep.subr.mxu0 0.0
      %803 = vmatpush1.msra.mxu0 0.0
      %804 = vmatprep.subr.mxu0 0.0
      %805 = vmatpush1.msra.mxu0 0.0
      %806 = vmatprep.subr.mxu0 0.0
      %807 = vmatpush1.msra.mxu0 0.0
      %808 = vmatprep.subr.mxu0 0.0
      %809 = vmatpush1.msra.mxu0 0.0
      %810 = vmatprep.subr.mxu0 0.0
      %811 = vmatpush1.msra.mxu0 0.0
      %812 = vmatprep.subr.mxu0 0.0
      %813 = vmatpush1.msra.mxu0 0.0
      %814 = vmatprep.subr.mxu0 0.0
      %815 = vmatpush1.msra.mxu0 0.0
      %816 = vmatprep.subr.mxu0 0.0
      %817 = vmatpush1.msra.mxu0 0.0
      %818 = vmatprep.subr.mxu0 0.0
      %819 = vmatpush1.msra.mxu0 0.0
      %820 = vmatprep.subr.mxu0 0.0
      %821 = vmatpush1.msra.mxu0 0.0
      %822 = vmatprep.mubr.f32.mxu0 0.0
      %823 = vmatmul.mubr.f32.gmra.mrb[0].mxu0 %v408
      %v824 = vpop.f32.mrb[0].mxu0
      %v825 = vadd.f32 0.0, %v824
      %v826 = vpop.f32.mrb[0].mxu0
      %v827 = vadd.f32 0.0, %v826
      %828 = vdwg.mxu0
      %829 = vmatprep.subr.mxu0 %v697
      %830 = vmatpush1.msra.mxu0 %v696
      %831 = vmatprep.subr.mxu0 %v701
      %832 = vmatpush1.msra.mxu0 %v700
      %833 = vmatprep.subr.mxu0 %v705
      %834 = vmatpush1.msra.mxu0 %v704
      %835 = vmatprep.subr.mxu0 %v709
      %836 = vmatpush1.msra.mxu0 %v708
      %837 = vmatprep.subr.mxu0 %v713
      %838 = vmatpush1.msra.mxu0 %v712
      %839 = vmatprep.subr.mxu0 %v717
      %840 = vmatpush1.msra.mxu0 %v716
      %841 = vmatprep.subr.mxu0 %v721
      %842 = vmatpush1.msra.mxu0 %v720
      %843 = vmatprep.subr.mxu0 %v725
      %844 = vmatpush1.msra.mxu0 %v724
      %845 = vmatprep.subr.mxu0 %v729
      %846 = vmatpush1.msra.mxu0 %v728
      %847 = vmatprep.subr.mxu0 %v733
      %848 = vmatpush1.msra.mxu0 %v732
      %849 = vmatprep.subr.mxu0 %v737
      %850 = vmatpush1.msra.mxu0 %v736
      %851 = vmatprep.subr.mxu0 %v741
      %852 = vmatpush1.msra.mxu0 %v740
      %853 = vmatprep.subr.mxu0 %v745
      %854 = vmatpush1.msra.mxu0 %v744
      %855 = vmatprep.subr.mxu0 %v749
      %856 = vmatpush1.msra.mxu0 %v748
      %857 = vmatprep.subr.mxu0 %v753
      %858 = vmatpush1.msra.mxu0 %v752
      %859 = vmatprep.subr.mxu0 %v757
      %860 = vmatpush1.msra.mxu0 %v756
      %861 = vmatprep.subr.mxu0 0.0
      %862 = vmatpush1.msra.mxu0 0.0
      %863 = vmatprep.subr.mxu0 0.0
      %864 = vmatpush1.msra.mxu0 0.0
      %865 = vmatprep.subr.mxu0 0.0
      %866 = vmatpush1.msra.mxu0 0.0
      %867 = vmatprep.subr.mxu0 0.0
      %868 = vmatpush1.msra.mxu0 0.0
      %869 = vmatprep.subr.mxu0 0.0
      %870 = vmatpush1.msra.mxu0 0.0
      %871 = vmatprep.subr.mxu0 0.0
      %872 = vmatpush1.msra.mxu0 0.0
      %873 = vmatprep.subr.mxu0 0.0
      %874 = vmatpush1.msra.mxu0 0.0
      %875 = vmatprep.subr.mxu0 0.0
      %876 = vmatpush1.msra.mxu0 0.0
      %877 = vmatprep.subr.mxu0 0.0
      %878 = vmatpush1.msra.mxu0 0.0
      %879 = vmatprep.subr.mxu0 0.0
      %880 = vmatpush1.msra.mxu0 0.0
      %881 = vmatprep.subr.mxu0 0.0
      %882 = vmatpush1.msra.mxu0 0.0
      %883 = vmatprep.subr.mxu0 0.0
      %884 = vmatpush1.msra.mxu0 0.0
      %885 = vmatprep.subr.mxu0 0.0
      %886 = vmatpush1.msra.mxu0 0.0
      %887 = vmatprep.subr.mxu0 0.0
      %888 = vmatpush1.msra.mxu0 0.0
      %889 = vmatprep.subr.mxu0 0.0
      %890 = vmatpush1.msra.mxu0 0.0
      %891 = vmatprep.subr.mxu0 0.0
      %892 = vmatpush1.msra.mxu0 0.0
      %893 = vmatprep.mubr.f32.mxu0 0.0
      %894 = vmatmul.mubr.f32.gmra.mrb[0].mxu0 %v408
      %v895 = vpop.f32.mrb[0].mxu0
      %v896 = vadd.f32 0.0, %v895
      %v897 = vpop.f32.mrb[0].mxu0
      %v898 = vadd.f32 0.0, %v897
      %899 = vdwg.mxu0
      %v900 = vadd.f32 %v690, %v825
      %v901 = vadd.f32 %v691, %v827
      %v902 = vadd.f32 %v692, %v896
      %v903 = vadd.f32 %v693, %v898
      %v904 = vmul.f32 %v900, 0.5
      %v905 = vtanh.pop %v904
      %v906 = vmul.f32 %v905, 0.5
      %v907 = vadd.f32 %v906, 0.5
      %v908 = vmul.f32 %v901, 0.5
      %v909 = vtanh.pop %v908
      %v910 = vmul.f32 %v909, 0.5
      %v911 = vadd.f32 %v910, 0.5
      %v912 = vtanh.pop %v902
      %v913 = vmul.f32 %v903, 0.5
      %v914 = vtanh.pop %v913
      %v915 = vmul.f32 %v914, 0.5
      %v916 = vadd.f32 %v915, 0.5
      %v917 = vmul.f32 %v911, %v409
      %v918 = vmul.f32 %v907, %v912
      %v919 = vadd.f32 %v917, %v918
      %v920 = vtanh.pop %v919
      %v921 = vmul.f32 %v916, %v920
      %s922 = scalar_lea.vmem [#allocation15], %s684
      %923 = vst [vmem:[%s922] sm:$0xff] %v921
      %s924 = smul.u32 %s403, 4
      %s925 = sadd.s32 %s924, 1
      %s926 = smul.u32 %s925, 8
      %s927 = sshra.s32 %s926, 3
      %s928 = sand.u32 %s926, 7
      %s929 = smul.u32 %s927, 4
      %s930 = smul.addr %s929, 8
      %s931 = scalar_lea.vmem [#allocation2], %s930
      %v932 = vld [vmem:[%s931] sm:$0xff]
      %v933 = vld [vmem:[%s931 + $0x8] sm:$0xff]
      %v934 = vld [vmem:[%s931 + $0x10] sm:$0xff]
      %v935 = vld [vmem:[%s931 + $0x18] sm:$0xff]
      %v936 = vld [vmem:[#allocation10] sm:$0xff]
      %v937 = vld [vmem:[#allocation10 + $0x8] sm:$0xff]
      %v938 = vld [vmem:[#allocation10 + $0x10] sm:$0xff]
      %v939 = vld [vmem:[#allocation10 + $0x18] sm:$0xff]
      %v940 = vld [vmem:[#allocation10 + $0x20] sm:$0xff]
      %v941 = vld [vmem:[#allocation10 + $0x28] sm:$0xff]
      %v942 = vld [vmem:[#allocation10 + $0x30] sm:$0xff]
      %v943 = vld [vmem:[#allocation10 + $0x38] sm:$0xff]
      %v944 = vld [vmem:[#allocation10 + $0x40] sm:$0xff]
      %v945 = vld [vmem:[#allocation10 + $0x48] sm:$0xff]
      %v946 = vld [vmem:[#allocation10 + $0x50] sm:$0xff]
      %v947 = vld [vmem:[#allocation10 + $0x58] sm:$0xff]
      %v948 = vld [vmem:[#allocation10 + $0x60] sm:$0xff]
      %v949 = vld [vmem:[#allocation10 + $0x68] sm:$0xff]
      %v950 = vld [vmem:[#allocation10 + $0x70] sm:$0xff]
      %v951 = vld [vmem:[#allocation10 + $0x78] sm:$0xff]
      %v952 = vld [vmem:[#allocation10 + $0x80] sm:$0xff]
      %v953 = vld [vmem:[#allocation10 + $0x88] sm:$0xff]
      %v954 = vld [vmem:[#allocation10 + $0x90] sm:$0xff]
      %v955 = vld [vmem:[#allocation10 + $0x98] sm:$0xff]
      %v956 = vld [vmem:[#allocation10 + $0xa0] sm:$0xff]
      %v957 = vld [vmem:[#allocation10 + $0xa8] sm:$0xff]
      %v958 = vld [vmem:[#allocation10 + $0xb0] sm:$0xff]
      %v959 = vld [vmem:[#allocation10 + $0xb8] sm:$0xff]
      %v960 = vld [vmem:[#allocation10 + $0xc0] sm:$0xff]
      %v961 = vld [vmem:[#allocation10 + $0xc8] sm:$0xff]
      %v962 = vld [vmem:[#allocation10 + $0xd0] sm:$0xff]
      %v963 = vld [vmem:[#allocation10 + $0xd8] sm:$0xff]
      %v964 = vld [vmem:[#allocation10 + $0xe0] sm:$0xff]
      %v965 = vld [vmem:[#allocation10 + $0xe8] sm:$0xff]
      %v966 = vld [vmem:[#allocation10 + $0xf0] sm:$0xff]
      %v967 = vld [vmem:[#allocation10 + $0xf8] sm:$0xff]
      %v968 = vld [vmem:[#allocation10 + $0x100] sm:$0xff]
      %v969 = vld [vmem:[#allocation10 + $0x108] sm:$0xff]
      %v970 = vld [vmem:[#allocation10 + $0x110] sm:$0xff]
      %v971 = vld [vmem:[#allocation10 + $0x118] sm:$0xff]
      %v972 = vld [vmem:[#allocation10 + $0x120] sm:$0xff]
      %v973 = vld [vmem:[#allocation10 + $0x128] sm:$0xff]
      %v974 = vld [vmem:[#allocation10 + $0x130] sm:$0xff]
      %v975 = vld [vmem:[#allocation10 + $0x138] sm:$0xff]
      %v976 = vld [vmem:[#allocation10 + $0x140] sm:$0xff]
      %v977 = vld [vmem:[#allocation10 + $0x148] sm:$0xff]
      %v978 = vld [vmem:[#allocation10 + $0x150] sm:$0xff]
      %v979 = vld [vmem:[#allocation10 + $0x158] sm:$0xff]
      %v980 = vld [vmem:[#allocation10 + $0x160] sm:$0xff]
      %v981 = vld [vmem:[#allocation10 + $0x168] sm:$0xff]
      %v982 = vld [vmem:[#allocation10 + $0x170] sm:$0xff]
      %v983 = vld [vmem:[#allocation10 + $0x178] sm:$0xff]
      %v984 = vld [vmem:[#allocation10 + $0x180] sm:$0xff]
      %v985 = vld [vmem:[#allocation10 + $0x188] sm:$0xff]
      %v986 = vld [vmem:[#allocation10 + $0x190] sm:$0xff]
      %v987 = vld [vmem:[#allocation10 + $0x198] sm:$0xff]
      %v988 = vld [vmem:[#allocation10 + $0x1a0] sm:$0xff]
      %v989 = vld [vmem:[#allocation10 + $0x1a8] sm:$0xff]
      %v990 = vld [vmem:[#allocation10 + $0x1b0] sm:$0xff]
      %v991 = vld [vmem:[#allocation10 + $0x1b8] sm:$0xff]
      %v992 = vld [vmem:[#allocation10 + $0x1c0] sm:$0xff]
      %v993 = vld [vmem:[#allocation10 + $0x1c8] sm:$0xff]
      %v994 = vld [vmem:[#allocation10 + $0x1d0] sm:$0xff]
      %v995 = vld [vmem:[#allocation10 + $0x1d8] sm:$0xff]
      %v996 = vld [vmem:[#allocation10 + $0x1e0] sm:$0xff]
      %v997 = vld [vmem:[#allocation10 + $0x1e8] sm:$0xff]
      %v998 = vld [vmem:[#allocation10 + $0x1f0] sm:$0xff]
      %v999 = vld [vmem:[#allocation10 + $0x1f8] sm:$0xff]
      %1000 = vmatprep.subr.mxu0 %v937
      %1001 = vmatpush1.msra.mxu0 %v936
      %1002 = vmatprep.subr.mxu0 %v941
      %1003 = vmatpush1.msra.mxu0 %v940
      %1004 = vmatprep.subr.mxu0 %v945
      %1005 = vmatpush1.msra.mxu0 %v944
      %1006 = vmatprep.subr.mxu0 %v949
      %1007 = vmatpush1.msra.mxu0 %v948
      %1008 = vmatprep.subr.mxu0 %v953
      %1009 = vmatpush1.msra.mxu0 %v952
      %1010 = vmatprep.subr.mxu0 %v957
      %1011 = vmatpush1.msra.mxu0 %v956
      %1012 = vmatprep.subr.mxu0 %v961
      %1013 = vmatpush1.msra.mxu0 %v960
      %1014 = vmatprep.subr.mxu0 %v965
      %1015 = vmatpush1.msra.mxu0 %v964
      %1016 = vmatprep.subr.mxu0 %v969
      %1017 = vmatpush1.msra.mxu0 %v968
      %1018 = vmatprep.subr.mxu0 %v973
      %1019 = vmatpush1.msra.mxu0 %v972
      %1020 = vmatprep.subr.mxu0 %v977
      %1021 = vmatpush1.msra.mxu0 %v976
      %1022 = vmatprep.subr.mxu0 %v981
      %1023 = vmatpush1.msra.mxu0 %v980
      %1024 = vmatprep.subr.mxu0 %v985
      %1025 = vmatpush1.msra.mxu0 %v984
      %1026 = vmatprep.subr.mxu0 %v989
      %1027 = vmatpush1.msra.mxu0 %v988
      %1028 = vmatprep.subr.mxu0 %v993
      %1029 = vmatpush1.msra.mxu0 %v992
      %1030 = vmatprep.subr.mxu0 %v997
      %1031 = vmatpush1.msra.mxu0 %v996
      %1032 = vmatprep.subr.mxu0 0.0
      %1033 = vmatpush1.msra.mxu0 0.0
      %1034 = vmatprep.subr.mxu0 0.0
      %1035 = vmatpush1.msra.mxu0 0.0
      %1036 = vmatprep.subr.mxu0 0.0
      %1037 = vmatpush1.msra.mxu0 0.0
      %1038 = vmatprep.subr.mxu0 0.0
      %1039 = vmatpush1.msra.mxu0 0.0
      %1040 = vmatprep.subr.mxu0 0.0
      %1041 = vmatpush1.msra.mxu0 0.0
      %1042 = vmatprep.subr.mxu0 0.0
      %1043 = vmatpush1.msra.mxu0 0.0
      %1044 = vmatprep.subr.mxu0 0.0
      %1045 = vmatpush1.msra.mxu0 0.0
      %1046 = vmatprep.subr.mxu0 0.0
      %1047 = vmatpush1.msra.mxu0 0.0
      %1048 = vmatprep.subr.mxu0 0.0
      %1049 = vmatpush1.msra.mxu0 0.0
      %1050 = vmatprep.subr.mxu0 0.0
      %1051 = vmatpush1.msra.mxu0 0.0
      %1052 = vmatprep.subr.mxu0 0.0
      %1053 = vmatpush1.msra.mxu0 0.0
      %1054 = vmatprep.subr.mxu0 0.0
      %1055 = vmatpush1.msra.mxu0 0.0
      %1056 = vmatprep.subr.mxu0 0.0
      %1057 = vmatpush1.msra.mxu0 0.0
      %1058 = vmatprep.subr.mxu0 0.0
      %1059 = vmatpush1.msra.mxu0 0.0
      %1060 = vmatprep.subr.mxu0 0.0
      %1061 = vmatpush1.msra.mxu0 0.0
      %1062 = vmatprep.subr.mxu0 0.0
      %1063 = vmatpush1.msra.mxu0 0.0
      %1064 = vmatprep.mubr.f32.mxu0 0.0
      %1065 = vmatmul.mubr.f32.gmra.mrb[0].mxu0 %v921
      %v1066 = vpop.f32.mrb[0].mxu0
      %v1067 = vadd.f32 0.0, %v1066
      %v1068 = vpop.f32.mrb[0].mxu0
      %v1069 = vadd.f32 0.0, %v1068
      %1070 = vdwg.mxu0
      %1071 = vmatprep.subr.mxu0 %v939
      %1072 = vmatpush1.msra.mxu0 %v938
      %1073 = vmatprep.subr.mxu0 %v943
      %1074 = vmatpush1.msra.mxu0 %v942
      %1075 = vmatprep.subr.mxu0 %v947
      %1076 = vmatpush1.msra.mxu0 %v946
      %1077 = vmatprep.subr.mxu0 %v951
      %1078 = vmatpush1.msra.mxu0 %v950
      %1079 = vmatprep.subr.mxu0 %v955
      %1080 = vmatpush1.msra.mxu0 %v954
      %1081 = vmatprep.subr.mxu0 %v959
      %1082 = vmatpush1.msra.mxu0 %v958
      %1083 = vmatprep.subr.mxu0 %v963
      %1084 = vmatpush1.msra.mxu0 %v962
      %1085 = vmatprep.subr.mxu0 %v967
      %1086 = vmatpush1.msra.mxu0 %v966
      %1087 = vmatprep.subr.mxu0 %v971
      %1088 = vmatpush1.msra.mxu0 %v970
      %1089 = vmatprep.subr.mxu0 %v975
      %1090 = vmatpush1.msra.mxu0 %v974
      %1091 = vmatprep.subr.mxu0 %v979
      %1092 = vmatpush1.msra.mxu0 %v978
      %1093 = vmatprep.subr.mxu0 %v983
      %1094 = vmatpush1.msra.mxu0 %v982
      %1095 = vmatprep.subr.mxu0 %v987
      %1096 = vmatpush1.msra.mxu0 %v986
      %1097 = vmatprep.subr.mxu0 %v991
      %1098 = vmatpush1.msra.mxu0 %v990
      %1099 = vmatprep.subr.mxu0 %v995
      %1100 = vmatpush1.msra.mxu0 %v994
      %1101 = vmatprep.subr.mxu0 %v999
      %1102 = vmatpush1.msra.mxu0 %v998
      %1103 = vmatprep.subr.mxu0 0.0
      %1104 = vmatpush1.msra.mxu0 0.0
      %1105 = vmatprep.subr.mxu0 0.0
      %1106 = vmatpush1.msra.mxu0 0.0
      %1107 = vmatprep.subr.mxu0 0.0
      %1108 = vmatpush1.msra.mxu0 0.0
      %1109 = vmatprep.subr.mxu0 0.0
      %1110 = vmatpush1.msra.mxu0 0.0
      %1111 = vmatprep.subr.mxu0 0.0
      %1112 = vmatpush1.msra.mxu0 0.0
      %1113 = vmatprep.subr.mxu0 0.0
      %1114 = vmatpush1.msra.mxu0 0.0
      %1115 = vmatprep.subr.mxu0 0.0
      %1116 = vmatpush1.msra.mxu0 0.0
      %1117 = vmatprep.subr.mxu0 0.0
      %1118 = vmatpush1.msra.mxu0 0.0
      %1119 = vmatprep.subr.mxu0 0.0
      %1120 = vmatpush1.msra.mxu0 0.0
      %1121 = vmatprep.subr.mxu0 0.0
      %1122 = vmatpush1.msra.mxu0 0.0
      %1123 = vmatprep.subr.mxu0 0.0
      %1124 = vmatpush1.msra.mxu0 0.0
      %1125 = vmatprep.subr.mxu0 0.0
      %1126 = vmatpush1.msra.mxu0 0.0
      %1127 = vmatprep.subr.mxu0 0.0
      %1128 = vmatpush1.msra.mxu0 0.0
      %1129 = vmatprep.subr.mxu0 0.0
      %1130 = vmatpush1.msra.mxu0 0.0
      %1131 = vmatprep.subr.mxu0 0.0
      %1132 = vmatpush1.msra.mxu0 0.0
      %1133 = vmatprep.subr.mxu0 0.0
      %1134 = vmatpush1.msra.mxu0 0.0
      %1135 = vmatprep.mubr.f32.mxu0 0.0
      %1136 = vmatmul.mubr.f32.gmra.mrb[0].mxu0 %v921
      %v1137 = vpop.f32.mrb[0].mxu0
      %v1138 = vadd.f32 0.0, %v1137
      %v1139 = vpop.f32.mrb[0].mxu0
      %v1140 = vadd.f32 0.0, %v1139
      %1141 = vdwg.mxu0
      %v1142 = vadd.f32 %v932, %v1067
      %v1143 = vadd.f32 %v933, %v1069
      %v1144 = vadd.f32 %v934, %v1138
      %v1145 = vadd.f32 %v935, %v1140
      %v1146 = vmul.f32 %v1142, 0.5
      %v1147 = vtanh.pop %v1146
      %v1148 = vmul.f32 %v1147, 0.5
      %v1149 = vadd.f32 %v1148, 0.5
      %v1150 = vmul.f32 %v1143, 0.5
      %v1151 = vtanh.pop %v1150
      %v1152 = vmul.f32 %v1151, 0.5
      %v1153 = vadd.f32 %v1152, 0.5
      %v1154 = vtanh.pop %v1144
      %v1155 = vmul.f32 %v1145, 0.5
      %v1156 = vtanh.pop %v1155
      %v1157 = vmul.f32 %v1156, 0.5
      %v1158 = vadd.f32 %v1157, 0.5
      %v1159 = vmul.f32 %v1153, %v919
      %v1160 = vmul.f32 %v1149, %v1154
      %v1161 = vadd.f32 %v1159, %v1160
      %v1162 = vtanh.pop %v1161
      %v1163 = vmul.f32 %v1158, %v1162
      %s1164 = scalar_lea.vmem [#allocation15], %s926
      %1165 = vst [vmem:[%s1164] sm:$0xff] %v1163
      %s1166 = sadd.s32 %s924, 2
      %s1167 = smul.u32 %s1166, 8
      %s1168 = sshra.s32 %s1167, 3
      %s1169 = sand.u32 %s1167, 7
      %s1170 = smul.u32 %s1168, 4
      %s1171 = smul.addr %s1170, 8
      %s1172 = scalar_lea.vmem [#allocation2], %s1171
      %v1173 = vld [vmem:[%s1172] sm:$0xff]
      %v1174 = vld [vmem:[%s1172 + $0x8] sm:$0xff]
      %v1175 = vld [vmem:[%s1172 + $0x10] sm:$0xff]
      %v1176 = vld [vmem:[%s1172 + $0x18] sm:$0xff]
      %v1177 = vld [vmem:[#allocation10] sm:$0xff]
      %v1178 = vld [vmem:[#allocation10 + $0x8] sm:$0xff]
      %v1179 = vld [vmem:[#allocation10 + $0x10] sm:$0xff]
      %v1180 = vld [vmem:[#allocation10 + $0x18] sm:$0xff]
      %v1181 = vld [vmem:[#allocation10 + $0x20] sm:$0xff]
      %v1182 = vld [vmem:[#allocation10 + $0x28] sm:$0xff]
      %v1183 = vld [vmem:[#allocation10 + $0x30] sm:$0xff]
      %v1184 = vld [vmem:[#allocation10 + $0x38] sm:$0xff]
      %v1185 = vld [vmem:[#allocation10 + $0x40] sm:$0xff]
      %v1186 = vld [vmem:[#allocation10 + $0x48] sm:$0xff]
      %v1187 = vld [vmem:[#allocation10 + $0x50] sm:$0xff]
      %v1188 = vld [vmem:[#allocation10 + $0x58] sm:$0xff]
      %v1189 = vld [vmem:[#allocation10 + $0x60] sm:$0xff]
      %v1190 = vld [vmem:[#allocation10 + $0x68] sm:$0xff]
      %v1191 = vld [vmem:[#allocation10 + $0x70] sm:$0xff]
      %v1192 = vld [vmem:[#allocation10 + $0x78] sm:$0xff]
      %v1193 = vld [vmem:[#allocation10 + $0x80] sm:$0xff]
      %v1194 = vld [vmem:[#allocation10 + $0x88] sm:$0xff]
      %v1195 = vld [vmem:[#allocation10 + $0x90] sm:$0xff]
      %v1196 = vld [vmem:[#allocation10 + $0x98] sm:$0xff]
      %v1197 = vld [vmem:[#allocation10 + $0xa0] sm:$0xff]
      %v1198 = vld [vmem:[#allocation10 + $0xa8] sm:$0xff]
      %v1199 = vld [vmem:[#allocation10 + $0xb0] sm:$0xff]
      %v1200 = vld [vmem:[#allocation10 + $0xb8] sm:$0xff]
      %v1201 = vld [vmem:[#allocation10 + $0xc0] sm:$0xff]
      %v1202 = vld [vmem:[#allocation10 + $0xc8] sm:$0xff]
      %v1203 = vld [vmem:[#allocation10 + $0xd0] sm:$0xff]
      %v1204 = vld [vmem:[#allocation10 + $0xd8] sm:$0xff]
      %v1205 = vld [vmem:[#allocation10 + $0xe0] sm:$0xff]
      %v1206 = vld [vmem:[#allocation10 + $0xe8] sm:$0xff]
      %v1207 = vld [vmem:[#allocation10 + $0xf0] sm:$0xff]
      %v1208 = vld [vmem:[#allocation10 + $0xf8] sm:$0xff]
      %v1209 = vld [vmem:[#allocation10 + $0x100] sm:$0xff]
      %v1210 = vld [vmem:[#allocation10 + $0x108] sm:$0xff]
      %v1211 = vld [vmem:[#allocation10 + $0x110] sm:$0xff]
      %v1212 = vld [vmem:[#allocation10 + $0x118] sm:$0xff]
      %v1213 = vld [vmem:[#allocation10 + $0x120] sm:$0xff]
      %v1214 = vld [vmem:[#allocation10 + $0x128] sm:$0xff]
      %v1215 = vld [vmem:[#allocation10 + $0x130] sm:$0xff]
      %v1216 = vld [vmem:[#allocation10 + $0x138] sm:$0xff]
      %v1217 = vld [vmem:[#allocation10 + $0x140] sm:$0xff]
      %v1218 = vld [vmem:[#allocation10 + $0x148] sm:$0xff]
      %v1219 = vld [vmem:[#allocation10 + $0x150] sm:$0xff]
      %v1220 = vld [vmem:[#allocation10 + $0x158] sm:$0xff]
      %v1221 = vld [vmem:[#allocation10 + $0x160] sm:$0xff]
      %v1222 = vld [vmem:[#allocation10 + $0x168] sm:$0xff]
      %v1223 = vld [vmem:[#allocation10 + $0x170] sm:$0xff]
      %v1224 = vld [vmem:[#allocation10 + $0x178] sm:$0xff]
      %v1225 = vld [vmem:[#allocation10 + $0x180] sm:$0xff]
      %v1226 = vld [vmem:[#allocation10 + $0x188] sm:$0xff]
      %v1227 = vld [vmem:[#allocation10 + $0x190] sm:$0xff]
      %v1228 = vld [vmem:[#allocation10 + $0x198] sm:$0xff]
      %v1229 = vld [vmem:[#allocation10 + $0x1a0] sm:$0xff]
      %v1230 = vld [vmem:[#allocation10 + $0x1a8] sm:$0xff]
      %v1231 = vld [vmem:[#allocation10 + $0x1b0] sm:$0xff]
      %v1232 = vld [vmem:[#allocation10 + $0x1b8] sm:$0xff]
      %v1233 = vld [vmem:[#allocation10 + $0x1c0] sm:$0xff]
      %v1234 = vld [vmem:[#allocation10 + $0x1c8] sm:$0xff]
      %v1235 = vld [vmem:[#allocation10 + $0x1d0] sm:$0xff]
      %v1236 = vld [vmem:[#allocation10 + $0x1d8] sm:$0xff]
      %v1237 = vld [vmem:[#allocation10 + $0x1e0] sm:$0xff]
      %v1238 = vld [vmem:[#allocation10 + $0x1e8] sm:$0xff]
      %v1239 = vld [vmem:[#allocation10 + $0x1f0] sm:$0xff]
      %v1240 = vld [vmem:[#allocation10 + $0x1f8] sm:$0xff]
      %1241 = vmatprep.subr.mxu0 %v1178
      %1242 = vmatpush1.msra.mxu0 %v1177
      %1243 = vmatprep.subr.mxu0 %v1182
      %1244 = vmatpush1.msra.mxu0 %v1181
      %1245 = vmatprep.subr.mxu0 %v1186
      %1246 = vmatpush1.msra.mxu0 %v1185
      %1247 = vmatprep.subr.mxu0 %v1190
      %1248 = vmatpush1.msra.mxu0 %v1189
      %1249 = vmatprep.subr.mxu0 %v1194
      %1250 = vmatpush1.msra.mxu0 %v1193
      %1251 = vmatprep.subr.mxu0 %v1198
      %1252 = vmatpush1.msra.mxu0 %v1197
      %1253 = vmatprep.subr.mxu0 %v1202
      %1254 = vmatpush1.msra.mxu0 %v1201
      %1255 = vmatprep.subr.mxu0 %v1206
      %1256 = vmatpush1.msra.mxu0 %v1205
      %1257 = vmatprep.subr.mxu0 %v1210
      %1258 = vmatpush1.msra.mxu0 %v1209
      %1259 = vmatprep.subr.mxu0 %v1214
      %1260 = vmatpush1.msra.mxu0 %v1213
      %1261 = vmatprep.subr.mxu0 %v1218
      %1262 = vmatpush1.msra.mxu0 %v1217
      %1263 = vmatprep.subr.mxu0 %v1222
      %1264 = vmatpush1.msra.mxu0 %v1221
      %1265 = vmatprep.subr.mxu0 %v1226
      %1266 = vmatpush1.msra.mxu0 %v1225
      %1267 = vmatprep.subr.mxu0 %v1230
      %1268 = vmatpush1.msra.mxu0 %v1229
      %1269 = vmatprep.subr.mxu0 %v1234
      %1270 = vmatpush1.msra.mxu0 %v1233
      %1271 = vmatprep.subr.mxu0 %v1238
      %1272 = vmatpush1.msra.mxu0 %v1237
      %1273 = vmatprep.subr.mxu0 0.0
      %1274 = vmatpush1.msra.mxu0 0.0
      %1275 = vmatprep.subr.mxu0 0.0
      %1276 = vmatpush1.msra.mxu0 0.0
      %1277 = vmatprep.subr.mxu0 0.0
      %1278 = vmatpush1.msra.mxu0 0.0
      %1279 = vmatprep.subr.mxu0 0.0
      %1280 = vmatpush1.msra.mxu0 0.0
      %1281 = vmatprep.subr.mxu0 0.0
      %1282 = vmatpush1.msra.mxu0 0.0
      %1283 = vmatprep.subr.mxu0 0.0
      %1284 = vmatpush1.msra.mxu0 0.0
      %1285 = vmatprep.subr.mxu0 0.0
      %1286 = vmatpush1.msra.mxu0 0.0
      %1287 = vmatprep.subr.mxu0 0.0
      %1288 = vmatpush1.msra.mxu0 0.0
      %1289 = vmatprep.subr.mxu0 0.0
      %1290 = vmatpush1.msra.mxu0 0.0
      %1291 = vmatprep.subr.mxu0 0.0
      %1292 = vmatpush1.msra.mxu0 0.0
      %1293 = vmatprep.subr.mxu0 0.0
      %1294 = vmatpush1.msra.mxu0 0.0
      %1295 = vmatprep.subr.mxu0 0.0
      %1296 = vmatpush1.msra.mxu0 0.0
      %1297 = vmatprep.subr.mxu0 0.0
      %1298 = vmatpush1.msra.mxu0 0.0
      %1299 = vmatprep.subr.mxu0 0.0
      %1300 = vmatpush1.msra.mxu0 0.0
      %1301 = vmatprep.subr.mxu0 0.0
      %1302 = vmatpush1.msra.mxu0 0.0
      %1303 = vmatprep.subr.mxu0 0.0
      %1304 = vmatpush1.msra.mxu0 0.0
      %1305 = vmatprep.mubr.f32.mxu0 0.0
      %1306 = vmatmul.mubr.f32.gmra.mrb[0].mxu0 %v1163
      %v1307 = vpop.f32.mrb[0].mxu0
      %v1308 = vadd.f32 0.0, %v1307
      %v1309 = vpop.f32.mrb[0].mxu0
      %v1310 = vadd.f32 0.0, %v1309
      %1311 = vdwg.mxu0
      %1312 = vmatprep.subr.mxu0 %v1180
      %1313 = vmatpush1.msra.mxu0 %v1179
      %1314 = vmatprep.subr.mxu0 %v1184
      %1315 = vmatpush1.msra.mxu0 %v1183
      %1316 = vmatprep.subr.mxu0 %v1188
      %1317 = vmatpush1.msra.mxu0 %v1187
      %1318 = vmatprep.subr.mxu0 %v1192
      %1319 = vmatpush1.msra.mxu0 %v1191
      %1320 = vmatprep.subr.mxu0 %v1196
      %1321 = vmatpush1.msra.mxu0 %v1195
      %1322 = vmatprep.subr.mxu0 %v1200
      %1323 = vmatpush1.msra.mxu0 %v1199
      %1324 = vmatprep.subr.mxu0 %v1204
      %1325 = vmatpush1.msra.mxu0 %v1203
      %1326 = vmatprep.subr.mxu0 %v1208
      %1327 = vmatpush1.msra.mxu0 %v1207
      %1328 = vmatprep.subr.mxu0 %v1212
      %1329 = vmatpush1.msra.mxu0 %v1211
      %1330 = vmatprep.subr.mxu0 %v1216
      %1331 = vmatpush1.msra.mxu0 %v1215
      %1332 = vmatprep.subr.mxu0 %v1220
      %1333 = vmatpush1.msra.mxu0 %v1219
      %1334 = vmatprep.subr.mxu0 %v1224
      %1335 = vmatpush1.msra.mxu0 %v1223
      %1336 = vmatprep.subr.mxu0 %v1228
      %1337 = vmatpush1.msra.mxu0 %v1227
      %1338 = vmatprep.subr.mxu0 %v1232
      %1339 = vmatpush1.msra.mxu0 %v1231
      %1340 = vmatprep.subr.mxu0 %v1236
      %1341 = vmatpush1.msra.mxu0 %v1235
      %1342 = vmatprep.subr.mxu0 %v1240
      %1343 = vmatpush1.msra.mxu0 %v1239
      %1344 = vmatprep.subr.mxu0 0.0
      %1345 = vmatpush1.msra.mxu0 0.0
      %1346 = vmatprep.subr.mxu0 0.0
      %1347 = vmatpush1.msra.mxu0 0.0
      %1348 = vmatprep.subr.mxu0 0.0
      %1349 = vmatpush1.msra.mxu0 0.0
      %1350 = vmatprep.subr.mxu0 0.0
      %1351 = vmatpush1.msra.mxu0 0.0
      %1352 = vmatprep.subr.mxu0 0.0
      %1353 = vmatpush1.msra.mxu0 0.0
      %1354 = vmatprep.subr.mxu0 0.0
      %1355 = vmatpush1.msra.mxu0 0.0
      %1356 = vmatprep.subr.mxu0 0.0
      %1357 = vmatpush1.msra.mxu0 0.0
      %1358 = vmatprep.subr.mxu0 0.0
      %1359 = vmatpush1.msra.mxu0 0.0
      %1360 = vmatprep.subr.mxu0 0.0
      %1361 = vmatpush1.msra.mxu0 0.0
      %1362 = vmatprep.subr.mxu0 0.0
      %1363 = vmatpush1.msra.mxu0 0.0
      %1364 = vmatprep.subr.mxu0 0.0
      %1365 = vmatpush1.msra.mxu0 0.0
      %1366 = vmatprep.subr.mxu0 0.0
      %1367 = vmatpush1.msra.mxu0 0.0
      %1368 = vmatprep.subr.mxu0 0.0
      %1369 = vmatpush1.msra.mxu0 0.0
      %1370 = vmatprep.subr.mxu0 0.0
      %1371 = vmatpush1.msra.mxu0 0.0
      %1372 = vmatprep.subr.mxu0 0.0
      %1373 = vmatpush1.msra.mxu0 0.0
      %1374 = vmatprep.subr.mxu0 0.0
      %1375 = vmatpush1.msra.mxu0 0.0
      %1376 = vmatprep.mubr.f32.mxu0 0.0
      %1377 = vmatmul.mubr.f32.gmra.mrb[0].mxu0 %v1163
      %v1378 = vpop.f32.mrb[0].mxu0
      %v1379 = vadd.f32 0.0, %v1378
      %v1380 = vpop.f32.mrb[0].mxu0
      %v1381 = vadd.f32 0.0, %v1380
      %1382 = vdwg.mxu0
      %v1383 = vadd.f32 %v1173, %v1308
      %v1384 = vadd.f32 %v1174, %v1310
      %v1385 = vadd.f32 %v1175, %v1379
      %v1386 = vadd.f32 %v1176, %v1381
      %v1387 = vmul.f32 %v1383, 0.5
      %v1388 = vtanh.pop %v1387
      %v1389 = vmul.f32 %v1388, 0.5
      %v1390 = vadd.f32 %v1389, 0.5
      %v1391 = vmul.f32 %v1384, 0.5
      %v1392 = vtanh.pop %v1391
      %v1393 = vmul.f32 %v1392, 0.5
      %v1394 = vadd.f32 %v1393, 0.5
      %v1395 = vtanh.pop %v1385
      %v1396 = vmul.f32 %v1386, 0.5
      %v1397 = vtanh.pop %v1396
      %v1398 = vmul.f32 %v1397, 0.5
      %v1399 = vadd.f32 %v1398, 0.5
      %v1400 = vmul.f32 %v1394, %v1161
      %v1401 = vmul.f32 %v1390, %v1395
      %v1402 = vadd.f32 %v1400, %v1401
      %v1403 = vtanh.pop %v1402
      %v1404 = vmul.f32 %v1399, %v1403
      %s1405 = scalar_lea.vmem [#allocation15], %s1167
      %1406 = vst [vmem:[%s1405] sm:$0xff] %v1404
      %s1407 = sadd.s32 %s924, 3
      %s1408 = smul.u32 %s1407, 8
      %s1409 = sshra.s32 %s1408, 3
      %s1410 = sand.u32 %s1408, 7
      %s1411 = smul.u32 %s1409, 4
      %s1412 = smul.addr %s1411, 8
      %s1413 = scalar_lea.vmem [#allocation2], %s1412
      %v1414 = vld [vmem:[%s1413] sm:$0xff]
      %v1415 = vld [vmem:[%s1413 + $0x8] sm:$0xff]
      %v1416 = vld [vmem:[%s1413 + $0x10] sm:$0xff]
      %v1417 = vld [vmem:[%s1413 + $0x18] sm:$0xff]
      %v1418 = vld [vmem:[#allocation10] sm:$0xff]
      %v1419 = vld [vmem:[#allocation10 + $0x8] sm:$0xff]
      %v1420 = vld [vmem:[#allocation10 + $0x10] sm:$0xff]
      %v1421 = vld [vmem:[#allocation10 + $0x18] sm:$0xff]
      %v1422 = vld [vmem:[#allocation10 + $0x20] sm:$0xff]
      %v1423 = vld [vmem:[#allocation10 + $0x28] sm:$0xff]
      %v1424 = vld [vmem:[#allocation10 + $0x30] sm:$0xff]
      %v1425 = vld [vmem:[#allocation10 + $0x38] sm:$0xff]
      %v1426 = vld [vmem:[#allocation10 + $0x40] sm:$0xff]
      %v1427 = vld [vmem:[#allocation10 + $0x48] sm:$0xff]
      %v1428 = vld [vmem:[#allocation10 + $0x50] sm:$0xff]
      %v1429 = vld [vmem:[#allocation10 + $0x58] sm:$0xff]
      %v1430 = vld [vmem:[#allocation10 + $0x60] sm:$0xff]
      %v1431 = vld [vmem:[#allocation10 + $0x68] sm:$0xff]
      %v1432 = vld [vmem:[#allocation10 + $0x70] sm:$0xff]
      %v1433 = vld [vmem:[#allocation10 + $0x78] sm:$0xff]
      %v1434 = vld [vmem:[#allocation10 + $0x80] sm:$0xff]
      %v1435 = vld [vmem:[#allocation10 + $0x88] sm:$0xff]
      %v1436 = vld [vmem:[#allocation10 + $0x90] sm:$0xff]
      %v1437 = vld [vmem:[#allocation10 + $0x98] sm:$0xff]
      %v1438 = vld [vmem:[#allocation10 + $0xa0] sm:$0xff]
      %v1439 = vld [vmem:[#allocation10 + $0xa8] sm:$0xff]
      %v1440 = vld [vmem:[#allocation10 + $0xb0] sm:$0xff]
      %v1441 = vld [vmem:[#allocation10 + $0xb8] sm:$0xff]
      %v1442 = vld [vmem:[#allocation10 + $0xc0] sm:$0xff]
      %v1443 = vld [vmem:[#allocation10 + $0xc8] sm:$0xff]
      %v1444 = vld [vmem:[#allocation10 + $0xd0] sm:$0xff]
      %v1445 = vld [vmem:[#allocation10 + $0xd8] sm:$0xff]
      %v1446 = vld [vmem:[#allocation10 + $0xe0] sm:$0xff]
      %v1447 = vld [vmem:[#allocation10 + $0xe8] sm:$0xff]
      %v1448 = vld [vmem:[#allocation10 + $0xf0] sm:$0xff]
      %v1449 = vld [vmem:[#allocation10 + $0xf8] sm:$0xff]
      %v1450 = vld [vmem:[#allocation10 + $0x100] sm:$0xff]
      %v1451 = vld [vmem:[#allocation10 + $0x108] sm:$0xff]
      %v1452 = vld [vmem:[#allocation10 + $0x110] sm:$0xff]
      %v1453 = vld [vmem:[#allocation10 + $0x118] sm:$0xff]
      %v1454 = vld [vmem:[#allocation10 + $0x120] sm:$0xff]
      %v1455 = vld [vmem:[#allocation10 + $0x128] sm:$0xff]
      %v1456 = vld [vmem:[#allocation10 + $0x130] sm:$0xff]
      %v1457 = vld [vmem:[#allocation10 + $0x138] sm:$0xff]
      %v1458 = vld [vmem:[#allocation10 + $0x140] sm:$0xff]
      %v1459 = vld [vmem:[#allocation10 + $0x148] sm:$0xff]
      %v1460 = vld [vmem:[#allocation10 + $0x150] sm:$0xff]
      %v1461 = vld [vmem:[#allocation10 + $0x158] sm:$0xff]
      %v1462 = vld [vmem:[#allocation10 + $0x160] sm:$0xff]
      %v1463 = vld [vmem:[#allocation10 + $0x168] sm:$0xff]
      %v1464 = vld [vmem:[#allocation10 + $0x170] sm:$0xff]
      %v1465 = vld [vmem:[#allocation10 + $0x178] sm:$0xff]
      %v1466 = vld [vmem:[#allocation10 + $0x180] sm:$0xff]
      %v1467 = vld [vmem:[#allocation10 + $0x188] sm:$0xff]
      %v1468 = vld [vmem:[#allocation10 + $0x190] sm:$0xff]
      %v1469 = vld [vmem:[#allocation10 + $0x198] sm:$0xff]
      %v1470 = vld [vmem:[#allocation10 + $0x1a0] sm:$0xff]
      %v1471 = vld [vmem:[#allocation10 + $0x1a8] sm:$0xff]
      %v1472 = vld [vmem:[#allocation10 + $0x1b0] sm:$0xff]
      %v1473 = vld [vmem:[#allocation10 + $0x1b8] sm:$0xff]
      %v1474 = vld [vmem:[#allocation10 + $0x1c0] sm:$0xff]
      %v1475 = vld [vmem:[#allocation10 + $0x1c8] sm:$0xff]
      %v1476 = vld [vmem:[#allocation10 + $0x1d0] sm:$0xff]
      %v1477 = vld [vmem:[#allocation10 + $0x1d8] sm:$0xff]
      %v1478 = vld [vmem:[#allocation10 + $0x1e0] sm:$0xff]
      %v1479 = vld [vmem:[#allocation10 + $0x1e8] sm:$0xff]
      %v1480 = vld [vmem:[#allocation10 + $0x1f0] sm:$0xff]
      %v1481 = vld [vmem:[#allocation10 + $0x1f8] sm:$0xff]
      %1482 = vmatprep.subr.mxu0 %v1419
      %1483 = vmatpush1.msra.mxu0 %v1418
      %1484 = vmatprep.subr.mxu0 %v1423
      %1485 = vmatpush1.msra.mxu0 %v1422
      %1486 = vmatprep.subr.mxu0 %v1427
      %1487 = vmatpush1.msra.mxu0 %v1426
      %1488 = vmatprep.subr.mxu0 %v1431
      %1489 = vmatpush1.msra.mxu0 %v1430
      %1490 = vmatprep.subr.mxu0 %v1435
      %1491 = vmatpush1.msra.mxu0 %v1434
      %1492 = vmatprep.subr.mxu0 %v1439
      %1493 = vmatpush1.msra.mxu0 %v1438
      %1494 = vmatprep.subr.mxu0 %v1443
      %1495 = vmatpush1.msra.mxu0 %v1442
      %1496 = vmatprep.subr.mxu0 %v1447
      %1497 = vmatpush1.msra.mxu0 %v1446
      %1498 = vmatprep.subr.mxu0 %v1451
      %1499 = vmatpush1.msra.mxu0 %v1450
      %1500 = vmatprep.subr.mxu0 %v1455
      %1501 = vmatpush1.msra.mxu0 %v1454
      %1502 = vmatprep.subr.mxu0 %v1459
      %1503 = vmatpush1.msra.mxu0 %v1458
      %1504 = vmatprep.subr.mxu0 %v1463
      %1505 = vmatpush1.msra.mxu0 %v1462
      %1506 = vmatprep.subr.mxu0 %v1467
      %1507 = vmatpush1.msra.mxu0 %v1466
      %1508 = vmatprep.subr.mxu0 %v1471
      %1509 = vmatpush1.msra.mxu0 %v1470
      %1510 = vmatprep.subr.mxu0 %v1475
      %1511 = vmatpush1.msra.mxu0 %v1474
      %1512 = vmatprep.subr.mxu0 %v1479
      %1513 = vmatpush1.msra.mxu0 %v1478
      %1514 = vmatprep.subr.mxu0 0.0
      %1515 = vmatpush1.msra.mxu0 0.0
      %1516 = vmatprep.subr.mxu0 0.0
      %1517 = vmatpush1.msra.mxu0 0.0
      %1518 = vmatprep.subr.mxu0 0.0
      %1519 = vmatpush1.msra.mxu0 0.0
      %1520 = vmatprep.subr.mxu0 0.0
      %1521 = vmatpush1.msra.mxu0 0.0
      %1522 = vmatprep.subr.mxu0 0.0
      %1523 = vmatpush1.msra.mxu0 0.0
      %1524 = vmatprep.subr.mxu0 0.0
      %1525 = vmatpush1.msra.mxu0 0.0
      %1526 = vmatprep.subr.mxu0 0.0
      %1527 = vmatpush1.msra.mxu0 0.0
      %1528 = vmatprep.subr.mxu0 0.0
      %1529 = vmatpush1.msra.mxu0 0.0
      %1530 = vmatprep.subr.mxu0 0.0
      %1531 = vmatpush1.msra.mxu0 0.0
      %1532 = vmatprep.subr.mxu0 0.0
      %1533 = vmatpush1.msra.mxu0 0.0
      %1534 = vmatprep.subr.mxu0 0.0
      %1535 = vmatpush1.msra.mxu0 0.0
      %1536 = vmatprep.subr.mxu0 0.0
      %1537 = vmatpush1.msra.mxu0 0.0
      %1538 = vmatprep.subr.mxu0 0.0
      %1539 = vmatpush1.msra.mxu0 0.0
      %1540 = vmatprep.subr.mxu0 0.0
      %1541 = vmatpush1.msra.mxu0 0.0
      %1542 = vmatprep.subr.mxu0 0.0
      %1543 = vmatpush1.msra.mxu0 0.0
      %1544 = vmatprep.subr.mxu0 0.0
      %1545 = vmatpush1.msra.mxu0 0.0
      %1546 = vmatprep.mubr.f32.mxu0 0.0
      %1547 = vmatmul.mubr.f32.gmra.mrb[0].mxu0 %v1404
      %v1548 = vpop.f32.mrb[0].mxu0
      %v1549 = vadd.f32 0.0, %v1548
      %v1550 = vpop.f32.mrb[0].mxu0
      %v1551 = vadd.f32 0.0, %v1550
      %1552 = vdwg.mxu0
      %1553 = vmatprep.subr.mxu0 %v1421
      %1554 = vmatpush1.msra.mxu0 %v1420
      %1555 = vmatprep.subr.mxu0 %v1425
      %1556 = vmatpush1.msra.mxu0 %v1424
      %1557 = vmatprep.subr.mxu0 %v1429
      %1558 = vmatpush1.msra.mxu0 %v1428
      %1559 = vmatprep.subr.mxu0 %v1433
      %1560 = vmatpush1.msra.mxu0 %v1432
      %1561 = vmatprep.subr.mxu0 %v1437
      %1562 = vmatpush1.msra.mxu0 %v1436
      %1563 = vmatprep.subr.mxu0 %v1441
      %1564 = vmatpush1.msra.mxu0 %v1440
      %1565 = vmatprep.subr.mxu0 %v1445
      %1566 = vmatpush1.msra.mxu0 %v1444
      %1567 = vmatprep.subr.mxu0 %v1449
      %1568 = vmatpush1.msra.mxu0 %v1448
      %1569 = vmatprep.subr.mxu0 %v1453
      %1570 = vmatpush1.msra.mxu0 %v1452
      %1571 = vmatprep.subr.mxu0 %v1457
      %1572 = vmatpush1.msra.mxu0 %v1456
      %1573 = vmatprep.subr.mxu0 %v1461
      %1574 = vmatpush1.msra.mxu0 %v1460
      %1575 = vmatprep.subr.mxu0 %v1465
      %1576 = vmatpush1.msra.mxu0 %v1464
      %1577 = vmatprep.subr.mxu0 %v1469
      %1578 = vmatpush1.msra.mxu0 %v1468
      %1579 = vmatprep.subr.mxu0 %v1473
      %1580 = vmatpush1.msra.mxu0 %v1472
      %1581 = vmatprep.subr.mxu0 %v1477
      %1582 = vmatpush1.msra.mxu0 %v1476
      %1583 = vmatprep.subr.mxu0 %v1481
      %1584 = vmatpush1.msra.mxu0 %v1480
      %1585 = vmatprep.subr.mxu0 0.0
      %1586 = vmatpush1.msra.mxu0 0.0
      %1587 = vmatprep.subr.mxu0 0.0
      %1588 = vmatpush1.msra.mxu0 0.0
      %1589 = vmatprep.subr.mxu0 0.0
      %1590 = vmatpush1.msra.mxu0 0.0
      %1591 = vmatprep.subr.mxu0 0.0
      %1592 = vmatpush1.msra.mxu0 0.0
      %1593 = vmatprep.subr.mxu0 0.0
      %1594 = vmatpush1.msra.mxu0 0.0
      %1595 = vmatprep.subr.mxu0 0.0
      %1596 = vmatpush1.msra.mxu0 0.0
      %1597 = vmatprep.subr.mxu0 0.0
      %1598 = vmatpush1.msra.mxu0 0.0
      %1599 = vmatprep.subr.mxu0 0.0
      %1600 = vmatpush1.msra.mxu0 0.0
      %1601 = vmatprep.subr.mxu0 0.0
      %1602 = vmatpush1.msra.mxu0 0.0
      %1603 = vmatprep.subr.mxu0 0.0
      %1604 = vmatpush1.msra.mxu0 0.0
      %1605 = vmatprep.subr.mxu0 0.0
      %1606 = vmatpush1.msra.mxu0 0.0
      %1607 = vmatprep.subr.mxu0 0.0
      %1608 = vmatpush1.msra.mxu0 0.0
      %1609 = vmatprep.subr.mxu0 0.0
      %1610 = vmatpush1.msra.mxu0 0.0
      %1611 = vmatprep.subr.mxu0 0.0
      %1612 = vmatpush1.msra.mxu0 0.0
      %1613 = vmatprep.subr.mxu0 0.0
      %1614 = vmatpush1.msra.mxu0 0.0
      %1615 = vmatprep.subr.mxu0 0.0
      %1616 = vmatpush1.msra.mxu0 0.0
      %1617 = vmatprep.mubr.f32.mxu0 0.0
      %1618 = vmatmul.mubr.f32.gmra.mrb[0].mxu0 %v1404
      %v1619 = vpop.f32.mrb[0].mxu0
      %v1620 = vadd.f32 0.0, %v1619
      %v1621 = vpop.f32.mrb[0].mxu0
      %v1622 = vadd.f32 0.0, %v1621
      %1623 = vdwg.mxu0
      %v1624 = vadd.f32 %v1414, %v1549
      %v1625 = vadd.f32 %v1415, %v1551
      %v1626 = vadd.f32 %v1416, %v1620
      %v1627 = vadd.f32 %v1417, %v1622
      %v1628 = vmul.f32 %v1624, 0.5
      %v1629 = vtanh.pop %v1628
      %v1630 = vmul.f32 %v1629, 0.5
      %v1631 = vadd.f32 %v1630, 0.5
      %v1632 = vmul.f32 %v1625, 0.5
      %v1633 = vtanh.pop %v1632
      %v1634 = vmul.f32 %v1633, 0.5
      %v1635 = vadd.f32 %v1634, 0.5
      %v1636 = vtanh.pop %v1626
      %v1637 = vmul.f32 %v1627, 0.5
      %v1638 = vtanh.pop %v1637
      %v1639 = vmul.f32 %v1638, 0.5
      %v1640 = vadd.f32 %v1639, 0.5
      %v1641 = vmul.f32 %v1635, %v1402
      %v1642 = vmul.f32 %v1631, %v1636
      %v1643 = vadd.f32 %v1641, %v1642
      %v1644 = vtanh.pop %v1643
      %v1645 = vmul.f32 %v1640, %v1644
      %s1646 = scalar_lea.vmem [#allocation15], %s1408
      %1647 = vst [vmem:[%s1646] sm:$0xff] %v1645
    $region58: #{tpu_custom_call.1} parent=1 // loop_footer
      %s407 = sadd.s32 1, %s403
    $region59: #{tpu_custom_call.1} parent=1 // loop_footer_branch
      %402 = sbr.rel target = $region55
    $region60: #{tpu_custom_call.1} parent=1 // loop_exit
      _
    %1648 = vst [vmem:[#allocation16] sm:$0xff] %v408
    %1649 = vst [vmem:[#allocation18] sm:$0xff] %v409
    %v1650 = vld [vmem:[#allocation15] sm:$0xff]
    %v1651 = vld [vmem:[#allocation15 + $0x8] sm:$0xff]
    %v1652 = vld [vmem:[#allocation15 + $0x10] sm:$0xff]
    %v1653 = vld [vmem:[#allocation15 + $0x18] sm:$0xff]
    %v1654 = vld [vmem:[#allocation15 + $0x20] sm:$0xff]
    %v1655 = vld [vmem:[#allocation15 + $0x28] sm:$0xff]
    %v1656 = vld [vmem:[#allocation15 + $0x30] sm:$0xff]
    %v1657 = vld [vmem:[#allocation15 + $0x38] sm:$0xff]
    %1658 = vst [vmem:[#allocation3] sm:$0xff] %v1650
    %1659 = vst [vmem:[#allocation3 + $0x8] sm:$0xff] %v1651
    %1660 = vst [vmem:[#allocation3 + $0x10] sm:$0xff] %v1652
    %1661 = vst [vmem:[#allocation3 + $0x18] sm:$0xff] %v1653
    %1662 = vst [vmem:[#allocation3 + $0x20] sm:$0xff] %v1654
    %1663 = vst [vmem:[#allocation3 + $0x28] sm:$0xff] %v1655
    %1664 = vst [vmem:[#allocation3 + $0x30] sm:$0xff] %v1656
    %1665 = vst [vmem:[#allocation3 + $0x38] sm:$0xff] %v1657
    %s1666 = scalar_lea.vmem [#allocation12], 4
    %v1667 = vld [vmem:[%s1666] sm:$0xf]
    %v1668 = vld [vmem:[#allocation3] sm:$0xff]
    %v1669 = vld [vmem:[#allocation3 + $0x8] sm:$0xff]
    %v1670 = vld [vmem:[#allocation3 + $0x10] sm:$0xff]
    %v1671 = vld [vmem:[#allocation3 + $0x18] sm:$0xff]
    %v1672 = vld [vmem:[#allocation9] sm:$0xff]
    %v1673 = vld [vmem:[#allocation9 + $0x8] sm:$0xff]
    %v1674 = vld [vmem:[#allocation9 + $0x10] sm:$0xff]
    %v1675 = vld [vmem:[#allocation9 + $0x18] sm:$0xff]
    %v1676 = vld [vmem:[#allocation9 + $0x20] sm:$0xff]
    %v1677 = vld [vmem:[#allocation9 + $0x28] sm:$0xff]
    %v1678 = vld [vmem:[#allocation9 + $0x30] sm:$0xff]
    %v1679 = vld [vmem:[#allocation9 + $0x38] sm:$0xff]
    %v1680 = vld [vmem:[#allocation9 + $0x40] sm:$0xff]
    %v1681 = vld [vmem:[#allocation9 + $0x48] sm:$0xff]
    %v1682 = vld [vmem:[#allocation9 + $0x50] sm:$0xff]
    %v1683 = vld [vmem:[#allocation9 + $0x58] sm:$0xff]
    %v1684 = vld [vmem:[#allocation9 + $0x60] sm:$0xff]
    %v1685 = vld [vmem:[#allocation9 + $0x68] sm:$0xff]
    %v1686 = vld [vmem:[#allocation9 + $0x70] sm:$0xff]
    %v1687 = vld [vmem:[#allocation9 + $0x78] sm:$0xff]
    %v1688 = vld [vmem:[#allocation9 + $0x80] sm:$0xff]
    %v1689 = vld [vmem:[#allocation9 + $0x88] sm:$0xff]
    %v1690 = vld [vmem:[#allocation9 + $0x90] sm:$0xff]
    %v1691 = vld [vmem:[#allocation9 + $0x98] sm:$0xff]
    %v1692 = vld [vmem:[#allocation9 + $0xa0] sm:$0xff]
    %v1693 = vld [vmem:[#allocation9 + $0xa8] sm:$0xff]
    %v1694 = vld [vmem:[#allocation9 + $0xb0] sm:$0xff]
    %v1695 = vld [vmem:[#allocation9 + $0xb8] sm:$0xff]
    %v1696 = vld [vmem:[#allocation9 + $0xc0] sm:$0xff]
    %v1697 = vld [vmem:[#allocation9 + $0xc8] sm:$0xff]
    %v1698 = vld [vmem:[#allocation9 + $0xd0] sm:$0xff]
    %v1699 = vld [vmem:[#allocation9 + $0xd8] sm:$0xff]
    %v1700 = vld [vmem:[#allocation9 + $0xe0] sm:$0xff]
    %v1701 = vld [vmem:[#allocation9 + $0xe8] sm:$0xff]
    %v1702 = vld [vmem:[#allocation9 + $0xf0] sm:$0xff]
    %v1703 = vld [vmem:[#allocation9 + $0xf8] sm:$0xff]
    %v1704 = vld [vmem:[#allocation9 + $0x100] sm:$0xff]
    %v1705 = vld [vmem:[#allocation9 + $0x108] sm:$0xff]
    %v1706 = vld [vmem:[#allocation9 + $0x110] sm:$0xff]
    %v1707 = vld [vmem:[#allocation9 + $0x118] sm:$0xff]
    %v1708 = vld [vmem:[#allocation9 + $0x120] sm:$0xff]
    %v1709 = vld [vmem:[#allocation9 + $0x128] sm:$0xff]
    %v1710 = vld [vmem:[#allocation9 + $0x130] sm:$0xff]
    %v1711 = vld [vmem:[#allocation9 + $0x138] sm:$0xff]
    %v1712 = vld [vmem:[#allocation9 + $0x140] sm:$0xff]
    %v1713 = vld [vmem:[#allocation9 + $0x148] sm:$0xff]
    %v1714 = vld [vmem:[#allocation9 + $0x150] sm:$0xff]
    %v1715 = vld [vmem:[#allocation9 + $0x158] sm:$0xff]
    %v1716 = vld [vmem:[#allocation9 + $0x160] sm:$0xff]
    %v1717 = vld [vmem:[#allocation9 + $0x168] sm:$0xff]
    %v1718 = vld [vmem:[#allocation9 + $0x170] sm:$0xff]
    %v1719 = vld [vmem:[#allocation9 + $0x178] sm:$0xff]
    %v1720 = vld [vmem:[#allocation9 + $0x180] sm:$0xff]
    %v1721 = vld [vmem:[#allocation9 + $0x188] sm:$0xff]
    %v1722 = vld [vmem:[#allocation9 + $0x190] sm:$0xff]
    %v1723 = vld [vmem:[#allocation9 + $0x198] sm:$0xff]
    %v1724 = vld [vmem:[#allocation9 + $0x1a0] sm:$0xff]
    %v1725 = vld [vmem:[#allocation9 + $0x1a8] sm:$0xff]
    %v1726 = vld [vmem:[#allocation9 + $0x1b0] sm:$0xff]
    %v1727 = vld [vmem:[#allocation9 + $0x1b8] sm:$0xff]
    %v1728 = vld [vmem:[#allocation9 + $0x1c0] sm:$0xff]
    %v1729 = vld [vmem:[#allocation9 + $0x1c8] sm:$0xff]
    %v1730 = vld [vmem:[#allocation9 + $0x1d0] sm:$0xff]
    %v1731 = vld [vmem:[#allocation9 + $0x1d8] sm:$0xff]
    %v1732 = vld [vmem:[#allocation9 + $0x1e0] sm:$0xff]
    %v1733 = vld [vmem:[#allocation9 + $0x1e8] sm:$0xff]
    %v1734 = vld [vmem:[#allocation9 + $0x1f0] sm:$0xff]
    %v1735 = vld [vmem:[#allocation9 + $0x1f8] sm:$0xff]
    %v1737 = vlaneseq
    %v1738 = vshrl.u32 %v1737, 7
    %v1739 = vsub.s32 0, %v1738
    %v1740 = vrot.slane %v1667, %v1739
    %v1741 = vlaneseq
    %v1742 = vshrl.u32 %v1741, 7
    %v1743 = vsub.s32 1, %v1742
    %v1744 = vrot.slane %v1667, %v1743
    %v1745 = vlaneseq
    %v1746 = vshrl.u32 %v1745, 7
    %v1747 = vsub.s32 2, %v1746
    %v1748 = vrot.slane %v1667, %v1747
    %v1749 = vlaneseq
    %v1750 = vshrl.u32 %v1749, 7
    %v1751 = vsub.s32 3, %v1750
    %v1752 = vrot.slane %v1667, %v1751
    %1757 = vmatprep.subr.mxu0 %v1673
    %1758 = vmatpush1.msra.mxu0 %v1672
    %1759 = vmatprep.subr.mxu0 %v1677
    %1760 = vmatpush1.msra.mxu0 %v1676
    %1761 = vmatprep.subr.mxu0 %v1681
    %1762 = vmatpush1.msra.mxu0 %v1680
    %1763 = vmatprep.subr.mxu0 %v1685
    %1764 = vmatpush1.msra.mxu0 %v1684
    %1765 = vmatprep.subr.mxu0 %v1689
    %1766 = vmatpush1.msra.mxu0 %v1688
    %1767 = vmatprep.subr.mxu0 %v1693
    %1768 = vmatpush1.msra.mxu0 %v1692
    %1769 = vmatprep.subr.mxu0 %v1697
    %1770 = vmatpush1.msra.mxu0 %v1696
    %1771 = vmatprep.subr.mxu0 %v1701
    %1772 = vmatpush1.msra.mxu0 %v1700
    %1773 = vmatprep.subr.mxu0 %v1705
    %1774 = vmatpush1.msra.mxu0 %v1704
    %1775 = vmatprep.subr.mxu0 %v1709
    %1776 = vmatpush1.msra.mxu0 %v1708
    %1777 = vmatprep.subr.mxu0 %v1713
    %1778 = vmatpush1.msra.mxu0 %v1712
    %1779 = vmatprep.subr.mxu0 %v1717
    %1780 = vmatpush1.msra.mxu0 %v1716
    %1781 = vmatprep.subr.mxu0 %v1721
    %1782 = vmatpush1.msra.mxu0 %v1720
    %1783 = vmatprep.subr.mxu0 %v1725
    %1784 = vmatpush1.msra.mxu0 %v1724
    %1785 = vmatprep.subr.mxu0 %v1729
    %1786 = vmatpush1.msra.mxu0 %v1728
    %1787 = vmatprep.subr.mxu0 %v1733
    %1788 = vmatpush1.msra.mxu0 %v1732
    %1789 = vmatprep.subr.mxu0 0.0
    %1790 = vmatpush1.msra.mxu0 0.0
    %1791 = vmatprep.subr.mxu0 0.0
    %1792 = vmatpush1.msra.mxu0 0.0
    %1793 = vmatprep.subr.mxu0 0.0
    %1794 = vmatpush1.msra.mxu0 0.0
    %1795 = vmatprep.subr.mxu0 0.0
    %1796 = vmatpush1.msra.mxu0 0.0
    %1797 = vmatprep.subr.mxu0 0.0
    %1798 = vmatpush1.msra.mxu0 0.0
    %1799 = vmatprep.subr.mxu0 0.0
    %1800 = vmatpush1.msra.mxu0 0.0
    %1801 = vmatprep.subr.mxu0 0.0
    %1802 = vmatpush1.msra.mxu0 0.0
    %1803 = vmatprep.subr.mxu0 0.0
    %1804 = vmatpush1.msra.mxu0 0.0
    %1805 = vmatprep.subr.mxu0 0.0
    %1806 = vmatpush1.msra.mxu0 0.0
    %1807 = vmatprep.subr.mxu0 0.0
    %1808 = vmatpush1.msra.mxu0 0.0
    %1809 = vmatprep.subr.mxu0 0.0
    %1810 = vmatpush1.msra.mxu0 0.0
    %1811 = vmatprep.subr.mxu0 0.0
    %1812 = vmatpush1.msra.mxu0 0.0
    %1813 = vmatprep.subr.mxu0 0.0
    %1814 = vmatpush1.msra.mxu0 0.0
    %1815 = vmatprep.subr.mxu0 0.0
    %1816 = vmatpush1.msra.mxu0 0.0
    %1817 = vmatprep.subr.mxu0 0.0
    %1818 = vmatpush1.msra.mxu0 0.0
    %1819 = vmatprep.subr.mxu0 0.0
    %1820 = vmatpush1.msra.mxu0 0.0
    %1821 = vmatprep.mubr.f32.mxu0 0.0
    %1822 = vmatmul.mubr.f32.gmra.mrb[0].mxu0 %v1668
    %v1823 = vpop.f32.mrb[0].mxu0
    %v1824 = vadd.f32 %v1740, %v1823
    %v1825 = vpop.f32.mrb[0].mxu0
    %v1826 = vadd.f32 %v1744, %v1825
    %1827 = vmatprep.mubr.f32.mxu0 0.0
    %1828 = vmatmul.mubr.f32.gmra.mrb[0].mxu0 %v1669
    %v1829 = vpop.f32.mrb[0].mxu0
    %v1830 = vadd.f32 %v1740, %v1829
    %v1831 = vpop.f32.mrb[0].mxu0
    %v1832 = vadd.f32 %v1744, %v1831
    %1833 = vmatprep.mubr.f32.mxu0 0.0
    %1834 = vmatmul.mubr.f32.gmra.mrb[0].mxu0 %v1670
    %v1835 = vpop.f32.mrb[0].mxu0
    %v1836 = vadd.f32 %v1740, %v1835
    %v1837 = vpop.f32.mrb[0].mxu0
    %v1838 = vadd.f32 %v1744, %v1837
    %1839 = vmatprep.mubr.f32.mxu0 0.0
    %1840 = vmatmul.mubr.f32.gmra.mrb[0].mxu0 %v1671
    %v1841 = vpop.f32.mrb[0].mxu0
    %v1842 = vadd.f32 %v1740, %v1841
    %v1843 = vpop.f32.mrb[0].mxu0
    %v1844 = vadd.f32 %v1744, %v1843
    %1845 = vdwg.mxu0
    %1846 = vmatprep.subr.mxu0 %v1675
    %1847 = vmatpush1.msra.mxu0 %v1674
    %1848 = vmatprep.subr.mxu0 %v1679
    %1849 = vmatpush1.msra.mxu0 %v1678
    %1850 = vmatprep.subr.mxu0 %v1683
    %1851 = vmatpush1.msra.mxu0 %v1682
    %1852 = vmatprep.subr.mxu0 %v1687
    %1853 = vmatpush1.msra.mxu0 %v1686
    %1854 = vmatprep.subr.mxu0 %v1691
    %1855 = vmatpush1.msra.mxu0 %v1690
    %1856 = vmatprep.subr.mxu0 %v1695
    %1857 = vmatpush1.msra.mxu0 %v1694
    %1858 = vmatprep.subr.mxu0 %v1699
    %1859 = vmatpush1.msra.mxu0 %v1698
    %1860 = vmatprep.subr.mxu0 %v1703
    %1861 = vmatpush1.msra.mxu0 %v1702
    %1862 = vmatprep.subr.mxu0 %v1707
    %1863 = vmatpush1.msra.mxu0 %v1706
    %1864 = vmatprep.subr.mxu0 %v1711
    %1865 = vmatpush1.msra.mxu0 %v1710
    %1866 = vmatprep.subr.mxu0 %v1715
    %1867 = vmatpush1.msra.mxu0 %v1714
    %1868 = vmatprep.subr.mxu0 %v1719
    %1869 = vmatpush1.msra.mxu0 %v1718
    %1870 = vmatprep.subr.mxu0 %v1723
    %1871 = vmatpush1.msra.mxu0 %v1722
    %1872 = vmatprep.subr.mxu0 %v1727
    %1873 = vmatpush1.msra.mxu0 %v1726
    %1874 = vmatprep.subr.mxu0 %v1731
    %1875 = vmatpush1.msra.mxu0 %v1730
    %1876 = vmatprep.subr.mxu0 %v1735
    %1877 = vmatpush1.msra.mxu0 %v1734
    %1878 = vmatprep.subr.mxu0 0.0
    %1879 = vmatpush1.msra.mxu0 0.0
    %1880 = vmatprep.subr.mxu0 0.0
    %1881 = vmatpush1.msra.mxu0 0.0
    %1882 = vmatprep.subr.mxu0 0.0
    %1883 = vmatpush1.msra.mxu0 0.0
    %1884 = vmatprep.subr.mxu0 0.0
    %1885 = vmatpush1.msra.mxu0 0.0
    %1886 = vmatprep.subr.mxu0 0.0
    %1887 = vmatpush1.msra.mxu0 0.0
    %1888 = vmatprep.subr.mxu0 0.0
    %1889 = vmatpush1.msra.mxu0 0.0
    %1890 = vmatprep.subr.mxu0 0.0
    %1891 = vmatpush1.msra.mxu0 0.0
    %1892 = vmatprep.subr.mxu0 0.0
    %1893 = vmatpush1.msra.mxu0 0.0
    %1894 = vmatprep.subr.mxu0 0.0
    %1895 = vmatpush1.msra.mxu0 0.0
    %1896 = vmatprep.subr.mxu0 0.0
    %1897 = vmatpush1.msra.mxu0 0.0
    %1898 = vmatprep.subr.mxu0 0.0
    %1899 = vmatpush1.msra.mxu0 0.0
    %1900 = vmatprep.subr.mxu0 0.0
    %1901 = vmatpush1.msra.mxu0 0.0
    %1902 = vmatprep.subr.mxu0 0.0
    %1903 = vmatpush1.msra.mxu0 0.0
    %1904 = vmatprep.subr.mxu0 0.0
    %1905 = vmatpush1.msra.mxu0 0.0
    %1906 = vmatprep.subr.mxu0 0.0
    %1907 = vmatpush1.msra.mxu0 0.0
    %1908 = vmatprep.subr.mxu0 0.0
    %1909 = vmatpush1.msra.mxu0 0.0
    %1910 = vmatprep.mubr.f32.mxu0 0.0
    %1911 = vmatmul.mubr.f32.gmra.mrb[0].mxu0 %v1668
    %v1912 = vpop.f32.mrb[0].mxu0
    %v1913 = vadd.f32 %v1748, %v1912
    %v1914 = vpop.f32.mrb[0].mxu0
    %v1915 = vadd.f32 %v1752, %v1914
    %1916 = vmatprep.mubr.f32.mxu0 0.0
    %1917 = vmatmul.mubr.f32.gmra.mrb[0].mxu0 %v1669
    %v1918 = vpop.f32.mrb[0].mxu0
    %v1919 = vadd.f32 %v1748, %v1918
    %v1920 = vpop.f32.mrb[0].mxu0
    %v1921 = vadd.f32 %v1752, %v1920
    %1922 = vmatprep.mubr.f32.mxu0 0.0
    %1923 = vmatmul.mubr.f32.gmra.mrb[0].mxu0 %v1670
    %v1924 = vpop.f32.mrb[0].mxu0
    %v1925 = vadd.f32 %v1748, %v1924
    %v1926 = vpop.f32.mrb[0].mxu0
    %v1927 = vadd.f32 %v1752, %v1926
    %1928 = vmatprep.mubr.f32.mxu0 0.0
    %1929 = vmatmul.mubr.f32.gmra.mrb[0].mxu0 %v1671
    %v1930 = vpop.f32.mrb[0].mxu0
    %v1931 = vadd.f32 %v1748, %v1930
    %v1932 = vpop.f32.mrb[0].mxu0
    %v1933 = vadd.f32 %v1752, %v1932
    %1934 = vdwg.mxu0
    %1935 = vst [vmem:[%s383] sm:$0xff] %v1824
    %1936 = vst [vmem:[%s383 + $0x8] sm:$0xff] %v1826
    %1937 = vst [vmem:[%s383 + $0x10] sm:$0xff] %v1913
    %1938 = vst [vmem:[%s383 + $0x18] sm:$0xff] %v1915
    %1939 = vst [vmem:[%s383 + $0x20] sm:$0xff] %v1830
    %1940 = vst [vmem:[%s383 + $0x28] sm:$0xff] %v1832
    %1941 = vst [vmem:[%s383 + $0x30] sm:$0xff] %v1919
    %1942 = vst [vmem:[%s383 + $0x38] sm:$0xff] %v1921
    %1943 = vst [vmem:[%s383 + $0x40] sm:$0xff] %v1836
    %1944 = vst [vmem:[%s383 + $0x48] sm:$0xff] %v1838
    %1945 = vst [vmem:[%s383 + $0x50] sm:$0xff] %v1925
    %1946 = vst [vmem:[%s383 + $0x58] sm:$0xff] %v1927
    %1947 = vst [vmem:[%s383 + $0x60] sm:$0xff] %v1842
    %1948 = vst [vmem:[%s383 + $0x68] sm:$0xff] %v1844
    %1949 = vst [vmem:[%s383 + $0x70] sm:$0xff] %v1931
    %1950 = vst [vmem:[%s383 + $0x78] sm:$0xff] %v1933
    %s1951 = scalar_lea.vmem %s5, 8
    %v1952 = vld [vmem:[%s1951] sm:$0xff]
    %s1953 = scalar_lea.vmem [#allocation13], 8
    %v1954 = vld [vmem:[%s1953] sm:$0xff]
    loop: start=0, step=1, limit=2
    $region65: #{tpu_custom_call.1} parent=1 // loop_pre_header
      _
    $region66: #{tpu_custom_call.1} parent=1 // loop_header
      %s1956 = sphi 0, %s1960
      %p1957 = scmp.ge.s32.totalorder %s1956, 2
      %v1961 = vphi %v1952, %v3199
      %v1962 = vphi %v1954, %v3197
    $region67: #{tpu_custom_call.1} parent=1 // loop_header_branch
      %1959 = sbr.rel (%p1957) target = $region71
    $region68: #{tpu_custom_call.1} parent=1 // loop_body
      %s1963 = sadd.s32 %s1956, 1
      %p1964 = scmp.lt.s32.totalorder %s1963, 2
      // Predicated region
      $region72: #{tpu_custom_call.1} parent=68 // pred_check
        %p1965 = pneg %p1964
      $region73: #{tpu_custom_call.1} parent=68 // pred_check_branch
        %1967 = sbr.rel (%p1965) target = $region75
      $region74: #{tpu_custom_call.1} parent=68 // pred_region
        %s1968 = smul.u32 %s1963, 32
        %s1969 = scalar_lea.vmem [#allocation3], %s1968
        %v1970 = vld [vmem:[%s1969] sm:$0xff]
        %v1971 = vld [vmem:[%s1969 + $0x8] sm:$0xff]
        %v1972 = vld [vmem:[%s1969 + $0x10] sm:$0xff]
        %v1973 = vld [vmem:[%s1969 + $0x18] sm:$0xff]
        %v1974 = vld [vmem:[#allocation9] sm:$0xff]
        %v1975 = vld [vmem:[#allocation9 + $0x8] sm:$0xff]
        %v1976 = vld [vmem:[#allocation9 + $0x10] sm:$0xff]
        %v1977 = vld [vmem:[#allocation9 + $0x18] sm:$0xff]
        %v1978 = vld [vmem:[#allocation9 + $0x20] sm:$0xff]
        %v1979 = vld [vmem:[#allocation9 + $0x28] sm:$0xff]
        %v1980 = vld [vmem:[#allocation9 + $0x30] sm:$0xff]
        %v1981 = vld [vmem:[#allocation9 + $0x38] sm:$0xff]
        %v1982 = vld [vmem:[#allocation9 + $0x40] sm:$0xff]
        %v1983 = vld [vmem:[#allocation9 + $0x48] sm:$0xff]
        %v1984 = vld [vmem:[#allocation9 + $0x50] sm:$0xff]
        %v1985 = vld [vmem:[#allocation9 + $0x58] sm:$0xff]
        %v1986 = vld [vmem:[#allocation9 + $0x60] sm:$0xff]
        %v1987 = vld [vmem:[#allocation9 + $0x68] sm:$0xff]
        %v1988 = vld [vmem:[#allocation9 + $0x70] sm:$0xff]
        %v1989 = vld [vmem:[#allocation9 + $0x78] sm:$0xff]
        %v1990 = vld [vmem:[#allocation9 + $0x80] sm:$0xff]
        %v1991 = vld [vmem:[#allocation9 + $0x88] sm:$0xff]
        %v1992 = vld [vmem:[#allocation9 + $0x90] sm:$0xff]
        %v1993 = vld [vmem:[#allocation9 + $0x98] sm:$0xff]
        %v1994 = vld [vmem:[#allocation9 + $0xa0] sm:$0xff]
        %v1995 = vld [vmem:[#allocation9 + $0xa8] sm:$0xff]
        %v1996 = vld [vmem:[#allocation9 + $0xb0] sm:$0xff]
        %v1997 = vld [vmem:[#allocation9 + $0xb8] sm:$0xff]
        %v1998 = vld [vmem:[#allocation9 + $0xc0] sm:$0xff]
        %v1999 = vld [vmem:[#allocation9 + $0xc8] sm:$0xff]
        %v2000 = vld [vmem:[#allocation9 + $0xd0] sm:$0xff]
        %v2001 = vld [vmem:[#allocation9 + $0xd8] sm:$0xff]
        %v2002 = vld [vmem:[#allocation9 + $0xe0] sm:$0xff]
        %v2003 = vld [vmem:[#allocation9 + $0xe8] sm:$0xff]
        %v2004 = vld [vmem:[#allocation9 + $0xf0] sm:$0xff]
        %v2005 = vld [vmem:[#allocation9 + $0xf8] sm:$0xff]
        %v2006 = vld [vmem:[#allocation9 + $0x100] sm:$0xff]
        %v2007 = vld [vmem:[#allocation9 + $0x108] sm:$0xff]
        %v2008 = vld [vmem:[#allocation9 + $0x110] sm:$0xff]
        %v2009 = vld [vmem:[#allocation9 + $0x118] sm:$0xff]
        %v2010 = vld [vmem:[#allocation9 + $0x120] sm:$0xff]
        %v2011 = vld [vmem:[#allocation9 + $0x128] sm:$0xff]
        %v2012 = vld [vmem:[#allocation9 + $0x130] sm:$0xff]
        %v2013 = vld [vmem:[#allocation9 + $0x138] sm:$0xff]
        %v2014 = vld [vmem:[#allocation9 + $0x140] sm:$0xff]
        %v2015 = vld [vmem:[#allocation9 + $0x148] sm:$0xff]
        %v2016 = vld [vmem:[#allocation9 + $0x150] sm:$0xff]
        %v2017 = vld [vmem:[#allocation9 + $0x158] sm:$0xff]
        %v2018 = vld [vmem:[#allocation9 + $0x160] sm:$0xff]
        %v2019 = vld [vmem:[#allocation9 + $0x168] sm:$0xff]
        %v2020 = vld [vmem:[#allocation9 + $0x170] sm:$0xff]
        %v2021 = vld [vmem:[#allocation9 + $0x178] sm:$0xff]
        %v2022 = vld [vmem:[#allocation9 + $0x180] sm:$0xff]
        %v2023 = vld [vmem:[#allocation9 + $0x188] sm:$0xff]
        %v2024 = vld [vmem:[#allocation9 + $0x190] sm:$0xff]
        %v2025 = vld [vmem:[#allocation9 + $0x198] sm:$0xff]
        %v2026 = vld [vmem:[#allocation9 + $0x1a0] sm:$0xff]
        %v2027 = vld [vmem:[#allocation9 + $0x1a8] sm:$0xff]
        %v2028 = vld [vmem:[#allocation9 + $0x1b0] sm:$0xff]
        %v2029 = vld [vmem:[#allocation9 + $0x1b8] sm:$0xff]
        %v2030 = vld [vmem:[#allocation9 + $0x1c0] sm:$0xff]
        %v2031 = vld [vmem:[#allocation9 + $0x1c8] sm:$0xff]
        %v2032 = vld [vmem:[#allocation9 + $0x1d0] sm:$0xff]
        %v2033 = vld [vmem:[#allocation9 + $0x1d8] sm:$0xff]
        %v2034 = vld [vmem:[#allocation9 + $0x1e0] sm:$0xff]
        %v2035 = vld [vmem:[#allocation9 + $0x1e8] sm:$0xff]
        %v2036 = vld [vmem:[#allocation9 + $0x1f0] sm:$0xff]
        %v2037 = vld [vmem:[#allocation9 + $0x1f8] sm:$0xff]
        %2038 = vmatprep.subr.mxu0 %v1975
        %2039 = vmatpush1.msra.mxu0 %v1974
        %2040 = vmatprep.subr.mxu0 %v1979
        %2041 = vmatpush1.msra.mxu0 %v1978
        %2042 = vmatprep.subr.mxu0 %v1983
        %2043 = vmatpush1.msra.mxu0 %v1982
        %2044 = vmatprep.subr.mxu0 %v1987
        %2045 = vmatpush1.msra.mxu0 %v1986
        %2046 = vmatprep.subr.mxu0 %v1991
        %2047 = vmatpush1.msra.mxu0 %v1990
        %2048 = vmatprep.subr.mxu0 %v1995
        %2049 = vmatpush1.msra.mxu0 %v1994
        %2050 = vmatprep.subr.mxu0 %v1999
        %2051 = vmatpush1.msra.mxu0 %v1998
        %2052 = vmatprep.subr.mxu0 %v2003
        %2053 = vmatpush1.msra.mxu0 %v2002
        %2054 = vmatprep.subr.mxu0 %v2007
        %2055 = vmatpush1.msra.mxu0 %v2006
        %2056 = vmatprep.subr.mxu0 %v2011
        %2057 = vmatpush1.msra.mxu0 %v2010
        %2058 = vmatprep.subr.mxu0 %v2015
        %2059 = vmatpush1.msra.mxu0 %v2014
        %2060 = vmatprep.subr.mxu0 %v2019
        %2061 = vmatpush1.msra.mxu0 %v2018
        %2062 = vmatprep.subr.mxu0 %v2023
        %2063 = vmatpush1.msra.mxu0 %v2022
        %2064 = vmatprep.subr.mxu0 %v2027
        %2065 = vmatpush1.msra.mxu0 %v2026
        %2066 = vmatprep.subr.mxu0 %v2031
        %2067 = vmatpush1.msra.mxu0 %v2030
        %2068 = vmatprep.subr.mxu0 %v2035
        %2069 = vmatpush1.msra.mxu0 %v2034
        %2070 = vmatprep.subr.mxu0 0.0
        %2071 = vmatpush1.msra.mxu0 0.0
        %2072 = vmatprep.subr.mxu0 0.0
        %2073 = vmatpush1.msra.mxu0 0.0
        %2074 = vmatprep.subr.mxu0 0.0
        %2075 = vmatpush1.msra.mxu0 0.0
        %2076 = vmatprep.subr.mxu0 0.0
        %2077 = vmatpush1.msra.mxu0 0.0
        %2078 = vmatprep.subr.mxu0 0.0
        %2079 = vmatpush1.msra.mxu0 0.0
        %2080 = vmatprep.subr.mxu0 0.0
        %2081 = vmatpush1.msra.mxu0 0.0
        %2082 = vmatprep.subr.mxu0 0.0
        %2083 = vmatpush1.msra.mxu0 0.0
        %2084 = vmatprep.subr.mxu0 0.0
        %2085 = vmatpush1.msra.mxu0 0.0
        %2086 = vmatprep.subr.mxu0 0.0
        %2087 = vmatpush1.msra.mxu0 0.0
        %2088 = vmatprep.subr.mxu0 0.0
        %2089 = vmatpush1.msra.mxu0 0.0
        %2090 = vmatprep.subr.mxu0 0.0
        %2091 = vmatpush1.msra.mxu0 0.0
        %2092 = vmatprep.subr.mxu0 0.0
        %2093 = vmatpush1.msra.mxu0 0.0
        %2094 = vmatprep.subr.mxu0 0.0
        %2095 = vmatpush1.msra.mxu0 0.0
        %2096 = vmatprep.subr.mxu0 0.0
        %2097 = vmatpush1.msra.mxu0 0.0
        %2098 = vmatprep.subr.mxu0 0.0
        %2099 = vmatpush1.msra.mxu0 0.0
        %2100 = vmatprep.subr.mxu0 0.0
        %2101 = vmatpush1.msra.mxu0 0.0
        %2102 = vmatprep.mubr.f32.mxu0 0.0
        %2103 = vmatmul.mubr.f32.gmra.mrb[0].mxu0 %v1970
        %v2104 = vpop.f32.mrb[0].mxu0
        %v2105 = vadd.f32 %v1740, %v2104
        %v2106 = vpop.f32.mrb[0].mxu0
        %v2107 = vadd.f32 %v1744, %v2106
        %2108 = vmatprep.mubr.f32.mxu0 0.0
        %2109 = vmatmul.mubr.f32.gmra.mrb[0].mxu0 %v1971
        %v2110 = vpop.f32.mrb[0].mxu0
        %v2111 = vadd.f32 %v1740, %v2110
        %v2112 = vpop.f32.mrb[0].mxu0
        %v2113 = vadd.f32 %v1744, %v2112
        %2114 = vmatprep.mubr.f32.mxu0 0.0
        %2115 = vmatmul.mubr.f32.gmra.mrb[0].mxu0 %v1972
        %v2116 = vpop.f32.mrb[0].mxu0
        %v2117 = vadd.f32 %v1740, %v2116
        %v2118 = vpop.f32.mrb[0].mxu0
        %v2119 = vadd.f32 %v1744, %v2118
        %2120 = vmatprep.mubr.f32.mxu0 0.0
        %2121 = vmatmul.mubr.f32.gmra.mrb[0].mxu0 %v1973
        %v2122 = vpop.f32.mrb[0].mxu0
        %v2123 = vadd.f32 %v1740, %v2122
        %v2124 = vpop.f32.mrb[0].mxu0
        %v2125 = vadd.f32 %v1744, %v2124
        %2126 = vdwg.mxu0
        %2127 = vmatprep.subr.mxu0 %v1977
        %2128 = vmatpush1.msra.mxu0 %v1976
        %2129 = vmatprep.subr.mxu0 %v1981
        %2130 = vmatpush1.msra.mxu0 %v1980
        %2131 = vmatprep.subr.mxu0 %v1985
        %2132 = vmatpush1.msra.mxu0 %v1984
        %2133 = vmatprep.subr.mxu0 %v1989
        %2134 = vmatpush1.msra.mxu0 %v1988
        %2135 = vmatprep.subr.mxu0 %v1993
        %2136 = vmatpush1.msra.mxu0 %v1992
        %2137 = vmatprep.subr.mxu0 %v1997
        %2138 = vmatpush1.msra.mxu0 %v1996
        %2139 = vmatprep.subr.mxu0 %v2001
        %2140 = vmatpush1.msra.mxu0 %v2000
        %2141 = vmatprep.subr.mxu0 %v2005
        %2142 = vmatpush1.msra.mxu0 %v2004
        %2143 = vmatprep.subr.mxu0 %v2009
        %2144 = vmatpush1.msra.mxu0 %v2008
        %2145 = vmatprep.subr.mxu0 %v2013
        %2146 = vmatpush1.msra.mxu0 %v2012
        %2147 = vmatprep.subr.mxu0 %v2017
        %2148 = vmatpush1.msra.mxu0 %v2016
        %2149 = vmatprep.subr.mxu0 %v2021
        %2150 = vmatpush1.msra.mxu0 %v2020
        %2151 = vmatprep.subr.mxu0 %v2025
        %2152 = vmatpush1.msra.mxu0 %v2024
        %2153 = vmatprep.subr.mxu0 %v2029
        %2154 = vmatpush1.msra.mxu0 %v2028
        %2155 = vmatprep.subr.mxu0 %v2033
        %2156 = vmatpush1.msra.mxu0 %v2032
        %2157 = vmatprep.subr.mxu0 %v2037
        %2158 = vmatpush1.msra.mxu0 %v2036
        %2159 = vmatprep.subr.mxu0 0.0
        %2160 = vmatpush1.msra.mxu0 0.0
        %2161 = vmatprep.subr.mxu0 0.0
        %2162 = vmatpush1.msra.mxu0 0.0
        %2163 = vmatprep.subr.mxu0 0.0
        %2164 = vmatpush1.msra.mxu0 0.0
        %2165 = vmatprep.subr.mxu0 0.0
        %2166 = vmatpush1.msra.mxu0 0.0
        %2167 = vmatprep.subr.mxu0 0.0
        %2168 = vmatpush1.msra.mxu0 0.0
        %2169 = vmatprep.subr.mxu0 0.0
        %2170 = vmatpush1.msra.mxu0 0.0
        %2171 = vmatprep.subr.mxu0 0.0
        %2172 = vmatpush1.msra.mxu0 0.0
        %2173 = vmatprep.subr.mxu0 0.0
        %2174 = vmatpush1.msra.mxu0 0.0
        %2175 = vmatprep.subr.mxu0 0.0
        %2176 = vmatpush1.msra.mxu0 0.0
        %2177 = vmatprep.subr.mxu0 0.0
        %2178 = vmatpush1.msra.mxu0 0.0
        %2179 = vmatprep.subr.mxu0 0.0
        %2180 = vmatpush1.msra.mxu0 0.0
        %2181 = vmatprep.subr.mxu0 0.0
        %2182 = vmatpush1.msra.mxu0 0.0
        %2183 = vmatprep.subr.mxu0 0.0
        %2184 = vmatpush1.msra.mxu0 0.0
        %2185 = vmatprep.subr.mxu0 0.0
        %2186 = vmatpush1.msra.mxu0 0.0
        %2187 = vmatprep.subr.mxu0 0.0
        %2188 = vmatpush1.msra.mxu0 0.0
        %2189 = vmatprep.subr.mxu0 0.0
        %2190 = vmatpush1.msra.mxu0 0.0
        %2191 = vmatprep.mubr.f32.mxu0 0.0
        %2192 = vmatmul.mubr.f32.gmra.mrb[0].mxu0 %v1970
        %v2193 = vpop.f32.mrb[0].mxu0
        %v2194 = vadd.f32 %v1748, %v2193
        %v2195 = vpop.f32.mrb[0].mxu0
        %v2196 = vadd.f32 %v1752, %v2195
        %2197 = vmatprep.mubr.f32.mxu0 0.0
        %2198 = vmatmul.mubr.f32.gmra.mrb[0].mxu0 %v1971
        %v2199 = vpop.f32.mrb[0].mxu0
        %v2200 = vadd.f32 %v1748, %v2199
        %v2201 = vpop.f32.mrb[0].mxu0
        %v2202 = vadd.f32 %v1752, %v2201
        %2203 = vmatprep.mubr.f32.mxu0 0.0
        %2204 = vmatmul.mubr.f32.gmra.mrb[0].mxu0 %v1972
        %v2205 = vpop.f32.mrb[0].mxu0
        %v2206 = vadd.f32 %v1748, %v2205
        %v2207 = vpop.f32.mrb[0].mxu0
        %v2208 = vadd.f32 %v1752, %v2207
        %2209 = vmatprep.mubr.f32.mxu0 0.0
        %2210 = vmatmul.mubr.f32.gmra.mrb[0].mxu0 %v1973
        %v2211 = vpop.f32.mrb[0].mxu0
        %v2212 = vadd.f32 %v1748, %v2211
        %v2213 = vpop.f32.mrb[0].mxu0
        %v2214 = vadd.f32 %v1752, %v2213
        %2215 = vdwg.mxu0
        %s2216 = sshra.s32 %s1968, 3
        %s2217 = sand.u32 %s1968, 7
        %s2218 = smul.u32 %s2216, 4
        %s2219 = smul.addr %s2218, 8
        %s2220 = scalar_lea.vmem [#allocation2], %s2219
        %2221 = vst [vmem:[%s2220] sm:$0xff] %v2105
        %2222 = vst [vmem:[%s2220 + $0x8] sm:$0xff] %v2107
        %2223 = vst [vmem:[%s2220 + $0x10] sm:$0xff] %v2194
        %2224 = vst [vmem:[%s2220 + $0x18] sm:$0xff] %v2196
        %2225 = vst [vmem:[%s2220 + $0x20] sm:$0xff] %v2111
        %2226 = vst [vmem:[%s2220 + $0x28] sm:$0xff] %v2113
        %2227 = vst [vmem:[%s2220 + $0x30] sm:$0xff] %v2200
        %2228 = vst [vmem:[%s2220 + $0x38] sm:$0xff] %v2202
        %2229 = vst [vmem:[%s2220 + $0x40] sm:$0xff] %v2117
        %2230 = vst [vmem:[%s2220 + $0x48] sm:$0xff] %v2119
        %2231 = vst [vmem:[%s2220 + $0x50] sm:$0xff] %v2206
        %2232 = vst [vmem:[%s2220 + $0x58] sm:$0xff] %v2208
        %2233 = vst [vmem:[%s2220 + $0x60] sm:$0xff] %v2123
        %2234 = vst [vmem:[%s2220 + $0x68] sm:$0xff] %v2125
        %2235 = vst [vmem:[%s2220 + $0x70] sm:$0xff] %v2212
        %2236 = vst [vmem:[%s2220 + $0x78] sm:$0xff] %v2214
      $region75: #{tpu_custom_call.1} parent=68 // pred_fallthru
        _
      %s2237 = smul.u32 %s1956, 32
      %s2238 = sshra.s32 %s2237, 3
      %s2239 = sand.u32 %s2237, 7
      %s2240 = smul.u32 %s2238, 4
      %s2241 = smul.addr %s2240, 8
      %s2242 = scalar_lea.vmem [#allocation2], %s2241
      %v2243 = vld [vmem:[%s2242] sm:$0xff]
      %v2244 = vld [vmem:[%s2242 + $0x8] sm:$0xff]
      %v2245 = vld [vmem:[%s2242 + $0x10] sm:$0xff]
      %v2246 = vld [vmem:[%s2242 + $0x18] sm:$0xff]
      %s2247 = scalar_lea.vmem [#allocation10], 512
      %v2248 = vld [vmem:[%s2247] sm:$0xff]
      %v2249 = vld [vmem:[%s2247 + $0x8] sm:$0xff]
      %v2250 = vld [vmem:[%s2247 + $0x10] sm:$0xff]
      %v2251 = vld [vmem:[%s2247 + $0x18] sm:$0xff]
      %v2252 = vld [vmem:[%s2247 + $0x20] sm:$0xff]
      %v2253 = vld [vmem:[%s2247 + $0x28] sm:$0xff]
      %v2254 = vld [vmem:[%s2247 + $0x30] sm:$0xff]
      %v2255 = vld [vmem:[%s2247 + $0x38] sm:$0xff]
      %v2256 = vld [vmem:[%s2247 + $0x40] sm:$0xff]
      %v2257 = vld [vmem:[%s2247 + $0x48] sm:$0xff]
      %v2258 = vld [vmem:[%s2247 + $0x50] sm:$0xff]
      %v2259 = vld [vmem:[%s2247 + $0x58] sm:$0xff]
      %v2260 = vld [vmem:[%s2247 + $0x60] sm:$0xff]
      %v2261 = vld [vmem:[%s2247 + $0x68] sm:$0xff]
      %v2262 = vld [vmem:[%s2247 + $0x70] sm:$0xff]
      %v2263 = vld [vmem:[%s2247 + $0x78] sm:$0xff]
      %v2264 = vld [vmem:[%s2247 + $0x80] sm:$0xff]
      %v2265 = vld [vmem:[%s2247 + $0x88] sm:$0xff]
      %v2266 = vld [vmem:[%s2247 + $0x90] sm:$0xff]
      %v2267 = vld [vmem:[%s2247 + $0x98] sm:$0xff]
      %v2268 = vld [vmem:[%s2247 + $0xa0] sm:$0xff]
      %v2269 = vld [vmem:[%s2247 + $0xa8] sm:$0xff]
      %v2270 = vld [vmem:[%s2247 + $0xb0] sm:$0xff]
      %v2271 = vld [vmem:[%s2247 + $0xb8] sm:$0xff]
      %v2272 = vld [vmem:[%s2247 + $0xc0] sm:$0xff]
      %v2273 = vld [vmem:[%s2247 + $0xc8] sm:$0xff]
      %v2274 = vld [vmem:[%s2247 + $0xd0] sm:$0xff]
      %v2275 = vld [vmem:[%s2247 + $0xd8] sm:$0xff]
      %v2276 = vld [vmem:[%s2247 + $0xe0] sm:$0xff]
      %v2277 = vld [vmem:[%s2247 + $0xe8] sm:$0xff]
      %v2278 = vld [vmem:[%s2247 + $0xf0] sm:$0xff]
      %v2279 = vld [vmem:[%s2247 + $0xf8] sm:$0xff]
      %v2280 = vld [vmem:[%s2247 + $0x100] sm:$0xff]
      %v2281 = vld [vmem:[%s2247 + $0x108] sm:$0xff]
      %v2282 = vld [vmem:[%s2247 + $0x110] sm:$0xff]
      %v2283 = vld [vmem:[%s2247 + $0x118] sm:$0xff]
      %v2284 = vld [vmem:[%s2247 + $0x120] sm:$0xff]
      %v2285 = vld [vmem:[%s2247 + $0x128] sm:$0xff]
      %v2286 = vld [vmem:[%s2247 + $0x130] sm:$0xff]
      %v2287 = vld [vmem:[%s2247 + $0x138] sm:$0xff]
      %v2288 = vld [vmem:[%s2247 + $0x140] sm:$0xff]
      %v2289 = vld [vmem:[%s2247 + $0x148] sm:$0xff]
      %v2290 = vld [vmem:[%s2247 + $0x150] sm:$0xff]
      %v2291 = vld [vmem:[%s2247 + $0x158] sm:$0xff]
      %v2292 = vld [vmem:[%s2247 + $0x160] sm:$0xff]
      %v2293 = vld [vmem:[%s2247 + $0x168] sm:$0xff]
      %v2294 = vld [vmem:[%s2247 + $0x170] sm:$0xff]
      %v2295 = vld [vmem:[%s2247 + $0x178] sm:$0xff]
      %v2296 = vld [vmem:[%s2247 + $0x180] sm:$0xff]
      %v2297 = vld [vmem:[%s2247 + $0x188] sm:$0xff]
      %v2298 = vld [vmem:[%s2247 + $0x190] sm:$0xff]
      %v2299 = vld [vmem:[%s2247 + $0x198] sm:$0xff]
      %v2300 = vld [vmem:[%s2247 + $0x1a0] sm:$0xff]
      %v2301 = vld [vmem:[%s2247 + $0x1a8] sm:$0xff]
      %v2302 = vld [vmem:[%s2247 + $0x1b0] sm:$0xff]
      %v2303 = vld [vmem:[%s2247 + $0x1b8] sm:$0xff]
      %v2304 = vld [vmem:[%s2247 + $0x1c0] sm:$0xff]
      %v2305 = vld [vmem:[%s2247 + $0x1c8] sm:$0xff]
      %v2306 = vld [vmem:[%s2247 + $0x1d0] sm:$0xff]
      %v2307 = vld [vmem:[%s2247 + $0x1d8] sm:$0xff]
      %v2308 = vld [vmem:[%s2247 + $0x1e0] sm:$0xff]
      %v2309 = vld [vmem:[%s2247 + $0x1e8] sm:$0xff]
      %v2310 = vld [vmem:[%s2247 + $0x1f0] sm:$0xff]
      %v2311 = vld [vmem:[%s2247 + $0x1f8] sm:$0xff]
      %2312 = vmatprep.subr.mxu0 %v2249
      %2313 = vmatpush1.msra.mxu0 %v2248
      %2314 = vmatprep.subr.mxu0 %v2253
      %2315 = vmatpush1.msra.mxu0 %v2252
      %2316 = vmatprep.subr.mxu0 %v2257
      %2317 = vmatpush1.msra.mxu0 %v2256
      %2318 = vmatprep.subr.mxu0 %v2261
      %2319 = vmatpush1.msra.mxu0 %v2260
      %2320 = vmatprep.subr.mxu0 %v2265
      %2321 = vmatpush1.msra.mxu0 %v2264
      %2322 = vmatprep.subr.mxu0 %v2269
      %2323 = vmatpush1.msra.mxu0 %v2268
      %2324 = vmatprep.subr.mxu0 %v2273
      %2325 = vmatpush1.msra.mxu0 %v2272
      %2326 = vmatprep.subr.mxu0 %v2277
      %2327 = vmatpush1.msra.mxu0 %v2276
      %2328 = vmatprep.subr.mxu0 %v2281
      %2329 = vmatpush1.msra.mxu0 %v2280
      %2330 = vmatprep.subr.mxu0 %v2285
      %2331 = vmatpush1.msra.mxu0 %v2284
      %2332 = vmatprep.subr.mxu0 %v2289
      %2333 = vmatpush1.msra.mxu0 %v2288
      %2334 = vmatprep.subr.mxu0 %v2293
      %2335 = vmatpush1.msra.mxu0 %v2292
      %2336 = vmatprep.subr.mxu0 %v2297
      %2337 = vmatpush1.msra.mxu0 %v2296
      %2338 = vmatprep.subr.mxu0 %v2301
      %2339 = vmatpush1.msra.mxu0 %v2300
      %2340 = vmatprep.subr.mxu0 %v2305
      %2341 = vmatpush1.msra.mxu0 %v2304
      %2342 = vmatprep.subr.mxu0 %v2309
      %2343 = vmatpush1.msra.mxu0 %v2308
      %2344 = vmatprep.subr.mxu0 0.0
      %2345 = vmatpush1.msra.mxu0 0.0
      %2346 = vmatprep.subr.mxu0 0.0
      %2347 = vmatpush1.msra.mxu0 0.0
      %2348 = vmatprep.subr.mxu0 0.0
      %2349 = vmatpush1.msra.mxu0 0.0
      %2350 = vmatprep.subr.mxu0 0.0
      %2351 = vmatpush1.msra.mxu0 0.0
      %2352 = vmatprep.subr.mxu0 0.0
      %2353 = vmatpush1.msra.mxu0 0.0
      %2354 = vmatprep.subr.mxu0 0.0
      %2355 = vmatpush1.msra.mxu0 0.0
      %2356 = vmatprep.subr.mxu0 0.0
      %2357 = vmatpush1.msra.mxu0 0.0
      %2358 = vmatprep.subr.mxu0 0.0
      %2359 = vmatpush1.msra.mxu0 0.0
      %2360 = vmatprep.subr.mxu0 0.0
      %2361 = vmatpush1.msra.mxu0 0.0
      %2362 = vmatprep.subr.mxu0 0.0
      %2363 = vmatpush1.msra.mxu0 0.0
      %2364 = vmatprep.subr.mxu0 0.0
      %2365 = vmatpush1.msra.mxu0 0.0
      %2366 = vmatprep.subr.mxu0 0.0
      %2367 = vmatpush1.msra.mxu0 0.0
      %2368 = vmatprep.subr.mxu0 0.0
      %2369 = vmatpush1.msra.mxu0 0.0
      %2370 = vmatprep.subr.mxu0 0.0
      %2371 = vmatpush1.msra.mxu0 0.0
      %2372 = vmatprep.subr.mxu0 0.0
      %2373 = vmatpush1.msra.mxu0 0.0
      %2374 = vmatprep.subr.mxu0 0.0
      %2375 = vmatpush1.msra.mxu0 0.0
      %2376 = vmatprep.mubr.f32.mxu0 0.0
      %2377 = vmatmul.mubr.f32.gmra.mrb[0].mxu0 %v1961
      %v2378 = vpop.f32.mrb[0].mxu0
      %v2379 = vadd.f32 0.0, %v2378
      %v2380 = vpop.f32.mrb[0].mxu0
      %v2381 = vadd.f32 0.0, %v2380
      %2382 = vdwg.mxu0
      %2383 = vmatprep.subr.mxu0 %v2251
      %2384 = vmatpush1.msra.mxu0 %v2250
      %2385 = vmatprep.subr.mxu0 %v2255
      %2386 = vmatpush1.msra.mxu0 %v2254
      %2387 = vmatprep.subr.mxu0 %v2259
      %2388 = vmatpush1.msra.mxu0 %v2258
      %2389 = vmatprep.subr.mxu0 %v2263
      %2390 = vmatpush1.msra.mxu0 %v2262
      %2391 = vmatprep.subr.mxu0 %v2267
      %2392 = vmatpush1.msra.mxu0 %v2266
      %2393 = vmatprep.subr.mxu0 %v2271
      %2394 = vmatpush1.msra.mxu0 %v2270
      %2395 = vmatprep.subr.mxu0 %v2275
      %2396 = vmatpush1.msra.mxu0 %v2274
      %2397 = vmatprep.subr.mxu0 %v2279
      %2398 = vmatpush1.msra.mxu0 %v2278
      %2399 = vmatprep.subr.mxu0 %v2283
      %2400 = vmatpush1.msra.mxu0 %v2282
      %2401 = vmatprep.subr.mxu0 %v2287
      %2402 = vmatpush1.msra.mxu0 %v2286
      %2403 = vmatprep.subr.mxu0 %v2291
      %2404 = vmatpush1.msra.mxu0 %v2290
      %2405 = vmatprep.subr.mxu0 %v2295
      %2406 = vmatpush1.msra.mxu0 %v2294
      %2407 = vmatprep.subr.mxu0 %v2299
      %2408 = vmatpush1.msra.mxu0 %v2298
      %2409 = vmatprep.subr.mxu0 %v2303
      %2410 = vmatpush1.msra.mxu0 %v2302
      %2411 = vmatprep.subr.mxu0 %v2307
      %2412 = vmatpush1.msra.mxu0 %v2306
      %2413 = vmatprep.subr.mxu0 %v2311
      %2414 = vmatpush1.msra.mxu0 %v2310
      %2415 = vmatprep.subr.mxu0 0.0
      %2416 = vmatpush1.msra.mxu0 0.0
      %2417 = vmatprep.subr.mxu0 0.0
      %2418 = vmatpush1.msra.mxu0 0.0
      %2419 = vmatprep.subr.mxu0 0.0
      %2420 = vmatpush1.msra.mxu0 0.0
      %2421 = vmatprep.subr.mxu0 0.0
      %2422 = vmatpush1.msra.mxu0 0.0
      %2423 = vmatprep.subr.mxu0 0.0
      %2424 = vmatpush1.msra.mxu0 0.0
      %2425 = vmatprep.subr.mxu0 0.0
      %2426 = vmatpush1.msra.mxu0 0.0
      %2427 = vmatprep.subr.mxu0 0.0
      %2428 = vmatpush1.msra.mxu0 0.0
      %2429 = vmatprep.subr.mxu0 0.0
      %2430 = vmatpush1.msra.mxu0 0.0
      %2431 = vmatprep.subr.mxu0 0.0
      %2432 = vmatpush1.msra.mxu0 0.0
      %2433 = vmatprep.subr.mxu0 0.0
      %2434 = vmatpush1.msra.mxu0 0.0
      %2435 = vmatprep.subr.mxu0 0.0
      %2436 = vmatpush1.msra.mxu0 0.0
      %2437 = vmatprep.subr.mxu0 0.0
      %2438 = vmatpush1.msra.mxu0 0.0
      %2439 = vmatprep.subr.mxu0 0.0
      %2440 = vmatpush1.msra.mxu0 0.0
      %2441 = vmatprep.subr.mxu0 0.0
      %2442 = vmatpush1.msra.mxu0 0.0
      %2443 = vmatprep.subr.mxu0 0.0
      %2444 = vmatpush1.msra.mxu0 0.0
      %2445 = vmatprep.subr.mxu0 0.0
      %2446 = vmatpush1.msra.mxu0 0.0
      %2447 = vmatprep.mubr.f32.mxu0 0.0
      %2448 = vmatmul.mubr.f32.gmra.mrb[0].mxu0 %v1961
      %v2449 = vpop.f32.mrb[0].mxu0
      %v2450 = vadd.f32 0.0, %v2449
      %v2451 = vpop.f32.mrb[0].mxu0
      %v2452 = vadd.f32 0.0, %v2451
      %2453 = vdwg.mxu0
      %v2454 = vadd.f32 %v2243, %v2379
      %v2455 = vadd.f32 %v2244, %v2381
      %v2456 = vadd.f32 %v2245, %v2450
      %v2457 = vadd.f32 %v2246, %v2452
      %v2458 = vmul.f32 %v2454, 0.5
      %v2459 = vtanh.pop %v2458
      %v2460 = vmul.f32 %v2459, 0.5
      %v2461 = vadd.f32 %v2460, 0.5
      %v2462 = vmul.f32 %v2455, 0.5
      %v2463 = vtanh.pop %v2462
      %v2464 = vmul.f32 %v2463, 0.5
      %v2465 = vadd.f32 %v2464, 0.5
      %v2466 = vtanh.pop %v2456
      %v2467 = vmul.f32 %v2457, 0.5
      %v2468 = vtanh.pop %v2467
      %v2469 = vmul.f32 %v2468, 0.5
      %v2470 = vadd.f32 %v2469, 0.5
      %v2471 = vmul.f32 %v2465, %v1962
      %v2472 = vmul.f32 %v2461, %v2466
      %v2473 = vadd.f32 %v2471, %v2472
      %v2474 = vtanh.pop %v2473
      %v2475 = vmul.f32 %v2470, %v2474
      %s2476 = scalar_lea.vmem [#allocation15], %s2237
      %2477 = vst [vmem:[%s2476] sm:$0xff] %v2475
      %s2478 = smul.u32 %s1956, 4
      %s2479 = sadd.s32 %s2478, 1
      %s2480 = smul.u32 %s2479, 8
      %s2481 = sshra.s32 %s2480, 3
      %s2482 = sand.u32 %s2480, 7
      %s2483 = smul.u32 %s2481, 4
      %s2484 = smul.addr %s2483, 8
      %s2485 = scalar_lea.vmem [#allocation2], %s2484
      %v2486 = vld [vmem:[%s2485] sm:$0xff]
      %v2487 = vld [vmem:[%s2485 + $0x8] sm:$0xff]
      %v2488 = vld [vmem:[%s2485 + $0x10] sm:$0xff]
      %v2489 = vld [vmem:[%s2485 + $0x18] sm:$0xff]
      %v2490 = vld [vmem:[%s2247] sm:$0xff]
      %v2491 = vld [vmem:[%s2247 + $0x8] sm:$0xff]
      %v2492 = vld [vmem:[%s2247 + $0x10] sm:$0xff]
      %v2493 = vld [vmem:[%s2247 + $0x18] sm:$0xff]
      %v2494 = vld [vmem:[%s2247 + $0x20] sm:$0xff]
      %v2495 = vld [vmem:[%s2247 + $0x28] sm:$0xff]
      %v2496 = vld [vmem:[%s2247 + $0x30] sm:$0xff]
      %v2497 = vld [vmem:[%s2247 + $0x38] sm:$0xff]
      %v2498 = vld [vmem:[%s2247 + $0x40] sm:$0xff]
      %v2499 = vld [vmem:[%s2247 + $0x48] sm:$0xff]
      %v2500 = vld [vmem:[%s2247 + $0x50] sm:$0xff]
      %v2501 = vld [vmem:[%s2247 + $0x58] sm:$0xff]
      %v2502 = vld [vmem:[%s2247 + $0x60] sm:$0xff]
      %v2503 = vld [vmem:[%s2247 + $0x68] sm:$0xff]
      %v2504 = vld [vmem:[%s2247 + $0x70] sm:$0xff]
      %v2505 = vld [vmem:[%s2247 + $0x78] sm:$0xff]
      %v2506 = vld [vmem:[%s2247 + $0x80] sm:$0xff]
      %v2507 = vld [vmem:[%s2247 + $0x88] sm:$0xff]
      %v2508 = vld [vmem:[%s2247 + $0x90] sm:$0xff]
      %v2509 = vld [vmem:[%s2247 + $0x98] sm:$0xff]
      %v2510 = vld [vmem:[%s2247 + $0xa0] sm:$0xff]
      %v2511 = vld [vmem:[%s2247 + $0xa8] sm:$0xff]
      %v2512 = vld [vmem:[%s2247 + $0xb0] sm:$0xff]
      %v2513 = vld [vmem:[%s2247 + $0xb8] sm:$0xff]
      %v2514 = vld [vmem:[%s2247 + $0xc0] sm:$0xff]
      %v2515 = vld [vmem:[%s2247 + $0xc8] sm:$0xff]
      %v2516 = vld [vmem:[%s2247 + $0xd0] sm:$0xff]
      %v2517 = vld [vmem:[%s2247 + $0xd8] sm:$0xff]
      %v2518 = vld [vmem:[%s2247 + $0xe0] sm:$0xff]
      %v2519 = vld [vmem:[%s2247 + $0xe8] sm:$0xff]
      %v2520 = vld [vmem:[%s2247 + $0xf0] sm:$0xff]
      %v2521 = vld [vmem:[%s2247 + $0xf8] sm:$0xff]
      %v2522 = vld [vmem:[%s2247 + $0x100] sm:$0xff]
      %v2523 = vld [vmem:[%s2247 + $0x108] sm:$0xff]
      %v2524 = vld [vmem:[%s2247 + $0x110] sm:$0xff]
      %v2525 = vld [vmem:[%s2247 + $0x118] sm:$0xff]
      %v2526 = vld [vmem:[%s2247 + $0x120] sm:$0xff]
      %v2527 = vld [vmem:[%s2247 + $0x128] sm:$0xff]
      %v2528 = vld [vmem:[%s2247 + $0x130] sm:$0xff]
      %v2529 = vld [vmem:[%s2247 + $0x138] sm:$0xff]
      %v2530 = vld [vmem:[%s2247 + $0x140] sm:$0xff]
      %v2531 = vld [vmem:[%s2247 + $0x148] sm:$0xff]
      %v2532 = vld [vmem:[%s2247 + $0x150] sm:$0xff]
      %v2533 = vld [vmem:[%s2247 + $0x158] sm:$0xff]
      %v2534 = vld [vmem:[%s2247 + $0x160] sm:$0xff]
      %v2535 = vld [vmem:[%s2247 + $0x168] sm:$0xff]
      %v2536 = vld [vmem:[%s2247 + $0x170] sm:$0xff]
      %v2537 = vld [vmem:[%s2247 + $0x178] sm:$0xff]
      %v2538 = vld [vmem:[%s2247 + $0x180] sm:$0xff]
      %v2539 = vld [vmem:[%s2247 + $0x188] sm:$0xff]
      %v2540 = vld [vmem:[%s2247 + $0x190] sm:$0xff]
      %v2541 = vld [vmem:[%s2247 + $0x198] sm:$0xff]
      %v2542 = vld [vmem:[%s2247 + $0x1a0] sm:$0xff]
      %v2543 = vld [vmem:[%s2247 + $0x1a8] sm:$0xff]
      %v2544 = vld [vmem:[%s2247 + $0x1b0] sm:$0xff]
      %v2545 = vld [vmem:[%s2247 + $0x1b8] sm:$0xff]
      %v2546 = vld [vmem:[%s2247 + $0x1c0] sm:$0xff]
      %v2547 = vld [vmem:[%s2247 + $0x1c8] sm:$0xff]
      %v2548 = vld [vmem:[%s2247 + $0x1d0] sm:$0xff]
      %v2549 = vld [vmem:[%s2247 + $0x1d8] sm:$0xff]
      %v2550 = vld [vmem:[%s2247 + $0x1e0] sm:$0xff]
      %v2551 = vld [vmem:[%s2247 + $0x1e8] sm:$0xff]
      %v2552 = vld [vmem:[%s2247 + $0x1f0] sm:$0xff]
      %v2553 = vld [vmem:[%s2247 + $0x1f8] sm:$0xff]
      %2554 = vmatprep.subr.mxu0 %v2491
      %2555 = vmatpush1.msra.mxu0 %v2490
      %2556 = vmatprep.subr.mxu0 %v2495
      %2557 = vmatpush1.msra.mxu0 %v2494
      %2558 = vmatprep.subr.mxu0 %v2499
      %2559 = vmatpush1.msra.mxu0 %v2498
      %2560 = vmatprep.subr.mxu0 %v2503
      %2561 = vmatpush1.msra.mxu0 %v2502
      %2562 = vmatprep.subr.mxu0 %v2507
      %2563 = vmatpush1.msra.mxu0 %v2506
      %2564 = vmatprep.subr.mxu0 %v2511
      %2565 = vmatpush1.msra.mxu0 %v2510
      %2566 = vmatprep.subr.mxu0 %v2515
      %2567 = vmatpush1.msra.mxu0 %v2514
      %2568 = vmatprep.subr.mxu0 %v2519
      %2569 = vmatpush1.msra.mxu0 %v2518
      %2570 = vmatprep.subr.mxu0 %v2523
      %2571 = vmatpush1.msra.mxu0 %v2522
      %2572 = vmatprep.subr.mxu0 %v2527
      %2573 = vmatpush1.msra.mxu0 %v2526
      %2574 = vmatprep.subr.mxu0 %v2531
      %2575 = vmatpush1.msra.mxu0 %v2530
      %2576 = vmatprep.subr.mxu0 %v2535
      %2577 = vmatpush1.msra.mxu0 %v2534
      %2578 = vmatprep.subr.mxu0 %v2539
      %2579 = vmatpush1.msra.mxu0 %v2538
      %2580 = vmatprep.subr.mxu0 %v2543
      %2581 = vmatpush1.msra.mxu0 %v2542
      %2582 = vmatprep.subr.mxu0 %v2547
      %2583 = vmatpush1.msra.mxu0 %v2546
      %2584 = vmatprep.subr.mxu0 %v2551
      %2585 = vmatpush1.msra.mxu0 %v2550
      %2586 = vmatprep.subr.mxu0 0.0
      %2587 = vmatpush1.msra.mxu0 0.0
      %2588 = vmatprep.subr.mxu0 0.0
      %2589 = vmatpush1.msra.mxu0 0.0
      %2590 = vmatprep.subr.mxu0 0.0
      %2591 = vmatpush1.msra.mxu0 0.0
      %2592 = vmatprep.subr.mxu0 0.0
      %2593 = vmatpush1.msra.mxu0 0.0
      %2594 = vmatprep.subr.mxu0 0.0
      %2595 = vmatpush1.msra.mxu0 0.0
      %2596 = vmatprep.subr.mxu0 0.0
      %2597 = vmatpush1.msra.mxu0 0.0
      %2598 = vmatprep.subr.mxu0 0.0
      %2599 = vmatpush1.msra.mxu0 0.0
      %2600 = vmatprep.subr.mxu0 0.0
      %2601 = vmatpush1.msra.mxu0 0.0
      %2602 = vmatprep.subr.mxu0 0.0
      %2603 = vmatpush1.msra.mxu0 0.0
      %2604 = vmatprep.subr.mxu0 0.0
      %2605 = vmatpush1.msra.mxu0 0.0
      %2606 = vmatprep.subr.mxu0 0.0
      %2607 = vmatpush1.msra.mxu0 0.0
      %2608 = vmatprep.subr.mxu0 0.0
      %2609 = vmatpush1.msra.mxu0 0.0
      %2610 = vmatprep.subr.mxu0 0.0
      %2611 = vmatpush1.msra.mxu0 0.0
      %2612 = vmatprep.subr.mxu0 0.0
      %2613 = vmatpush1.msra.mxu0 0.0
      %2614 = vmatprep.subr.mxu0 0.0
      %2615 = vmatpush1.msra.mxu0 0.0
      %2616 = vmatprep.subr.mxu0 0.0
      %2617 = vmatpush1.msra.mxu0 0.0
      %2618 = vmatprep.mubr.f32.mxu0 0.0
      %2619 = vmatmul.mubr.f32.gmra.mrb[0].mxu0 %v2475
      %v2620 = vpop.f32.mrb[0].mxu0
      %v2621 = vadd.f32 0.0, %v2620
      %v2622 = vpop.f32.mrb[0].mxu0
      %v2623 = vadd.f32 0.0, %v2622
      %2624 = vdwg.mxu0
      %2625 = vmatprep.subr.mxu0 %v2493
      %2626 = vmatpush1.msra.mxu0 %v2492
      %2627 = vmatprep.subr.mxu0 %v2497
      %2628 = vmatpush1.msra.mxu0 %v2496
      %2629 = vmatprep.subr.mxu0 %v2501
      %2630 = vmatpush1.msra.mxu0 %v2500
      %2631 = vmatprep.subr.mxu0 %v2505
      %2632 = vmatpush1.msra.mxu0 %v2504
      %2633 = vmatprep.subr.mxu0 %v2509
      %2634 = vmatpush1.msra.mxu0 %v2508
      %2635 = vmatprep.subr.mxu0 %v2513
      %2636 = vmatpush1.msra.mxu0 %v2512
      %2637 = vmatprep.subr.mxu0 %v2517
      %2638 = vmatpush1.msra.mxu0 %v2516
      %2639 = vmatprep.subr.mxu0 %v2521
      %2640 = vmatpush1.msra.mxu0 %v2520
      %2641 = vmatprep.subr.mxu0 %v2525
      %2642 = vmatpush1.msra.mxu0 %v2524
      %2643 = vmatprep.subr.mxu0 %v2529
      %2644 = vmatpush1.msra.mxu0 %v2528
      %2645 = vmatprep.subr.mxu0 %v2533
      %2646 = vmatpush1.msra.mxu0 %v2532
      %2647 = vmatprep.subr.mxu0 %v2537
      %2648 = vmatpush1.msra.mxu0 %v2536
      %2649 = vmatprep.subr.mxu0 %v2541
      %2650 = vmatpush1.msra.mxu0 %v2540
      %2651 = vmatprep.subr.mxu0 %v2545
      %2652 = vmatpush1.msra.mxu0 %v2544
      %2653 = vmatprep.subr.mxu0 %v2549
      %2654 = vmatpush1.msra.mxu0 %v2548
      %2655 = vmatprep.subr.mxu0 %v2553
      %2656 = vmatpush1.msra.mxu0 %v2552
      %2657 = vmatprep.subr.mxu0 0.0
      %2658 = vmatpush1.msra.mxu0 0.0
      %2659 = vmatprep.subr.mxu0 0.0
      %2660 = vmatpush1.msra.mxu0 0.0
      %2661 = vmatprep.subr.mxu0 0.0
      %2662 = vmatpush1.msra.mxu0 0.0
      %2663 = vmatprep.subr.mxu0 0.0
      %2664 = vmatpush1.msra.mxu0 0.0
      %2665 = vmatprep.subr.mxu0 0.0
      %2666 = vmatpush1.msra.mxu0 0.0
      %2667 = vmatprep.subr.mxu0 0.0
      %2668 = vmatpush1.msra.mxu0 0.0
      %2669 = vmatprep.subr.mxu0 0.0
      %2670 = vmatpush1.msra.mxu0 0.0
      %2671 = vmatprep.subr.mxu0 0.0
      %2672 = vmatpush1.msra.mxu0 0.0
      %2673 = vmatprep.subr.mxu0 0.0
      %2674 = vmatpush1.msra.mxu0 0.0
      %2675 = vmatprep.subr.mxu0 0.0
      %2676 = vmatpush1.msra.mxu0 0.0
      %2677 = vmatprep.subr.mxu0 0.0
      %2678 = vmatpush1.msra.mxu0 0.0
      %2679 = vmatprep.subr.mxu0 0.0
      %2680 = vmatpush1.msra.mxu0 0.0
      %2681 = vmatprep.subr.mxu0 0.0
      %2682 = vmatpush1.msra.mxu0 0.0
      %2683 = vmatprep.subr.mxu0 0.0
      %2684 = vmatpush1.msra.mxu0 0.0
      %2685 = vmatprep.subr.mxu0 0.0
      %2686 = vmatpush1.msra.mxu0 0.0
      %2687 = vmatprep.subr.mxu0 0.0
      %2688 = vmatpush1.msra.mxu0 0.0
      %2689 = vmatprep.mubr.f32.mxu0 0.0
      %2690 = vmatmul.mubr.f32.gmra.mrb[0].mxu0 %v2475
      %v2691 = vpop.f32.mrb[0].mxu0
      %v2692 = vadd.f32 0.0, %v2691
      %v2693 = vpop.f32.mrb[0].mxu0
      %v2694 = vadd.f32 0.0, %v2693
      %2695 = vdwg.mxu0
      %v2696 = vadd.f32 %v2486, %v2621
      %v2697 = vadd.f32 %v2487, %v2623
      %v2698 = vadd.f32 %v2488, %v2692
      %v2699 = vadd.f32 %v2489, %v2694
      %v2700 = vmul.f32 %v2696, 0.5
      %v2701 = vtanh.pop %v2700
      %v2702 = vmul.f32 %v2701, 0.5
      %v2703 = vadd.f32 %v2702, 0.5
      %v2704 = vmul.f32 %v2697, 0.5
      %v2705 = vtanh.pop %v2704
      %v2706 = vmul.f32 %v2705, 0.5
      %v2707 = vadd.f32 %v2706, 0.5
      %v2708 = vtanh.pop %v2698
      %v2709 = vmul.f32 %v2699, 0.5
      %v2710 = vtanh.pop %v2709
      %v2711 = vmul.f32 %v2710, 0.5
      %v2712 = vadd.f32 %v2711, 0.5
      %v2713 = vmul.f32 %v2707, %v2473
      %v2714 = vmul.f32 %v2703, %v2708
      %v2715 = vadd.f32 %v2713, %v2714
      %v2716 = vtanh.pop %v2715
      %v2717 = vmul.f32 %v2712, %v2716
      %s2718 = scalar_lea.vmem [#allocation15], %s2480
      %2719 = vst [vmem:[%s2718] sm:$0xff] %v2717
      %s2720 = sadd.s32 %s2478, 2
      %s2721 = smul.u32 %s2720, 8
      %s2722 = sshra.s32 %s2721, 3
      %s2723 = sand.u32 %s2721, 7
      %s2724 = smul.u32 %s2722, 4
      %s2725 = smul.addr %s2724, 8
      %s2726 = scalar_lea.vmem [#allocation2], %s2725
      %v2727 = vld [vmem:[%s2726] sm:$0xff]
      %v2728 = vld [vmem:[%s2726 + $0x8] sm:$0xff]
      %v2729 = vld [vmem:[%s2726 + $0x10] sm:$0xff]
      %v2730 = vld [vmem:[%s2726 + $0x18] sm:$0xff]
      %v2731 = vld [vmem:[%s2247] sm:$0xff]
      %v2732 = vld [vmem:[%s2247 + $0x8] sm:$0xff]
      %v2733 = vld [vmem:[%s2247 + $0x10] sm:$0xff]
      %v2734 = vld [vmem:[%s2247 + $0x18] sm:$0xff]
      %v2735 = vld [vmem:[%s2247 + $0x20] sm:$0xff]
      %v2736 = vld [vmem:[%s2247 + $0x28] sm:$0xff]
      %v2737 = vld [vmem:[%s2247 + $0x30] sm:$0xff]
      %v2738 = vld [vmem:[%s2247 + $0x38] sm:$0xff]
      %v2739 = vld [vmem:[%s2247 + $0x40] sm:$0xff]
      %v2740 = vld [vmem:[%s2247 + $0x48] sm:$0xff]
      %v2741 = vld [vmem:[%s2247 + $0x50] sm:$0xff]
      %v2742 = vld [vmem:[%s2247 + $0x58] sm:$0xff]
      %v2743 = vld [vmem:[%s2247 + $0x60] sm:$0xff]
      %v2744 = vld [vmem:[%s2247 + $0x68] sm:$0xff]
      %v2745 = vld [vmem:[%s2247 + $0x70] sm:$0xff]
      %v2746 = vld [vmem:[%s2247 + $0x78] sm:$0xff]
      %v2747 = vld [vmem:[%s2247 + $0x80] sm:$0xff]
      %v2748 = vld [vmem:[%s2247 + $0x88] sm:$0xff]
      %v2749 = vld [vmem:[%s2247 + $0x90] sm:$0xff]
      %v2750 = vld [vmem:[%s2247 + $0x98] sm:$0xff]
      %v2751 = vld [vmem:[%s2247 + $0xa0] sm:$0xff]
      %v2752 = vld [vmem:[%s2247 + $0xa8] sm:$0xff]
      %v2753 = vld [vmem:[%s2247 + $0xb0] sm:$0xff]
      %v2754 = vld [vmem:[%s2247 + $0xb8] sm:$0xff]
      %v2755 = vld [vmem:[%s2247 + $0xc0] sm:$0xff]
      %v2756 = vld [vmem:[%s2247 + $0xc8] sm:$0xff]
      %v2757 = vld [vmem:[%s2247 + $0xd0] sm:$0xff]
      %v2758 = vld [vmem:[%s2247 + $0xd8] sm:$0xff]
      %v2759 = vld [vmem:[%s2247 + $0xe0] sm:$0xff]
      %v2760 = vld [vmem:[%s2247 + $0xe8] sm:$0xff]
      %v2761 = vld [vmem:[%s2247 + $0xf0] sm:$0xff]
      %v2762 = vld [vmem:[%s2247 + $0xf8] sm:$0xff]
      %v2763 = vld [vmem:[%s2247 + $0x100] sm:$0xff]
      %v2764 = vld [vmem:[%s2247 + $0x108] sm:$0xff]
      %v2765 = vld [vmem:[%s2247 + $0x110] sm:$0xff]
      %v2766 = vld [vmem:[%s2247 + $0x118] sm:$0xff]
      %v2767 = vld [vmem:[%s2247 + $0x120] sm:$0xff]
      %v2768 = vld [vmem:[%s2247 + $0x128] sm:$0xff]
      %v2769 = vld [vmem:[%s2247 + $0x130] sm:$0xff]
      %v2770 = vld [vmem:[%s2247 + $0x138] sm:$0xff]
      %v2771 = vld [vmem:[%s2247 + $0x140] sm:$0xff]
      %v2772 = vld [vmem:[%s2247 + $0x148] sm:$0xff]
      %v2773 = vld [vmem:[%s2247 + $0x150] sm:$0xff]
      %v2774 = vld [vmem:[%s2247 + $0x158] sm:$0xff]
      %v2775 = vld [vmem:[%s2247 + $0x160] sm:$0xff]
      %v2776 = vld [vmem:[%s2247 + $0x168] sm:$0xff]
      %v2777 = vld [vmem:[%s2247 + $0x170] sm:$0xff]
      %v2778 = vld [vmem:[%s2247 + $0x178] sm:$0xff]
      %v2779 = vld [vmem:[%s2247 + $0x180] sm:$0xff]
      %v2780 = vld [vmem:[%s2247 + $0x188] sm:$0xff]
      %v2781 = vld [vmem:[%s2247 + $0x190] sm:$0xff]
      %v2782 = vld [vmem:[%s2247 + $0x198] sm:$0xff]
      %v2783 = vld [vmem:[%s2247 + $0x1a0] sm:$0xff]
      %v2784 = vld [vmem:[%s2247 + $0x1a8] sm:$0xff]
      %v2785 = vld [vmem:[%s2247 + $0x1b0] sm:$0xff]
      %v2786 = vld [vmem:[%s2247 + $0x1b8] sm:$0xff]
      %v2787 = vld [vmem:[%s2247 + $0x1c0] sm:$0xff]
      %v2788 = vld [vmem:[%s2247 + $0x1c8] sm:$0xff]
      %v2789 = vld [vmem:[%s2247 + $0x1d0] sm:$0xff]
      %v2790 = vld [vmem:[%s2247 + $0x1d8] sm:$0xff]
      %v2791 = vld [vmem:[%s2247 + $0x1e0] sm:$0xff]
      %v2792 = vld [vmem:[%s2247 + $0x1e8] sm:$0xff]
      %v2793 = vld [vmem:[%s2247 + $0x1f0] sm:$0xff]
      %v2794 = vld [vmem:[%s2247 + $0x1f8] sm:$0xff]
      %2795 = vmatprep.subr.mxu0 %v2732
      %2796 = vmatpush1.msra.mxu0 %v2731
      %2797 = vmatprep.subr.mxu0 %v2736
      %2798 = vmatpush1.msra.mxu0 %v2735
      %2799 = vmatprep.subr.mxu0 %v2740
      %2800 = vmatpush1.msra.mxu0 %v2739
      %2801 = vmatprep.subr.mxu0 %v2744
      %2802 = vmatpush1.msra.mxu0 %v2743
      %2803 = vmatprep.subr.mxu0 %v2748
      %2804 = vmatpush1.msra.mxu0 %v2747
      %2805 = vmatprep.subr.mxu0 %v2752
      %2806 = vmatpush1.msra.mxu0 %v2751
      %2807 = vmatprep.subr.mxu0 %v2756
      %2808 = vmatpush1.msra.mxu0 %v2755
      %2809 = vmatprep.subr.mxu0 %v2760
      %2810 = vmatpush1.msra.mxu0 %v2759
      %2811 = vmatprep.subr.mxu0 %v2764
      %2812 = vmatpush1.msra.mxu0 %v2763
      %2813 = vmatprep.subr.mxu0 %v2768
      %2814 = vmatpush1.msra.mxu0 %v2767
      %2815 = vmatprep.subr.mxu0 %v2772
      %2816 = vmatpush1.msra.mxu0 %v2771
      %2817 = vmatprep.subr.mxu0 %v2776
      %2818 = vmatpush1.msra.mxu0 %v2775
      %2819 = vmatprep.subr.mxu0 %v2780
      %2820 = vmatpush1.msra.mxu0 %v2779
      %2821 = vmatprep.subr.mxu0 %v2784
      %2822 = vmatpush1.msra.mxu0 %v2783
      %2823 = vmatprep.subr.mxu0 %v2788
      %2824 = vmatpush1.msra.mxu0 %v2787
      %2825 = vmatprep.subr.mxu0 %v2792
      %2826 = vmatpush1.msra.mxu0 %v2791
      %2827 = vmatprep.subr.mxu0 0.0
      %2828 = vmatpush1.msra.mxu0 0.0
      %2829 = vmatprep.subr.mxu0 0.0
      %2830 = vmatpush1.msra.mxu0 0.0
      %2831 = vmatprep.subr.mxu0 0.0
      %2832 = vmatpush1.msra.mxu0 0.0
      %2833 = vmatprep.subr.mxu0 0.0
      %2834 = vmatpush1.msra.mxu0 0.0
      %2835 = vmatprep.subr.mxu0 0.0
      %2836 = vmatpush1.msra.mxu0 0.0
      %2837 = vmatprep.subr.mxu0 0.0
      %2838 = vmatpush1.msra.mxu0 0.0
      %2839 = vmatprep.subr.mxu0 0.0
      %2840 = vmatpush1.msra.mxu0 0.0
      %2841 = vmatprep.subr.mxu0 0.0
      %2842 = vmatpush1.msra.mxu0 0.0
      %2843 = vmatprep.subr.mxu0 0.0
      %2844 = vmatpush1.msra.mxu0 0.0
      %2845 = vmatprep.subr.mxu0 0.0
      %2846 = vmatpush1.msra.mxu0 0.0
      %2847 = vmatprep.subr.mxu0 0.0
      %2848 = vmatpush1.msra.mxu0 0.0
      %2849 = vmatprep.subr.mxu0 0.0
      %2850 = vmatpush1.msra.mxu0 0.0
      %2851 = vmatprep.subr.mxu0 0.0
      %2852 = vmatpush1.msra.mxu0 0.0
      %2853 = vmatprep.subr.mxu0 0.0
      %2854 = vmatpush1.msra.mxu0 0.0
      %2855 = vmatprep.subr.mxu0 0.0
      %2856 = vmatpush1.msra.mxu0 0.0
      %2857 = vmatprep.subr.mxu0 0.0
      %2858 = vmatpush1.msra.mxu0 0.0
      %2859 = vmatprep.mubr.f32.mxu0 0.0
      %2860 = vmatmul.mubr.f32.gmra.mrb[0].mxu0 %v2717
      %v2861 = vpop.f32.mrb[0].mxu0
      %v2862 = vadd.f32 0.0, %v2861
      %v2863 = vpop.f32.mrb[0].mxu0
      %v2864 = vadd.f32 0.0, %v2863
      %2865 = vdwg.mxu0
      %2866 = vmatprep.subr.mxu0 %v2734
      %2867 = vmatpush1.msra.mxu0 %v2733
      %2868 = vmatprep.subr.mxu0 %v2738
      %2869 = vmatpush1.msra.mxu0 %v2737
      %2870 = vmatprep.subr.mxu0 %v2742
      %2871 = vmatpush1.msra.mxu0 %v2741
      %2872 = vmatprep.subr.mxu0 %v2746
      %2873 = vmatpush1.msra.mxu0 %v2745
      %2874 = vmatprep.subr.mxu0 %v2750
      %2875 = vmatpush1.msra.mxu0 %v2749
      %2876 = vmatprep.subr.mxu0 %v2754
      %2877 = vmatpush1.msra.mxu0 %v2753
      %2878 = vmatprep.subr.mxu0 %v2758
      %2879 = vmatpush1.msra.mxu0 %v2757
      %2880 = vmatprep.subr.mxu0 %v2762
      %2881 = vmatpush1.msra.mxu0 %v2761
      %2882 = vmatprep.subr.mxu0 %v2766
      %2883 = vmatpush1.msra.mxu0 %v2765
      %2884 = vmatprep.subr.mxu0 %v2770
      %2885 = vmatpush1.msra.mxu0 %v2769
      %2886 = vmatprep.subr.mxu0 %v2774
      %2887 = vmatpush1.msra.mxu0 %v2773
      %2888 = vmatprep.subr.mxu0 %v2778
      %2889 = vmatpush1.msra.mxu0 %v2777
      %2890 = vmatprep.subr.mxu0 %v2782
      %2891 = vmatpush1.msra.mxu0 %v2781
      %2892 = vmatprep.subr.mxu0 %v2786
      %2893 = vmatpush1.msra.mxu0 %v2785
      %2894 = vmatprep.subr.mxu0 %v2790
      %2895 = vmatpush1.msra.mxu0 %v2789
      %2896 = vmatprep.subr.mxu0 %v2794
      %2897 = vmatpush1.msra.mxu0 %v2793
      %2898 = vmatprep.subr.mxu0 0.0
      %2899 = vmatpush1.msra.mxu0 0.0
      %2900 = vmatprep.subr.mxu0 0.0
      %2901 = vmatpush1.msra.mxu0 0.0
      %2902 = vmatprep.subr.mxu0 0.0
      %2903 = vmatpush1.msra.mxu0 0.0
      %2904 = vmatprep.subr.mxu0 0.0
      %2905 = vmatpush1.msra.mxu0 0.0
      %2906 = vmatprep.subr.mxu0 0.0
      %2907 = vmatpush1.msra.mxu0 0.0
      %2908 = vmatprep.subr.mxu0 0.0
      %2909 = vmatpush1.msra.mxu0 0.0
      %2910 = vmatprep.subr.mxu0 0.0
      %2911 = vmatpush1.msra.mxu0 0.0
      %2912 = vmatprep.subr.mxu0 0.0
      %2913 = vmatpush1.msra.mxu0 0.0
      %2914 = vmatprep.subr.mxu0 0.0
      %2915 = vmatpush1.msra.mxu0 0.0
      %2916 = vmatprep.subr.mxu0 0.0
      %2917 = vmatpush1.msra.mxu0 0.0
      %2918 = vmatprep.subr.mxu0 0.0
      %2919 = vmatpush1.msra.mxu0 0.0
      %2920 = vmatprep.subr.mxu0 0.0
      %2921 = vmatpush1.msra.mxu0 0.0
      %2922 = vmatprep.subr.mxu0 0.0
      %2923 = vmatpush1.msra.mxu0 0.0
      %2924 = vmatprep.subr.mxu0 0.0
      %2925 = vmatpush1.msra.mxu0 0.0
      %2926 = vmatprep.subr.mxu0 0.0
      %2927 = vmatpush1.msra.mxu0 0.0
      %2928 = vmatprep.subr.mxu0 0.0
      %2929 = vmatpush1.msra.mxu0 0.0
      %2930 = vmatprep.mubr.f32.mxu0 0.0
      %2931 = vmatmul.mubr.f32.gmra.mrb[0].mxu0 %v2717
      %v2932 = vpop.f32.mrb[0].mxu0
      %v2933 = vadd.f32 0.0, %v2932
      %v2934 = vpop.f32.mrb[0].mxu0
      %v2935 = vadd.f32 0.0, %v2934
      %2936 = vdwg.mxu0
      %v2937 = vadd.f32 %v2727, %v2862
      %v2938 = vadd.f32 %v2728, %v2864
      %v2939 = vadd.f32 %v2729, %v2933
      %v2940 = vadd.f32 %v2730, %v2935
      %v2941 = vmul.f32 %v2937, 0.5
      %v2942 = vtanh.pop %v2941
      %v2943 = vmul.f32 %v2942, 0.5
      %v2944 = vadd.f32 %v2943, 0.5
      %v2945 = vmul.f32 %v2938, 0.5
      %v2946 = vtanh.pop %v2945
      %v2947 = vmul.f32 %v2946, 0.5
      %v2948 = vadd.f32 %v2947, 0.5
      %v2949 = vtanh.pop %v2939
      %v2950 = vmul.f32 %v2940, 0.5
      %v2951 = vtanh.pop %v2950
      %v2952 = vmul.f32 %v2951, 0.5
      %v2953 = vadd.f32 %v2952, 0.5
      %v2954 = vmul.f32 %v2948, %v2715
      %v2955 = vmul.f32 %v2944, %v2949
      %v2956 = vadd.f32 %v2954, %v2955
      %v2957 = vtanh.pop %v2956
      %v2958 = vmul.f32 %v2953, %v2957
      %s2959 = scalar_lea.vmem [#allocation15], %s2721
      %2960 = vst [vmem:[%s2959] sm:$0xff] %v2958
      %s2961 = sadd.s32 %s2478, 3
      %s2962 = smul.u32 %s2961, 8
      %s2963 = sshra.s32 %s2962, 3
      %s2964 = sand.u32 %s2962, 7
      %s2965 = smul.u32 %s2963, 4
      %s2966 = smul.addr %s2965, 8
      %s2967 = scalar_lea.vmem [#allocation2], %s2966
      %v2968 = vld [vmem:[%s2967] sm:$0xff]
      %v2969 = vld [vmem:[%s2967 + $0x8] sm:$0xff]
      %v2970 = vld [vmem:[%s2967 + $0x10] sm:$0xff]
      %v2971 = vld [vmem:[%s2967 + $0x18] sm:$0xff]
      %v2972 = vld [vmem:[%s2247] sm:$0xff]
      %v2973 = vld [vmem:[%s2247 + $0x8] sm:$0xff]
      %v2974 = vld [vmem:[%s2247 + $0x10] sm:$0xff]
      %v2975 = vld [vmem:[%s2247 + $0x18] sm:$0xff]
      %v2976 = vld [vmem:[%s2247 + $0x20] sm:$0xff]
      %v2977 = vld [vmem:[%s2247 + $0x28] sm:$0xff]
      %v2978 = vld [vmem:[%s2247 + $0x30] sm:$0xff]
      %v2979 = vld [vmem:[%s2247 + $0x38] sm:$0xff]
      %v2980 = vld [vmem:[%s2247 + $0x40] sm:$0xff]
      %v2981 = vld [vmem:[%s2247 + $0x48] sm:$0xff]
      %v2982 = vld [vmem:[%s2247 + $0x50] sm:$0xff]
      %v2983 = vld [vmem:[%s2247 + $0x58] sm:$0xff]
      %v2984 = vld [vmem:[%s2247 + $0x60] sm:$0xff]
      %v2985 = vld [vmem:[%s2247 + $0x68] sm:$0xff]
      %v2986 = vld [vmem:[%s2247 + $0x70] sm:$0xff]
      %v2987 = vld [vmem:[%s2247 + $0x78] sm:$0xff]
      %v2988 = vld [vmem:[%s2247 + $0x80] sm:$0xff]
      %v2989 = vld [vmem:[%s2247 + $0x88] sm:$0xff]
      %v2990 = vld [vmem:[%s2247 + $0x90] sm:$0xff]
      %v2991 = vld [vmem:[%s2247 + $0x98] sm:$0xff]
      %v2992 = vld [vmem:[%s2247 + $0xa0] sm:$0xff]
      %v2993 = vld [vmem:[%s2247 + $0xa8] sm:$0xff]
      %v2994 = vld [vmem:[%s2247 + $0xb0] sm:$0xff]
      %v2995 = vld [vmem:[%s2247 + $0xb8] sm:$0xff]
      %v2996 = vld [vmem:[%s2247 + $0xc0] sm:$0xff]
      %v2997 = vld [vmem:[%s2247 + $0xc8] sm:$0xff]
      %v2998 = vld [vmem:[%s2247 + $0xd0] sm:$0xff]
      %v2999 = vld [vmem:[%s2247 + $0xd8] sm:$0xff]
      %v3000 = vld [vmem:[%s2247 + $0xe0] sm:$0xff]
      %v3001 = vld [vmem:[%s2247 + $0xe8] sm:$0xff]
      %v3002 = vld [vmem:[%s2247 + $0xf0] sm:$0xff]
      %v3003 = vld [vmem:[%s2247 + $0xf8] sm:$0xff]
      %v3004 = vld [vmem:[%s2247 + $0x100] sm:$0xff]
      %v3005 = vld [vmem:[%s2247 + $0x108] sm:$0xff]
      %v3006 = vld [vmem:[%s2247 + $0x110] sm:$0xff]
      %v3007 = vld [vmem:[%s2247 + $0x118] sm:$0xff]
      %v3008 = vld [vmem:[%s2247 + $0x120] sm:$0xff]
      %v3009 = vld [vmem:[%s2247 + $0x128] sm:$0xff]
      %v3010 = vld [vmem:[%s2247 + $0x130] sm:$0xff]
      %v3011 = vld [vmem:[%s2247 + $0x138] sm:$0xff]
      %v3012 = vld [vmem:[%s2247 + $0x140] sm:$0xff]
      %v3013 = vld [vmem:[%s2247 + $0x148] sm:$0xff]
      %v3014 = vld [vmem:[%s2247 + $0x150] sm:$0xff]
      %v3015 = vld [vmem:[%s2247 + $0x158] sm:$0xff]
      %v3016 = vld [vmem:[%s2247 + $0x160] sm:$0xff]
      %v3017 = vld [vmem:[%s2247 + $0x168] sm:$0xff]
      %v3018 = vld [vmem:[%s2247 + $0x170] sm:$0xff]
      %v3019 = vld [vmem:[%s2247 + $0x178] sm:$0xff]
      %v3020 = vld [vmem:[%s2247 + $0x180] sm:$0xff]
      %v3021 = vld [vmem:[%s2247 + $0x188] sm:$0xff]
      %v3022 = vld [vmem:[%s2247 + $0x190] sm:$0xff]
      %v3023 = vld [vmem:[%s2247 + $0x198] sm:$0xff]
      %v3024 = vld [vmem:[%s2247 + $0x1a0] sm:$0xff]
      %v3025 = vld [vmem:[%s2247 + $0x1a8] sm:$0xff]
      %v3026 = vld [vmem:[%s2247 + $0x1b0] sm:$0xff]
      %v3027 = vld [vmem:[%s2247 + $0x1b8] sm:$0xff]
      %v3028 = vld [vmem:[%s2247 + $0x1c0] sm:$0xff]
      %v3029 = vld [vmem:[%s2247 + $0x1c8] sm:$0xff]
      %v3030 = vld [vmem:[%s2247 + $0x1d0] sm:$0xff]
      %v3031 = vld [vmem:[%s2247 + $0x1d8] sm:$0xff]
      %v3032 = vld [vmem:[%s2247 + $0x1e0] sm:$0xff]
      %v3033 = vld [vmem:[%s2247 + $0x1e8] sm:$0xff]
      %v3034 = vld [vmem:[%s2247 + $0x1f0] sm:$0xff]
      %v3035 = vld [vmem:[%s2247 + $0x1f8] sm:$0xff]
      %3036 = vmatprep.subr.mxu0 %v2973
      %3037 = vmatpush1.msra.mxu0 %v2972
      %3038 = vmatprep.subr.mxu0 %v2977
      %3039 = vmatpush1.msra.mxu0 %v2976
      %3040 = vmatprep.subr.mxu0 %v2981
      %3041 = vmatpush1.msra.mxu0 %v2980
      %3042 = vmatprep.subr.mxu0 %v2985
      %3043 = vmatpush1.msra.mxu0 %v2984
      %3044 = vmatprep.subr.mxu0 %v2989
      %3045 = vmatpush1.msra.mxu0 %v2988
      %3046 = vmatprep.subr.mxu0 %v2993
      %3047 = vmatpush1.msra.mxu0 %v2992
      %3048 = vmatprep.subr.mxu0 %v2997
      %3049 = vmatpush1.msra.mxu0 %v2996
      %3050 = vmatprep.subr.mxu0 %v3001
      %3051 = vmatpush1.msra.mxu0 %v3000
      %3052 = vmatprep.subr.mxu0 %v3005
      %3053 = vmatpush1.msra.mxu0 %v3004
      %3054 = vmatprep.subr.mxu0 %v3009
      %3055 = vmatpush1.msra.mxu0 %v3008
      %3056 = vmatprep.subr.mxu0 %v3013
      %3057 = vmatpush1.msra.mxu0 %v3012
      %3058 = vmatprep.subr.mxu0 %v3017
      %3059 = vmatpush1.msra.mxu0 %v3016
      %3060 = vmatprep.subr.mxu0 %v3021
      %3061 = vmatpush1.msra.mxu0 %v3020
      %3062 = vmatprep.subr.mxu0 %v3025
      %3063 = vmatpush1.msra.mxu0 %v3024
      %3064 = vmatprep.subr.mxu0 %v3029
      %3065 = vmatpush1.msra.mxu0 %v3028
      %3066 = vmatprep.subr.mxu0 %v3033
      %3067 = vmatpush1.msra.mxu0 %v3032
      %3068 = vmatprep.subr.mxu0 0.0
      %3069 = vmatpush1.msra.mxu0 0.0
      %3070 = vmatprep.subr.mxu0 0.0
      %3071 = vmatpush1.msra.mxu0 0.0
      %3072 = vmatprep.subr.mxu0 0.0
      %3073 = vmatpush1.msra.mxu0 0.0
      %3074 = vmatprep.subr.mxu0 0.0
      %3075 = vmatpush1.msra.mxu0 0.0
      %3076 = vmatprep.subr.mxu0 0.0
      %3077 = vmatpush1.msra.mxu0 0.0
      %3078 = vmatprep.subr.mxu0 0.0
      %3079 = vmatpush1.msra.mxu0 0.0
      %3080 = vmatprep.subr.mxu0 0.0
      %3081 = vmatpush1.msra.mxu0 0.0
      %3082 = vmatprep.subr.mxu0 0.0
      %3083 = vmatpush1.msra.mxu0 0.0
      %3084 = vmatprep.subr.mxu0 0.0
      %3085 = vmatpush1.msra.mxu0 0.0
      %3086 = vmatprep.subr.mxu0 0.0
      %3087 = vmatpush1.msra.mxu0 0.0
      %3088 = vmatprep.subr.mxu0 0.0
      %3089 = vmatpush1.msra.mxu0 0.0
      %3090 = vmatprep.subr.mxu0 0.0
      %3091 = vmatpush1.msra.mxu0 0.0
      %3092 = vmatprep.subr.mxu0 0.0
      %3093 = vmatpush1.msra.mxu0 0.0
      %3094 = vmatprep.subr.mxu0 0.0
      %3095 = vmatpush1.msra.mxu0 0.0
      %3096 = vmatprep.subr.mxu0 0.0
      %3097 = vmatpush1.msra.mxu0 0.0
      %3098 = vmatprep.subr.mxu0 0.0
      %3099 = vmatpush1.msra.mxu0 0.0
      %3100 = vmatprep.mubr.f32.mxu0 0.0
      %3101 = vmatmul.mubr.f32.gmra.mrb[0].mxu0 %v2958
      %v3102 = vpop.f32.mrb[0].mxu0
      %v3103 = vadd.f32 0.0, %v3102
      %v3104 = vpop.f32.mrb[0].mxu0
      %v3105 = vadd.f32 0.0, %v3104
      %3106 = vdwg.mxu0
      %3107 = vmatprep.subr.mxu0 %v2975
      %3108 = vmatpush1.msra.mxu0 %v2974
      %3109 = vmatprep.subr.mxu0 %v2979
      %3110 = vmatpush1.msra.mxu0 %v2978
      %3111 = vmatprep.subr.mxu0 %v2983
      %3112 = vmatpush1.msra.mxu0 %v2982
      %3113 = vmatprep.subr.mxu0 %v2987
      %3114 = vmatpush1.msra.mxu0 %v2986
      %3115 = vmatprep.subr.mxu0 %v2991
      %3116 = vmatpush1.msra.mxu0 %v2990
      %3117 = vmatprep.subr.mxu0 %v2995
      %3118 = vmatpush1.msra.mxu0 %v2994
      %3119 = vmatprep.subr.mxu0 %v2999
      %3120 = vmatpush1.msra.mxu0 %v2998
      %3121 = vmatprep.subr.mxu0 %v3003
      %3122 = vmatpush1.msra.mxu0 %v3002
      %3123 = vmatprep.subr.mxu0 %v3007
      %3124 = vmatpush1.msra.mxu0 %v3006
      %3125 = vmatprep.subr.mxu0 %v3011
      %3126 = vmatpush1.msra.mxu0 %v3010
      %3127 = vmatprep.subr.mxu0 %v3015
      %3128 = vmatpush1.msra.mxu0 %v3014
      %3129 = vmatprep.subr.mxu0 %v3019
      %3130 = vmatpush1.msra.mxu0 %v3018
      %3131 = vmatprep.subr.mxu0 %v3023
      %3132 = vmatpush1.msra.mxu0 %v3022
      %3133 = vmatprep.subr.mxu0 %v3027
      %3134 = vmatpush1.msra.mxu0 %v3026
      %3135 = vmatprep.subr.mxu0 %v3031
      %3136 = vmatpush1.msra.mxu0 %v3030
      %3137 = vmatprep.subr.mxu0 %v3035
      %3138 = vmatpush1.msra.mxu0 %v3034
      %3139 = vmatprep.subr.mxu0 0.0
      %3140 = vmatpush1.msra.mxu0 0.0
      %3141 = vmatprep.subr.mxu0 0.0
      %3142 = vmatpush1.msra.mxu0 0.0
      %3143 = vmatprep.subr.mxu0 0.0
      %3144 = vmatpush1.msra.mxu0 0.0
      %3145 = vmatprep.subr.mxu0 0.0
      %3146 = vmatpush1.msra.mxu0 0.0
      %3147 = vmatprep.subr.mxu0 0.0
      %3148 = vmatpush1.msra.mxu0 0.0
      %3149 = vmatprep.subr.mxu0 0.0
      %3150 = vmatpush1.msra.mxu0 0.0
      %3151 = vmatprep.subr.mxu0 0.0
      %3152 = vmatpush1.msra.mxu0 0.0
      %3153 = vmatprep.subr.mxu0 0.0
      %3154 = vmatpush1.msra.mxu0 0.0
      %3155 = vmatprep.subr.mxu0 0.0
      %3156 = vmatpush1.msra.mxu0 0.0
      %3157 = vmatprep.subr.mxu0 0.0
      %3158 = vmatpush1.msra.mxu0 0.0
      %3159 = vmatprep.subr.mxu0 0.0
      %3160 = vmatpush1.msra.mxu0 0.0
      %3161 = vmatprep.subr.mxu0 0.0
      %3162 = vmatpush1.msra.mxu0 0.0
      %3163 = vmatprep.subr.mxu0 0.0
      %3164 = vmatpush1.msra.mxu0 0.0
      %3165 = vmatprep.subr.mxu0 0.0
      %3166 = vmatpush1.msra.mxu0 0.0
      %3167 = vmatprep.subr.mxu0 0.0
      %3168 = vmatpush1.msra.mxu0 0.0
      %3169 = vmatprep.subr.mxu0 0.0
      %3170 = vmatpush1.msra.mxu0 0.0
      %3171 = vmatprep.mubr.f32.mxu0 0.0
      %3172 = vmatmul.mubr.f32.gmra.mrb[0].mxu0 %v2958
      %v3173 = vpop.f32.mrb[0].mxu0
      %v3174 = vadd.f32 0.0, %v3173
      %v3175 = vpop.f32.mrb[0].mxu0
      %v3176 = vadd.f32 0.0, %v3175
      %3177 = vdwg.mxu0
      %v3178 = vadd.f32 %v2968, %v3103
      %v3179 = vadd.f32 %v2969, %v3105
      %v3180 = vadd.f32 %v2970, %v3174
      %v3181 = vadd.f32 %v2971, %v3176
      %v3182 = vmul.f32 %v3178, 0.5
      %v3183 = vtanh.pop %v3182
      %v3184 = vmul.f32 %v3183, 0.5
      %v3185 = vadd.f32 %v3184, 0.5
      %v3186 = vmul.f32 %v3179, 0.5
      %v3187 = vtanh.pop %v3186
      %v3188 = vmul.f32 %v3187, 0.5
      %v3189 = vadd.f32 %v3188, 0.5
      %v3190 = vtanh.pop %v3180
      %v3191 = vmul.f32 %v3181, 0.5
      %v3192 = vtanh.pop %v3191
      %v3193 = vmul.f32 %v3192, 0.5
      %v3194 = vadd.f32 %v3193, 0.5
      %v3195 = vmul.f32 %v3189, %v2956
      %v3196 = vmul.f32 %v3185, %v3190
      %v3197 = vadd.f32 %v3195, %v3196
      %v3198 = vtanh.pop %v3197
      %v3199 = vmul.f32 %v3194, %v3198
      %s3200 = scalar_lea.vmem [#allocation15], %s2962
      %3201 = vst [vmem:[%s3200] sm:$0xff] %v3199
    $region69: #{tpu_custom_call.1} parent=1 // loop_footer
      %s1960 = sadd.s32 1, %s1956
    $region70: #{tpu_custom_call.1} parent=1 // loop_footer_branch
      %1955 = sbr.rel target = $region66
    $region71: #{tpu_custom_call.1} parent=1 // loop_exit
      _
    %s3202 = scalar_lea.vmem [#allocation16], 8
    %3203 = vst [vmem:[%s3202] sm:$0xff] %v1961
    %s3204 = scalar_lea.vmem [#allocation18], 8
    %3205 = vst [vmem:[%s3204] sm:$0xff] %v1962
    // Predicated region
    $region76: #{tpu_custom_call.1} parent=1 // pred_check
      _
    $region77: #{tpu_custom_call.1} parent=1 // pred_check_branch
      %3207 = sbr.rel (0) target = $region79
    $region78: #{tpu_custom_call.1} parent=1 // pred_region
      %s3209 = ssub.s32 1024, 1024
      %3210 = vsyncadd [#allocation6], %s3209
      %s3211 = sshll.u32 [#allocation15], 4
      %s3212 = int_to_ptr.vmem [resolvable:$true] %s3211
      %3217 = dma.vmem_to_hbm [thread:$0]  %s3212, 1024, %s7, [#allocation6], 128, 128, 8
    $region79: #{tpu_custom_call.1} parent=1 // pred_fallthru
      _
    // Predicated region
    $region80: #{tpu_custom_call.1} parent=1 // pred_check
      _
    $region81: #{tpu_custom_call.1} parent=1 // pred_check_branch
      %3219 = sbr.rel (0) target = $region83
    $region82: #{tpu_custom_call.1} parent=1 // pred_region
      %s3221 = ssub.s32 256, 256
      %3222 = vsyncadd [#allocation17], %s3221
      %s3223 = sshll.u32 [#allocation16], 4
      %s3224 = int_to_ptr.vmem [resolvable:$true] %s3223
      %3229 = dma.vmem_to_hbm [thread:$0]  %s3224, 256, %s8, [#allocation17], 128, 128, 8
    $region83: #{tpu_custom_call.1} parent=1 // pred_fallthru
      _
    // Predicated region
    $region84: #{tpu_custom_call.1} parent=1 // pred_check
      _
    $region85: #{tpu_custom_call.1} parent=1 // pred_check_branch
      %3231 = sbr.rel (0) target = $region87
    $region86: #{tpu_custom_call.1} parent=1 // pred_region
      %s3233 = ssub.s32 256, 256
      %3234 = vsyncadd [#allocation17], %s3233
      %s3235 = sshll.u32 [#allocation18], 4
      %s3236 = int_to_ptr.vmem [resolvable:$true] %s3235
      %3241 = dma.vmem_to_hbm [thread:$0]  %s3236, 256, %s9, [#allocation17], 128, 128, 8
    $region87: #{tpu_custom_call.1} parent=1 // pred_fallthru
      _
    // Predicated region
    $region88: #{tpu_custom_call.1} parent=1 // pred_check
      _
    $region89: #{tpu_custom_call.1} parent=1 // pred_check_branch
      %3243 = sbr.rel (0) target = $region91
    $region90: #{tpu_custom_call.1} parent=1 // pred_region
      %3244 = dma.done [#allocation6], 1024
    $region91: #{tpu_custom_call.1} parent=1 // pred_fallthru
      _
    // Predicated region
    $region92: #{tpu_custom_call.1} parent=1 // pred_check
      _
    $region93: #{tpu_custom_call.1} parent=1 // pred_check_branch
      %3246 = sbr.rel (0) target = $region95
    $region94: #{tpu_custom_call.1} parent=1 // pred_region
      %3247 = dma.done [#allocation17], 256
    $region95: #{tpu_custom_call.1} parent=1 // pred_fallthru
      _
    // Predicated region
    $region96: #{tpu_custom_call.1} parent=1 // pred_check
      _
    $region97: #{tpu_custom_call.1} parent=1 // pred_check_branch
      %3249 = sbr.rel (0) target = $region99
    $region98: #{tpu_custom_call.1} parent=1 // pred_region
      %3250 = dma.done [#allocation17], 256
    $region99: #{tpu_custom_call.1} parent=1 // pred_fallthru
      _
    %3251 = vsyncpa [#allocation5], 1
    %3252 = vsyncpa [#allocation8], 1
    %3253 = vsyncpa [#allocation11], 1
    %3254 = vsyncpa [#allocation14], 1
    %3255 = vsyncpa [#allocation6], 1
    %3256 = vsyncpa [#allocation17], 1

</llo_original>
